<compile_context>
chip_gen: v7x
topology: tpu7x:2x2x1
jax: 0.10.0
libtpu: 0.0.40
codegen_flags: <defaults>
</compile_context>

<pallas_src>
import functools

import jax
import jax.numpy as jnp
from jax import lax
from jax.experimental import pallas as pl
from jax.experimental.pallas import tpu as pltpu


def detail_add_kernel(mask_ref, x_ref, w1_ref, b1_ref, w2_ref, b2_ref, o_ref,
                      *, W, L):
    # mask_ref: (8, L) f32   one row per non-center tap (precomputed in wrapper)
    # x_ref   : (G0, L)      channels on sublanes, batch*pixels on lanes
    # w1_ref  : (9, 2*G0, G0)   tap t = 3*dy + dx, each tap is (Cout, Cin)
    # b1_ref  : (2*G0, 1)
    # w2_ref  : (9, G0, 2*G0)
    # b2_ref  : (G0, 1)
    # o_ref   : (G0, L)
    masks = mask_ref[...]                                   # (8, L)

    def conv3x3(feat, w_ref, b_ref):
        # feat: (Cin, L) f32; w_ref: (9, Cout, Cin); returns (Cout, L) f32.
        # Center tap (t=4): no shift, no mask.
        acc = jnp.dot(w_ref[4], feat, preferred_element_type=jnp.float32)
        m_row = 0
        for t in range(9):
            if t == 4:
                continue
            oy, ox = t // 3 - 1, t % 3 - 1
            shift = (-(oy * W + ox)) % L                    # static, >= 0
            rolled = pltpu.roll(feat, shift=shift, axis=1)  # XLU lane rotate
            blk = rolled * masks[m_row:m_row + 1, :]        # zero out-of-image taps
            acc = acc + jnp.dot(w_ref[t], blk,
                                preferred_element_type=jnp.float32)
            m_row += 1
        return acc + b_ref[...]

    x = x_ref[...].astype(jnp.float32)
    y1 = jnp.maximum(conv3x3(x, w1_ref, b1_ref), 0.0)       # (2*G0, L)
    y2 = conv3x3(y1, w2_ref, b2_ref)                        # (G0, L)
    o_ref[...] = y2.astype(o_ref.dtype)


def detail_add_forward(x_nchw, params):
    """x: (N, G0, H, W) NCHW. params: ((w1,b1),(w2,b2)) in torch OIHW layout."""
    (w1, b1), (w2, b2) = params
    N, G0, H, W = x_nchw.shape
    C1 = w1.shape[0]          # 2 * G0
    HW = H * W
    L = N * HW                # batch*pixels on the lane axis

    # Channels on sublanes, batch*pixels on lanes.
    x_flat = jnp.transpose(x_nchw, (1, 0, 2, 3)).reshape(G0, L)

    # OIHW -> (dy, dx, Cout, Cin) -> (9, Cout, Cin); tap index t = 3*dy + dx.
    w1t = jnp.transpose(w1, (2, 3, 0, 1)).reshape(9, C1, G0)
    w2t = jnp.transpose(w2, (2, 3, 0, 1)).reshape(9, G0, C1)
    b1c = b1.reshape(C1, 1)
    b2c = b2.reshape(G0, 1)

    # Per-tap boundary masks, hoisted out of the kernel. Positions are taken
    # modulo HW per image so a lane roll never mixes data across images.
    lane = jnp.arange(L, dtype=jnp.int32)
    p = lane % HW
    h = p // W
    w = p % W
    rows = []
    for t in range(9):
        if t == 4:
            continue
        oy, ox = t // 3 - 1, t % 3 - 1
        valid = ((h + oy >= 0) & (h + oy < H) &
                 (w + ox >= 0) & (w + ox < W))
        rows.append(valid.astype(jnp.float32))
    mask = jnp.stack(rows, axis=0)                          # (8, L)

    kernel = functools.partial(detail_add_kernel, W=W, L=L)
    out = pl.pallas_call(
        kernel,
        out_shape=jax.ShapeDtypeStruct((G0, L), x_nchw.dtype),
        grid_spec=pl.GridSpec(
            grid=(1,),
            in_specs=[
                pl.BlockSpec((8, L), lambda i: (0, 0)),          # masks
                pl.BlockSpec((G0, L), lambda i: (0, 0)),         # x
                pl.BlockSpec((9, C1, G0), lambda i: (0, 0, 0)),  # w1 taps
                pl.BlockSpec((C1, 1), lambda i: (0, 0)),         # b1
                pl.BlockSpec((9, G0, C1), lambda i: (0, 0, 0)),  # w2 taps
                pl.BlockSpec((G0, 1), lambda i: (0, 0)),         # b2
            ],
            out_specs=pl.BlockSpec((G0, L), lambda i: (0, 0)),
        ),
        compiler_params=pltpu.CompilerParams(
            dimension_semantics=("arbitrary",)),
    )(mask, x_flat, w1t, b1c, w2t, b2c)
    return jnp.transpose(out.reshape(G0, N, H, W), (1, 0, 2, 3))


def detail_add_reference(x, params):
    """Pure-JAX reference (lax.conv, NCHW) for correctness checking."""
    (w1, b1), (w2, b2) = params
    dn = ("NCHW", "OIHW", "NCHW")
    y = lax.conv_general_dilated(x, w1, (1, 1), "SAME", dimension_numbers=dn)
    y = jnp.maximum(y + b1[None, :, None, None], 0.0)
    y = lax.conv_general_dilated(y, w2, (1, 1), "SAME", dimension_numbers=dn)
    return y + b2[None, :, None, None]


def init_params(key, G0):
    k1, k2, k3, k4 = jax.random.split(key, 4)
    w1 = jax.random.normal(k1, (2 * G0, G0, 3, 3), jnp.float32) * 0.1  # OIHW
    b1 = jax.random.normal(k2, (2 * G0,), jnp.float32) * 0.1
    w2 = jax.random.normal(k3, (G0, 2 * G0, 3, 3), jnp.float32) * 0.1
    b2 = jax.random.normal(k4, (G0,), jnp.float32) * 0.1
    return ((w1, b1), (w2, b2))


if __name__ == "__main__":
    # detail_add(G0=8): Conv(8->16, 3x3, pad=1) -> ReLU -> Conv(16->8, 3x3, pad=1)
    G0 = 8
    N, H, W = 2, 16, 16

    key = jax.random.PRNGKey(0)
    key, kx = jax.random.split(key)
    x = jax.random.normal(kx, (N, G0, H, W), jnp.float32)  # NCHW like PyTorch
    params = init_params(key, G0)

    out = detail_add_forward(x, params)
    out = jax.block_until_ready(out)

    ref = detail_add_reference(x, params)
    assert out.shape == (N, G0, H, W)
    assert jnp.allclose(out, ref, rtol=1e-4, atol=1e-4), "mismatch vs reference"

    print("KERNEL_OK")
</pallas_src>

<mosaic_0001>
module attributes {stable_mosaic.version = 11 : i64} {
  func.func @detail_add_kernel(%arg0: i32, %arg1: memref<8x512xf32, #tpu.memory_space<vmem>>, %arg2: memref<8x512xf32, #tpu.memory_space<vmem>>, %arg3: memref<9x16x8xf32, #tpu.memory_space<vmem>>, %arg4: memref<16x1xf32, #tpu.memory_space<vmem>>, %arg5: memref<9x8x16xf32, #tpu.memory_space<vmem>>, %arg6: memref<8x1xf32, #tpu.memory_space<vmem>>, %arg7: memref<8x512xf32, #tpu.memory_space<vmem>>) attributes {dimension_semantics = [#tpu.dimension_semantics<arbitrary>], iteration_bounds = array<i64: 1>, scalar_prefetch = 0 : i64, scratch_operands = 0 : i64, tpu.core_type = #tpu.core_type<tc>, window_params = [{pipeline_mode = #tpu.pipeline_mode<synchronous>, transform_indices = @transform_0, window_bounds = array<i64: 8, 512>}, {pipeline_mode = #tpu.pipeline_mode<synchronous>, transform_indices = @transform_1, window_bounds = array<i64: 8, 512>}, {pipeline_mode = #tpu.pipeline_mode<synchronous>, transform_indices = @transform_2, window_bounds = array<i64: 9, 16, 8>}, {pipeline_mode = #tpu.pipeline_mode<synchronous>, transform_indices = @transform_3, window_bounds = array<i64: 16, 1>}, {pipeline_mode = #tpu.pipeline_mode<synchronous>, transform_indices = @transform_4, window_bounds = array<i64: 9, 8, 16>}, {pipeline_mode = #tpu.pipeline_mode<synchronous>, transform_indices = @transform_5, window_bounds = array<i64: 8, 1>}, {pipeline_mode = #tpu.pipeline_mode<synchronous>, transform_indices = @transform_6, window_bounds = array<i64: 8, 512>}]} {
    %c0 = arith.constant 0 : index
    %c0_0 = arith.constant 0 : index
    %0 = vector.load %arg1[%c0, %c0_0] : memref<8x512xf32, #tpu.memory_space<vmem>>, vector<8x512xf32>
    %c0_1 = arith.constant 0 : index
    %c0_2 = arith.constant 0 : index
    %1 = vector.load %arg2[%c0_1, %c0_2] : memref<8x512xf32, #tpu.memory_space<vmem>>, vector<8x512xf32>
    %c4 = arith.constant 4 : index
    %c0_3 = arith.constant 0 : index
    %c0_4 = arith.constant 0 : index
    %2 = vector.load %arg3[%c4, %c0_3, %c0_4] : memref<9x16x8xf32, #tpu.memory_space<vmem>>, vector<1x16x8xf32>
    %3 = vector.shape_cast %2 : vector<1x16x8xf32> to vector<16x8xf32>
    %cst = arith.constant dense<0.000000e+00> : vector<16x512xf32>
    %4 = tpu.matmul %3, %1, %cst {dimension_numbers = #tpu.dot_dimension_numbers<[1], [0], [0], [1], [0, 0, 1, 1], [], []>} : vector<16x8xf32>, vector<8x512xf32>, vector<16x512xf32> -> vector<16x512xf32>
    %c17_i32 = arith.constant 17 : i32
    %5 = tpu.dynamic_rotate %1 by %c17_i32 dim 1 : vector<8x512xf32>, i32 -> vector<8x512xf32>
    %6 = vector.extract_strided_slice %0 {offsets = [0, 0], sizes = [1, 512], strides = [1, 1]} : vector<8x512xf32> to vector<1x512xf32>
    %7 = vector.broadcast %6 : vector<1x512xf32> to vector<8x512xf32>
    %8 = arith.mulf %5, %7 : vector<8x512xf32>
    %c0_5 = arith.constant 0 : index
    %c0_6 = arith.constant 0 : index
    %c0_7 = arith.constant 0 : index
    %9 = vector.load %arg3[%c0_5, %c0_6, %c0_7] : memref<9x16x8xf32, #tpu.memory_space<vmem>>, vector<1x16x8xf32>
    %10 = vector.shape_cast %9 : vector<1x16x8xf32> to vector<16x8xf32>
    %cst_8 = arith.constant dense<0.000000e+00> : vector<16x512xf32>
    %11 = tpu.matmul %10, %8, %cst_8 {dimension_numbers = #tpu.dot_dimension_numbers<[1], [0], [0], [1], [0, 0, 1, 1], [], []>} : vector<16x8xf32>, vector<8x512xf32>, vector<16x512xf32> -> vector<16x512xf32>
    %12 = arith.addf %4, %11 : vector<16x512xf32>
    %c16_i32 = arith.constant 16 : i32
    %13 = tpu.dynamic_rotate %1 by %c16_i32 dim 1 : vector<8x512xf32>, i32 -> vector<8x512xf32>
    %14 = vector.extract_strided_slice %0 {offsets = [1, 0], sizes = [1, 512], strides = [1, 1]} : vector<8x512xf32> to vector<1x512xf32>
    %15 = vector.broadcast %14 : vector<1x512xf32> to vector<8x512xf32>
    %16 = arith.mulf %13, %15 : vector<8x512xf32>
    %c1 = arith.constant 1 : index
    %c0_9 = arith.constant 0 : index
    %c0_10 = arith.constant 0 : index
    %17 = vector.load %arg3[%c1, %c0_9, %c0_10] : memref<9x16x8xf32, #tpu.memory_space<vmem>>, vector<1x16x8xf32>
    %18 = vector.shape_cast %17 : vector<1x16x8xf32> to vector<16x8xf32>
    %cst_11 = arith.constant dense<0.000000e+00> : vector<16x512xf32>
    %19 = tpu.matmul %18, %16, %cst_11 {dimension_numbers = #tpu.dot_dimension_numbers<[1], [0], [0], [1], [0, 0, 1, 1], [], []>} : vector<16x8xf32>, vector<8x512xf32>, vector<16x512xf32> -> vector<16x512xf32>
    %20 = arith.addf %12, %19 : vector<16x512xf32>
    %c15_i32 = arith.constant 15 : i32
    %21 = tpu.dynamic_rotate %1 by %c15_i32 dim 1 : vector<8x512xf32>, i32 -> vector<8x512xf32>
    %22 = vector.extract_strided_slice %0 {offsets = [2, 0], sizes = [1, 512], strides = [1, 1]} : vector<8x512xf32> to vector<1x512xf32>
    %23 = vector.broadcast %22 : vector<1x512xf32> to vector<8x512xf32>
    %24 = arith.mulf %21, %23 : vector<8x512xf32>
    %c2 = arith.constant 2 : index
    %c0_12 = arith.constant 0 : index
    %c0_13 = arith.constant 0 : index
    %25 = vector.load %arg3[%c2, %c0_12, %c0_13] : memref<9x16x8xf32, #tpu.memory_space<vmem>>, vector<1x16x8xf32>
    %26 = vector.shape_cast %25 : vector<1x16x8xf32> to vector<16x8xf32>
    %cst_14 = arith.constant dense<0.000000e+00> : vector<16x512xf32>
    %27 = tpu.matmul %26, %24, %cst_14 {dimension_numbers = #tpu.dot_dimension_numbers<[1], [0], [0], [1], [0, 0, 1, 1], [], []>} : vector<16x8xf32>, vector<8x512xf32>, vector<16x512xf32> -> vector<16x512xf32>
    %28 = arith.addf %20, %27 : vector<16x512xf32>
    %c1_i32 = arith.constant 1 : i32
    %29 = tpu.dynamic_rotate %1 by %c1_i32 dim 1 : vector<8x512xf32>, i32 -> vector<8x512xf32>
    %30 = vector.extract_strided_slice %0 {offsets = [3, 0], sizes = [1, 512], strides = [1, 1]} : vector<8x512xf32> to vector<1x512xf32>
    %31 = vector.broadcast %30 : vector<1x512xf32> to vector<8x512xf32>
    %32 = arith.mulf %29, %31 : vector<8x512xf32>
    %c3 = arith.constant 3 : index
    %c0_15 = arith.constant 0 : index
    %c0_16 = arith.constant 0 : index
    %33 = vector.load %arg3[%c3, %c0_15, %c0_16] : memref<9x16x8xf32, #tpu.memory_space<vmem>>, vector<1x16x8xf32>
    %34 = vector.shape_cast %33 : vector<1x16x8xf32> to vector<16x8xf32>
    %cst_17 = arith.constant dense<0.000000e+00> : vector<16x512xf32>
    %35 = tpu.matmul %34, %32, %cst_17 {dimension_numbers = #tpu.dot_dimension_numbers<[1], [0], [0], [1], [0, 0, 1, 1], [], []>} : vector<16x8xf32>, vector<8x512xf32>, vector<16x512xf32> -> vector<16x512xf32>
    %36 = arith.addf %28, %35 : vector<16x512xf32>
    %c511_i32 = arith.constant 511 : i32
    %37 = tpu.dynamic_rotate %1 by %c511_i32 dim 1 : vector<8x512xf32>, i32 -> vector<8x512xf32>
    %38 = vector.extract_strided_slice %0 {offsets = [4, 0], sizes = [1, 512], strides = [1, 1]} : vector<8x512xf32> to vector<1x512xf32>
    %39 = vector.broadcast %38 : vector<1x512xf32> to vector<8x512xf32>
    %40 = arith.mulf %37, %39 : vector<8x512xf32>
    %c5 = arith.constant 5 : index
    %c0_18 = arith.constant 0 : index
    %c0_19 = arith.constant 0 : index
    %41 = vector.load %arg3[%c5, %c0_18, %c0_19] : memref<9x16x8xf32, #tpu.memory_space<vmem>>, vector<1x16x8xf32>
    %42 = vector.shape_cast %41 : vector<1x16x8xf32> to vector<16x8xf32>
    %cst_20 = arith.constant dense<0.000000e+00> : vector<16x512xf32>
    %43 = tpu.matmul %42, %40, %cst_20 {dimension_numbers = #tpu.dot_dimension_numbers<[1], [0], [0], [1], [0, 0, 1, 1], [], []>} : vector<16x8xf32>, vector<8x512xf32>, vector<16x512xf32> -> vector<16x512xf32>
    %44 = arith.addf %36, %43 : vector<16x512xf32>
    %c497_i32 = arith.constant 497 : i32
    %45 = tpu.dynamic_rotate %1 by %c497_i32 dim 1 : vector<8x512xf32>, i32 -> vector<8x512xf32>
    %46 = vector.extract_strided_slice %0 {offsets = [5, 0], sizes = [1, 512], strides = [1, 1]} : vector<8x512xf32> to vector<1x512xf32>
    %47 = vector.broadcast %46 : vector<1x512xf32> to vector<8x512xf32>
    %48 = arith.mulf %45, %47 : vector<8x512xf32>
    %c6 = arith.constant 6 : index
    %c0_21 = arith.constant 0 : index
    %c0_22 = arith.constant 0 : index
    %49 = vector.load %arg3[%c6, %c0_21, %c0_22] : memref<9x16x8xf32, #tpu.memory_space<vmem>>, vector<1x16x8xf32>
    %50 = vector.shape_cast %49 : vector<1x16x8xf32> to vector<16x8xf32>
    %cst_23 = arith.constant dense<0.000000e+00> : vector<16x512xf32>
    %51 = tpu.matmul %50, %48, %cst_23 {dimension_numbers = #tpu.dot_dimension_numbers<[1], [0], [0], [1], [0, 0, 1, 1], [], []>} : vector<16x8xf32>, vector<8x512xf32>, vector<16x512xf32> -> vector<16x512xf32>
    %52 = arith.addf %44, %51 : vector<16x512xf32>
    %c496_i32 = arith.constant 496 : i32
    %53 = tpu.dynamic_rotate %1 by %c496_i32 dim 1 : vector<8x512xf32>, i32 -> vector<8x512xf32>
    %54 = vector.extract_strided_slice %0 {offsets = [6, 0], sizes = [1, 512], strides = [1, 1]} : vector<8x512xf32> to vector<1x512xf32>
    %55 = vector.broadcast %54 : vector<1x512xf32> to vector<8x512xf32>
    %56 = arith.mulf %53, %55 : vector<8x512xf32>
    %c7 = arith.constant 7 : index
    %c0_24 = arith.constant 0 : index
    %c0_25 = arith.constant 0 : index
    %57 = vector.load %arg3[%c7, %c0_24, %c0_25] : memref<9x16x8xf32, #tpu.memory_space<vmem>>, vector<1x16x8xf32>
    %58 = vector.shape_cast %57 : vector<1x16x8xf32> to vector<16x8xf32>
    %cst_26 = arith.constant dense<0.000000e+00> : vector<16x512xf32>
    %59 = tpu.matmul %58, %56, %cst_26 {dimension_numbers = #tpu.dot_dimension_numbers<[1], [0], [0], [1], [0, 0, 1, 1], [], []>} : vector<16x8xf32>, vector<8x512xf32>, vector<16x512xf32> -> vector<16x512xf32>
    %60 = arith.addf %52, %59 : vector<16x512xf32>
    %c495_i32 = arith.constant 495 : i32
    %61 = tpu.dynamic_rotate %1 by %c495_i32 dim 1 : vector<8x512xf32>, i32 -> vector<8x512xf32>
    %62 = vector.extract_strided_slice %0 {offsets = [7, 0], sizes = [1, 512], strides = [1, 1]} : vector<8x512xf32> to vector<1x512xf32>
    %63 = vector.broadcast %62 : vector<1x512xf32> to vector<8x512xf32>
    %64 = arith.mulf %61, %63 : vector<8x512xf32>
    %c8 = arith.constant 8 : index
    %c0_27 = arith.constant 0 : index
    %c0_28 = arith.constant 0 : index
    %65 = vector.load %arg3[%c8, %c0_27, %c0_28] : memref<9x16x8xf32, #tpu.memory_space<vmem>>, vector<1x16x8xf32>
    %66 = vector.shape_cast %65 : vector<1x16x8xf32> to vector<16x8xf32>
    %cst_29 = arith.constant dense<0.000000e+00> : vector<16x512xf32>
    %67 = tpu.matmul %66, %64, %cst_29 {dimension_numbers = #tpu.dot_dimension_numbers<[1], [0], [0], [1], [0, 0, 1, 1], [], []>} : vector<16x8xf32>, vector<8x512xf32>, vector<16x512xf32> -> vector<16x512xf32>
    %68 = arith.addf %60, %67 : vector<16x512xf32>
    %c0_30 = arith.constant 0 : index
    %c0_31 = arith.constant 0 : index
    %69 = vector.load %arg4[%c0_30, %c0_31] : memref<16x1xf32, #tpu.memory_space<vmem>>, vector<16x1xf32>
    %70 = vector.broadcast %69 : vector<16x1xf32> to vector<16x512xf32>
    %71 = arith.addf %68, %70 : vector<16x512xf32>
    %cst_32 = arith.constant 0.000000e+00 : f32
    %72 = vector.broadcast %cst_32 : f32 to vector<16x512xf32>
    %73 = arith.maximumf %71, %72 : vector<16x512xf32>
    %c4_33 = arith.constant 4 : index
    %c0_34 = arith.constant 0 : index
    %c0_35 = arith.constant 0 : index
    %74 = vector.load %arg5[%c4_33, %c0_34, %c0_35] : memref<9x8x16xf32, #tpu.memory_space<vmem>>, vector<1x8x16xf32>
    %75 = vector.shape_cast %74 : vector<1x8x16xf32> to vector<8x16xf32>
    %cst_36 = arith.constant dense<0.000000e+00> : vector<8x512xf32>
    %76 = tpu.matmul %75, %73, %cst_36 {dimension_numbers = #tpu.dot_dimension_numbers<[1], [0], [0], [1], [0, 0, 1, 1], [], []>} : vector<8x16xf32>, vector<16x512xf32>, vector<8x512xf32> -> vector<8x512xf32>
    %c17_i32_37 = arith.constant 17 : i32
    %77 = tpu.dynamic_rotate %73 by %c17_i32_37 dim 1 : vector<16x512xf32>, i32 -> vector<16x512xf32>
    %78 = vector.extract_strided_slice %0 {offsets = [0, 0], sizes = [1, 512], strides = [1, 1]} : vector<8x512xf32> to vector<1x512xf32>
    %79 = vector.broadcast %78 : vector<1x512xf32> to vector<16x512xf32>
    %80 = arith.mulf %77, %79 : vector<16x512xf32>
    %c0_38 = arith.constant 0 : index
    %c0_39 = arith.constant 0 : index
    %c0_40 = arith.constant 0 : index
    %81 = vector.load %arg5[%c0_38, %c0_39, %c0_40] : memref<9x8x16xf32, #tpu.memory_space<vmem>>, vector<1x8x16xf32>
    %82 = vector.shape_cast %81 : vector<1x8x16xf32> to vector<8x16xf32>
    %cst_41 = arith.constant dense<0.000000e+00> : vector<8x512xf32>
    %83 = tpu.matmul %82, %80, %cst_41 {dimension_numbers = #tpu.dot_dimension_numbers<[1], [0], [0], [1], [0, 0, 1, 1], [], []>} : vector<8x16xf32>, vector<16x512xf32>, vector<8x512xf32> -> vector<8x512xf32>
    %84 = arith.addf %76, %83 : vector<8x512xf32>
    %c16_i32_42 = arith.constant 16 : i32
    %85 = tpu.dynamic_rotate %73 by %c16_i32_42 dim 1 : vector<16x512xf32>, i32 -> vector<16x512xf32>
    %86 = vector.extract_strided_slice %0 {offsets = [1, 0], sizes = [1, 512], strides = [1, 1]} : vector<8x512xf32> to vector<1x512xf32>
    %87 = vector.broadcast %86 : vector<1x512xf32> to vector<16x512xf32>
    %88 = arith.mulf %85, %87 : vector<16x512xf32>
    %c1_43 = arith.constant 1 : index
    %c0_44 = arith.constant 0 : index
    %c0_45 = arith.constant 0 : index
    %89 = vector.load %arg5[%c1_43, %c0_44, %c0_45] : memref<9x8x16xf32, #tpu.memory_space<vmem>>, vector<1x8x16xf32>
    %90 = vector.shape_cast %89 : vector<1x8x16xf32> to vector<8x16xf32>
    %cst_46 = arith.constant dense<0.000000e+00> : vector<8x512xf32>
    %91 = tpu.matmul %90, %88, %cst_46 {dimension_numbers = #tpu.dot_dimension_numbers<[1], [0], [0], [1], [0, 0, 1, 1], [], []>} : vector<8x16xf32>, vector<16x512xf32>, vector<8x512xf32> -> vector<8x512xf32>
    %92 = arith.addf %84, %91 : vector<8x512xf32>
    %c15_i32_47 = arith.constant 15 : i32
    %93 = tpu.dynamic_rotate %73 by %c15_i32_47 dim 1 : vector<16x512xf32>, i32 -> vector<16x512xf32>
    %94 = vector.extract_strided_slice %0 {offsets = [2, 0], sizes = [1, 512], strides = [1, 1]} : vector<8x512xf32> to vector<1x512xf32>
    %95 = vector.broadcast %94 : vector<1x512xf32> to vector<16x512xf32>
    %96 = arith.mulf %93, %95 : vector<16x512xf32>
    %c2_48 = arith.constant 2 : index
    %c0_49 = arith.constant 0 : index
    %c0_50 = arith.constant 0 : index
    %97 = vector.load %arg5[%c2_48, %c0_49, %c0_50] : memref<9x8x16xf32, #tpu.memory_space<vmem>>, vector<1x8x16xf32>
    %98 = vector.shape_cast %97 : vector<1x8x16xf32> to vector<8x16xf32>
    %cst_51 = arith.constant dense<0.000000e+00> : vector<8x512xf32>
    %99 = tpu.matmul %98, %96, %cst_51 {dimension_numbers = #tpu.dot_dimension_numbers<[1], [0], [0], [1], [0, 0, 1, 1], [], []>} : vector<8x16xf32>, vector<16x512xf32>, vector<8x512xf32> -> vector<8x512xf32>
    %100 = arith.addf %92, %99 : vector<8x512xf32>
    %c1_i32_52 = arith.constant 1 : i32
    %101 = tpu.dynamic_rotate %73 by %c1_i32_52 dim 1 : vector<16x512xf32>, i32 -> vector<16x512xf32>
    %102 = vector.extract_strided_slice %0 {offsets = [3, 0], sizes = [1, 512], strides = [1, 1]} : vector<8x512xf32> to vector<1x512xf32>
    %103 = vector.broadcast %102 : vector<1x512xf32> to vector<16x512xf32>
    %104 = arith.mulf %101, %103 : vector<16x512xf32>
    %c3_53 = arith.constant 3 : index
    %c0_54 = arith.constant 0 : index
    %c0_55 = arith.constant 0 : index
    %105 = vector.load %arg5[%c3_53, %c0_54, %c0_55] : memref<9x8x16xf32, #tpu.memory_space<vmem>>, vector<1x8x16xf32>
    %106 = vector.shape_cast %105 : vector<1x8x16xf32> to vector<8x16xf32>
    %cst_56 = arith.constant dense<0.000000e+00> : vector<8x512xf32>
    %107 = tpu.matmul %106, %104, %cst_56 {dimension_numbers = #tpu.dot_dimension_numbers<[1], [0], [0], [1], [0, 0, 1, 1], [], []>} : vector<8x16xf32>, vector<16x512xf32>, vector<8x512xf32> -> vector<8x512xf32>
    %108 = arith.addf %100, %107 : vector<8x512xf32>
    %c511_i32_57 = arith.constant 511 : i32
    %109 = tpu.dynamic_rotate %73 by %c511_i32_57 dim 1 : vector<16x512xf32>, i32 -> vector<16x512xf32>
    %110 = vector.extract_strided_slice %0 {offsets = [4, 0], sizes = [1, 512], strides = [1, 1]} : vector<8x512xf32> to vector<1x512xf32>
    %111 = vector.broadcast %110 : vector<1x512xf32> to vector<16x512xf32>
    %112 = arith.mulf %109, %111 : vector<16x512xf32>
    %c5_58 = arith.constant 5 : index
    %c0_59 = arith.constant 0 : index
    %c0_60 = arith.constant 0 : index
    %113 = vector.load %arg5[%c5_58, %c0_59, %c0_60] : memref<9x8x16xf32, #tpu.memory_space<vmem>>, vector<1x8x16xf32>
    %114 = vector.shape_cast %113 : vector<1x8x16xf32> to vector<8x16xf32>
    %cst_61 = arith.constant dense<0.000000e+00> : vector<8x512xf32>
    %115 = tpu.matmul %114, %112, %cst_61 {dimension_numbers = #tpu.dot_dimension_numbers<[1], [0], [0], [1], [0, 0, 1, 1], [], []>} : vector<8x16xf32>, vector<16x512xf32>, vector<8x512xf32> -> vector<8x512xf32>
    %116 = arith.addf %108, %115 : vector<8x512xf32>
    %c497_i32_62 = arith.constant 497 : i32
    %117 = tpu.dynamic_rotate %73 by %c497_i32_62 dim 1 : vector<16x512xf32>, i32 -> vector<16x512xf32>
    %118 = vector.extract_strided_slice %0 {offsets = [5, 0], sizes = [1, 512], strides = [1, 1]} : vector<8x512xf32> to vector<1x512xf32>
    %119 = vector.broadcast %118 : vector<1x512xf32> to vector<16x512xf32>
    %120 = arith.mulf %117, %119 : vector<16x512xf32>
    %c6_63 = arith.constant 6 : index
    %c0_64 = arith.constant 0 : index
    %c0_65 = arith.constant 0 : index
    %121 = vector.load %arg5[%c6_63, %c0_64, %c0_65] : memref<9x8x16xf32, #tpu.memory_space<vmem>>, vector<1x8x16xf32>
    %122 = vector.shape_cast %121 : vector<1x8x16xf32> to vector<8x16xf32>
    %cst_66 = arith.constant dense<0.000000e+00> : vector<8x512xf32>
    %123 = tpu.matmul %122, %120, %cst_66 {dimension_numbers = #tpu.dot_dimension_numbers<[1], [0], [0], [1], [0, 0, 1, 1], [], []>} : vector<8x16xf32>, vector<16x512xf32>, vector<8x512xf32> -> vector<8x512xf32>
    %124 = arith.addf %116, %123 : vector<8x512xf32>
    %c496_i32_67 = arith.constant 496 : i32
    %125 = tpu.dynamic_rotate %73 by %c496_i32_67 dim 1 : vector<16x512xf32>, i32 -> vector<16x512xf32>
    %126 = vector.extract_strided_slice %0 {offsets = [6, 0], sizes = [1, 512], strides = [1, 1]} : vector<8x512xf32> to vector<1x512xf32>
    %127 = vector.broadcast %126 : vector<1x512xf32> to vector<16x512xf32>
    %128 = arith.mulf %125, %127 : vector<16x512xf32>
    %c7_68 = arith.constant 7 : index
    %c0_69 = arith.constant 0 : index
    %c0_70 = arith.constant 0 : index
    %129 = vector.load %arg5[%c7_68, %c0_69, %c0_70] : memref<9x8x16xf32, #tpu.memory_space<vmem>>, vector<1x8x16xf32>
    %130 = vector.shape_cast %129 : vector<1x8x16xf32> to vector<8x16xf32>
    %cst_71 = arith.constant dense<0.000000e+00> : vector<8x512xf32>
    %131 = tpu.matmul %130, %128, %cst_71 {dimension_numbers = #tpu.dot_dimension_numbers<[1], [0], [0], [1], [0, 0, 1, 1], [], []>} : vector<8x16xf32>, vector<16x512xf32>, vector<8x512xf32> -> vector<8x512xf32>
    %132 = arith.addf %124, %131 : vector<8x512xf32>
    %c495_i32_72 = arith.constant 495 : i32
    %133 = tpu.dynamic_rotate %73 by %c495_i32_72 dim 1 : vector<16x512xf32>, i32 -> vector<16x512xf32>
    %134 = vector.extract_strided_slice %0 {offsets = [7, 0], sizes = [1, 512], strides = [1, 1]} : vector<8x512xf32> to vector<1x512xf32>
    %135 = vector.broadcast %134 : vector<1x512xf32> to vector<16x512xf32>
    %136 = arith.mulf %133, %135 : vector<16x512xf32>
    %c8_73 = arith.constant 8 : index
    %c0_74 = arith.constant 0 : index
    %c0_75 = arith.constant 0 : index
    %137 = vector.load %arg5[%c8_73, %c0_74, %c0_75] : memref<9x8x16xf32, #tpu.memory_space<vmem>>, vector<1x8x16xf32>
    %138 = vector.shape_cast %137 : vector<1x8x16xf32> to vector<8x16xf32>
    %cst_76 = arith.constant dense<0.000000e+00> : vector<8x512xf32>
    %139 = tpu.matmul %138, %136, %cst_76 {dimension_numbers = #tpu.dot_dimension_numbers<[1], [0], [0], [1], [0, 0, 1, 1], [], []>} : vector<8x16xf32>, vector<16x512xf32>, vector<8x512xf32> -> vector<8x512xf32>
    %140 = arith.addf %132, %139 : vector<8x512xf32>
    %c0_77 = arith.constant 0 : index
    %c0_78 = arith.constant 0 : index
    %141 = vector.load %arg6[%c0_77, %c0_78] : memref<8x1xf32, #tpu.memory_space<vmem>>, vector<8x1xf32>
    %142 = vector.broadcast %141 : vector<8x1xf32> to vector<8x512xf32>
    %143 = arith.addf %140, %142 : vector<8x512xf32>
    %c0_79 = arith.constant 0 : index
    %c0_80 = arith.constant 0 : index
    %144 = vector.load %arg7[%c0_79, %c0_80] : memref<8x512xf32, #tpu.memory_space<vmem>>, vector<8x512xf32>
    tpu.vector_store %arg7[%c0_79, %c0_80], %143 {strides = array<i32>} : memref<8x512xf32, #tpu.memory_space<vmem>>, vector<8x512xf32>,
    return
  }
  func.func @transform_0(%arg0: i32) -> (i32, i32) {
    %c0_i32 = arith.constant 0 : i32
    %c0_i32_0 = arith.constant 0 : i32
    %c0_i32_1 = arith.constant 0 : i32
    return %c0_i32, %c0_i32_0 : i32, i32
  }
  func.func @transform_1(%arg0: i32) -> (i32, i32) {
    %c0_i32 = arith.constant 0 : i32
    %c0_i32_0 = arith.constant 0 : i32
    %c0_i32_1 = arith.constant 0 : i32
    return %c0_i32, %c0_i32_0 : i32, i32
  }
  func.func @transform_2(%arg0: i32) -> (i32, i32, i32) {
    %c0_i32 = arith.constant 0 : i32
    %c0_i32_0 = arith.constant 0 : i32
    %c0_i32_1 = arith.constant 0 : i32
    %c0_i32_2 = arith.constant 0 : i32
    return %c0_i32, %c0_i32_0, %c0_i32_1 : i32, i32, i32
  }
  func.func @transform_3(%arg0: i32) -> (i32, i32) {
    %c0_i32 = arith.constant 0 : i32
    %c0_i32_0 = arith.constant 0 : i32
    %c0_i32_1 = arith.constant 0 : i32
    return %c0_i32, %c0_i32_0 : i32, i32
  }
  func.func @transform_4(%arg0: i32) -> (i32, i32, i32) {
    %c0_i32 = arith.constant 0 : i32
    %c0_i32_0 = arith.constant 0 : i32
    %c0_i32_1 = arith.constant 0 : i32
    %c0_i32_2 = arith.constant 0 : i32
    return %c0_i32, %c0_i32_0, %c0_i32_1 : i32, i32, i32
  }
  func.func @transform_5(%arg0: i32) -> (i32, i32) {
    %c0_i32 = arith.constant 0 : i32
    %c0_i32_0 = arith.constant 0 : i32
    %c0_i32_1 = arith.constant 0 : i32
    return %c0_i32, %c0_i32_0 : i32, i32
  }
  func.func @transform_6(%arg0: i32) -> (i32, i32) {
    %c0_i32 = arith.constant 0 : i32
    %c0_i32_0 = arith.constant 0 : i32
    %c0_i32_1 = arith.constant 0 : i32
    return %c0_i32, %c0_i32_0 : i32, i32
  }
}

</mosaic_0001>

<llo_original>
// kernel: tpu_custom_call.1
$region0: #{tpu_custom_call.1}
  #allocation0 [shape = 'u32[]', space=smem, size = 0x4, offset = 0x4, fixed_abs, tag = 'smem constant byte address 0x4 - core index']
  #allocation1 [shape = 'u32[144,128]{1,0:T(1,128)}', space=vmem, size = 0x12000, scoped, tag = 'internal scratch']
  %s0 = inlined_call_operand.vmem [shape: f32[8,512], index: 0, kind: input, shape index: {}]
  %s1 = inlined_call_operand.vmem [shape: f32[8,512], index: 1, kind: input, shape index: {}]
  %s2 = inlined_call_operand.vmem [shape: f32[9,16,8], index: 2, kind: input, shape index: {}]
  %s3 = inlined_call_operand.vmem [shape: f32[16,1], index: 3, kind: input, shape index: {}]
  %s4 = inlined_call_operand.vmem [shape: f32[9,8,16], index: 4, kind: input, shape index: {}]
  %s5 = inlined_call_operand.vmem [shape: f32[8,1], index: 5, kind: input, shape index: {}]
  %s6 = inlined_call_operand.hbm [shape: f32[8,512], index: 6, kind: output, shape index: {}]
  %s7 = sld [smem:[#allocation0]]
  $region34: #{tpu_custom_call.1} parent=0
    _
  %s9 = ssub.s32 1, %s7
  %s10 = scalar_select 0, %s9, %s7
  $region1: #{tpu_custom_call.1} parent=0
    #allocation2 [shape = 'u8[16384]{0}', space=vmem, size = 0x4000, scoped, tag = 'output window, operand 0, single buffered']
    #allocation3 [shape = 's32[1]{0}', space=sflag, size = 0x4, scoped, tag = 'scoped memory for tpu_custom_call.1']
    %11 = vsyncpa [#allocation3], 0
    // Predicated region
    $region2: #{tpu_custom_call.1} parent=1 // pred_check
      _
    $region3: #{tpu_custom_call.1} parent=1 // pred_check_branch
      %13 = sbr.rel (0) target = $region5
    $region4: #{tpu_custom_call.1} parent=1 // pred_region
      _
    $region5: #{tpu_custom_call.1} parent=1 // pred_fallthru
      _
    // Predicated region
    $region6: #{tpu_custom_call.1} parent=1 // pred_check
      _
    $region7: #{tpu_custom_call.1} parent=1 // pred_check_branch
      %15 = sbr.rel (0) target = $region9
    $region8: #{tpu_custom_call.1} parent=1 // pred_region
      _
    $region9: #{tpu_custom_call.1} parent=1 // pred_fallthru
      _
    // Predicated region
    $region10: #{tpu_custom_call.1} parent=1 // pred_check
      _
    $region11: #{tpu_custom_call.1} parent=1 // pred_check_branch
      %17 = sbr.rel (0) target = $region13
    $region12: #{tpu_custom_call.1} parent=1 // pred_region
      _
    $region13: #{tpu_custom_call.1} parent=1 // pred_fallthru
      _
    // Predicated region
    $region14: #{tpu_custom_call.1} parent=1 // pred_check
      _
    $region15: #{tpu_custom_call.1} parent=1 // pred_check_branch
      %19 = sbr.rel (0) target = $region17
    $region16: #{tpu_custom_call.1} parent=1 // pred_region
      _
    $region17: #{tpu_custom_call.1} parent=1 // pred_fallthru
      _
    // Predicated region
    $region18: #{tpu_custom_call.1} parent=1 // pred_check
      _
    $region19: #{tpu_custom_call.1} parent=1 // pred_check_branch
      %21 = sbr.rel (0) target = $region21
    $region20: #{tpu_custom_call.1} parent=1 // pred_region
      _
    $region21: #{tpu_custom_call.1} parent=1 // pred_fallthru
      _
    // Predicated region
    $region22: #{tpu_custom_call.1} parent=1 // pred_check
      _
    $region23: #{tpu_custom_call.1} parent=1 // pred_check_branch
      %23 = sbr.rel (0) target = $region25
    $region24: #{tpu_custom_call.1} parent=1 // pred_region
      _
    $region25: #{tpu_custom_call.1} parent=1 // pred_fallthru
      _
    %v24 = vld [vmem:[%s0] sm:$0xff]
    %v25 = vld [vmem:[%s0 + $0x8] sm:$0xff]
    %v26 = vld [vmem:[%s0 + $0x10] sm:$0xff]
    %v27 = vld [vmem:[%s0 + $0x18] sm:$0xff]
    %v28 = vld [vmem:[%s1] sm:$0xff]
    %v29 = vld [vmem:[%s1 + $0x8] sm:$0xff]
    %v30 = vld [vmem:[%s1 + $0x10] sm:$0xff]
    %v31 = vld [vmem:[%s1 + $0x18] sm:$0xff]
    %s32 = scalar_lea.vmem %s2, 64
    %v33 = vld [vmem:[%s32] sm:$0xff]
    %v34 = vld [vmem:[%s32 + $0x8] sm:$0xff]
    %35 = vrot.lane.b32.xlu0 %v28, 17
    %v36 = vpop.permute.xlu0 %35
    %37 = vrot.lane.b32.xlu0 %v29, 17
    %v38 = vpop.permute.xlu0 %37
    %39 = vrot.lane.b32.xlu0 %v30, 17
    %v40 = vpop.permute.xlu0 %39
    %41 = vrot.lane.b32.xlu0 %v31, 17
    %v42 = vpop.permute.xlu0 %41
    %v43 = vlaneseq
    %v44 = vand.u32 %v43, 127
    %vm45 = vcmp.lt.s32.totalorder %v44, 17
    %v46 = vsel %vm45, %v40, %v42
    %v47 = vsel %vm45, %v38, %v40
    %v48 = vsel %vm45, %v36, %v38
    %v49 = vsel %vm45, %v42, %v36
    %v50 = vlaneseq
    %v51 = vshrl.u32 %v50, 7
    %v52 = vsub.s32 0, %v51
    %v53 = vrot.slane %v24, %v52
    %v54 = vlaneseq
    %v55 = vshrl.u32 %v54, 7
    %v56 = vsub.s32 0, %v55
    %v57 = vrot.slane %v25, %v56
    %v58 = vlaneseq
    %v59 = vshrl.u32 %v58, 7
    %v60 = vsub.s32 0, %v59
    %v61 = vrot.slane %v26, %v60
    %v62 = vlaneseq
    %v63 = vshrl.u32 %v62, 7
    %v64 = vsub.s32 0, %v63
    %v65 = vrot.slane %v27, %v64
    %v66 = vmul.f32 %v49, %v53
    %v67 = vmul.f32 %v48, %v57
    %v68 = vmul.f32 %v47, %v61
    %v69 = vmul.f32 %v46, %v65
    %v70 = vld [vmem:[%s2] sm:$0xff]
    %v71 = vld [vmem:[%s2 + $0x8] sm:$0xff]
    %vm72 = vcmask 64512
    %v74 = vsel %vm72, %v70, 0
    %v77 = vsel %vm72, %v71, 0
    %79 = vmatprep.subr.mxu0 %v67
    %80 = vmatpush1.msra.mxu0 %v66
    %81 = vmatprep.subr.mxu0 0.0
    %82 = vmatpush1.msra.mxu0 0.0
    %83 = vmatprep.subr.mxu0 0.0
    %84 = vmatpush1.msra.mxu0 0.0
    %85 = vmatprep.subr.mxu0 0.0
    %86 = vmatpush1.msra.mxu0 0.0
    %87 = vmatprep.subr.mxu0 0.0
    %88 = vmatpush1.msra.mxu0 0.0
    %89 = vmatprep.subr.mxu0 0.0
    %90 = vmatpush1.msra.mxu0 0.0
    %91 = vmatprep.subr.mxu0 0.0
    %92 = vmatpush1.msra.mxu0 0.0
    %93 = vmatprep.subr.mxu0 0.0
    %94 = vmatpush1.msra.mxu0 0.0
    %95 = vmatprep.subr.mxu0 0.0
    %96 = vmatpush1.msra.mxu0 0.0
    %97 = vmatprep.subr.mxu0 0.0
    %98 = vmatpush1.msra.mxu0 0.0
    %99 = vmatprep.subr.mxu0 0.0
    %100 = vmatpush1.msra.mxu0 0.0
    %101 = vmatprep.subr.mxu0 0.0
    %102 = vmatpush1.msra.mxu0 0.0
    %103 = vmatprep.subr.mxu0 0.0
    %104 = vmatpush1.msra.mxu0 0.0
    %105 = vmatprep.subr.mxu0 0.0
    %106 = vmatpush1.msra.mxu0 0.0
    %107 = vmatprep.subr.mxu0 0.0
    %108 = vmatpush1.msra.mxu0 0.0
    %109 = vmatprep.subr.mxu0 0.0
    %110 = vmatpush1.msra.mxu0 0.0
    %111 = vmatprep.subr.mxu0 0.0
    %112 = vmatpush1.msra.mxu0 0.0
    %113 = vmatprep.subr.mxu0 0.0
    %114 = vmatpush1.msra.mxu0 0.0
    %115 = vmatprep.subr.mxu0 0.0
    %116 = vmatpush1.msra.mxu0 0.0
    %117 = vmatprep.subr.mxu0 0.0
    %118 = vmatpush1.msra.mxu0 0.0
    %119 = vmatprep.subr.mxu0 0.0
    %120 = vmatpush1.msra.mxu0 0.0
    %121 = vmatprep.subr.mxu0 0.0
    %122 = vmatpush1.msra.mxu0 0.0
    %123 = vmatprep.subr.mxu0 0.0
    %124 = vmatpush1.msra.mxu0 0.0
    %125 = vmatprep.subr.mxu0 0.0
    %126 = vmatpush1.msra.mxu0 0.0
    %127 = vmatprep.subr.mxu0 0.0
    %128 = vmatpush1.msra.mxu0 0.0
    %129 = vmatprep.subr.mxu0 0.0
    %130 = vmatpush1.msra.mxu0 0.0
    %131 = vmatprep.subr.mxu0 0.0
    %132 = vmatpush1.msra.mxu0 0.0
    %133 = vmatprep.subr.mxu0 0.0
    %134 = vmatpush1.msra.mxu0 0.0
    %135 = vmatprep.subr.mxu0 0.0
    %136 = vmatpush1.msra.mxu0 0.0
    %137 = vmatprep.subr.mxu0 0.0
    %138 = vmatpush1.msra.mxu0 0.0
    %139 = vmatprep.subr.mxu0 0.0
    %140 = vmatpush1.msra.mxu0 0.0
    %141 = vmatprep.subr.mxu0 0.0
    %142 = vmatpush1.msra.mxu0 0.0
    %143 = vmatprep.mubr.f32.mxu0 0.0
    %144 = vmatmul.mubr.f32.gmra.mrb[0].mxu0 %v74
    %v145 = vpop.f32.mrb[0].mxu0
    %v146 = vadd.f32 0.0, %v145
    %v147 = vpop.f32.mrb[0].mxu0
    %v148 = vadd.f32 0.0, %v147
    %149 = vmatprep.mubr.f32.mxu0 0.0
    %150 = vmatmul.mubr.f32.gmra.mrb[0].mxu0 %v77
    %v151 = vpop.f32.mrb[0].mxu0
    %v152 = vadd.f32 0.0, %v151
    %v153 = vpop.f32.mrb[0].mxu0
    %v154 = vadd.f32 0.0, %v153
    %155 = vdwg.mxu0
    %156 = vmatprep.subr.mxu0 %v69
    %157 = vmatpush1.msra.mxu0 %v68
    %158 = vmatprep.subr.mxu0 0.0
    %159 = vmatpush1.msra.mxu0 0.0
    %160 = vmatprep.subr.mxu0 0.0
    %161 = vmatpush1.msra.mxu0 0.0
    %162 = vmatprep.subr.mxu0 0.0
    %163 = vmatpush1.msra.mxu0 0.0
    %164 = vmatprep.subr.mxu0 0.0
    %165 = vmatpush1.msra.mxu0 0.0
    %166 = vmatprep.subr.mxu0 0.0
    %167 = vmatpush1.msra.mxu0 0.0
    %168 = vmatprep.subr.mxu0 0.0
    %169 = vmatpush1.msra.mxu0 0.0
    %170 = vmatprep.subr.mxu0 0.0
    %171 = vmatpush1.msra.mxu0 0.0
    %172 = vmatprep.subr.mxu0 0.0
    %173 = vmatpush1.msra.mxu0 0.0
    %174 = vmatprep.subr.mxu0 0.0
    %175 = vmatpush1.msra.mxu0 0.0
    %176 = vmatprep.subr.mxu0 0.0
    %177 = vmatpush1.msra.mxu0 0.0
    %178 = vmatprep.subr.mxu0 0.0
    %179 = vmatpush1.msra.mxu0 0.0
    %180 = vmatprep.subr.mxu0 0.0
    %181 = vmatpush1.msra.mxu0 0.0
    %182 = vmatprep.subr.mxu0 0.0
    %183 = vmatpush1.msra.mxu0 0.0
    %184 = vmatprep.subr.mxu0 0.0
    %185 = vmatpush1.msra.mxu0 0.0
    %186 = vmatprep.subr.mxu0 0.0
    %187 = vmatpush1.msra.mxu0 0.0
    %188 = vmatprep.subr.mxu0 0.0
    %189 = vmatpush1.msra.mxu0 0.0
    %190 = vmatprep.subr.mxu0 0.0
    %191 = vmatpush1.msra.mxu0 0.0
    %192 = vmatprep.subr.mxu0 0.0
    %193 = vmatpush1.msra.mxu0 0.0
    %194 = vmatprep.subr.mxu0 0.0
    %195 = vmatpush1.msra.mxu0 0.0
    %196 = vmatprep.subr.mxu0 0.0
    %197 = vmatpush1.msra.mxu0 0.0
    %198 = vmatprep.subr.mxu0 0.0
    %199 = vmatpush1.msra.mxu0 0.0
    %200 = vmatprep.subr.mxu0 0.0
    %201 = vmatpush1.msra.mxu0 0.0
    %202 = vmatprep.subr.mxu0 0.0
    %203 = vmatpush1.msra.mxu0 0.0
    %204 = vmatprep.subr.mxu0 0.0
    %205 = vmatpush1.msra.mxu0 0.0
    %206 = vmatprep.subr.mxu0 0.0
    %207 = vmatpush1.msra.mxu0 0.0
    %208 = vmatprep.subr.mxu0 0.0
    %209 = vmatpush1.msra.mxu0 0.0
    %210 = vmatprep.subr.mxu0 0.0
    %211 = vmatpush1.msra.mxu0 0.0
    %212 = vmatprep.subr.mxu0 0.0
    %213 = vmatpush1.msra.mxu0 0.0
    %214 = vmatprep.subr.mxu0 0.0
    %215 = vmatpush1.msra.mxu0 0.0
    %216 = vmatprep.subr.mxu0 0.0
    %217 = vmatpush1.msra.mxu0 0.0
    %218 = vmatprep.subr.mxu0 0.0
    %219 = vmatpush1.msra.mxu0 0.0
    %220 = vmatprep.mubr.f32.mxu0 0.0
    %221 = vmatmul.mubr.f32.gmra.mrb[0].mxu0 %v74
    %v222 = vpop.f32.mrb[0].mxu0
    %v223 = vadd.f32 0.0, %v222
    %v224 = vpop.f32.mrb[0].mxu0
    %v225 = vadd.f32 0.0, %v224
    %226 = vmatprep.mubr.f32.mxu0 0.0
    %227 = vmatmul.mubr.f32.gmra.mrb[0].mxu0 %v77
    %v228 = vpop.f32.mrb[0].mxu0
    %v229 = vadd.f32 0.0, %v228
    %v230 = vpop.f32.mrb[0].mxu0
    %v231 = vadd.f32 0.0, %v230
    %232 = vdwg.mxu0
    %v234 = vsel %vm72, %v33, 0
    %v237 = vsel %vm72, %v34, 0
    %239 = vmatprep.subr.mxu0 %v29
    %240 = vmatpush1.msra.mxu0 %v28
    %241 = vmatprep.subr.mxu0 0.0
    %242 = vmatpush1.msra.mxu0 0.0
    %243 = vmatprep.subr.mxu0 0.0
    %244 = vmatpush1.msra.mxu0 0.0
    %245 = vmatprep.subr.mxu0 0.0
    %246 = vmatpush1.msra.mxu0 0.0
    %247 = vmatprep.subr.mxu0 0.0
    %248 = vmatpush1.msra.mxu0 0.0
    %249 = vmatprep.subr.mxu0 0.0
    %250 = vmatpush1.msra.mxu0 0.0
    %251 = vmatprep.subr.mxu0 0.0
    %252 = vmatpush1.msra.mxu0 0.0
    %253 = vmatprep.subr.mxu0 0.0
    %254 = vmatpush1.msra.mxu0 0.0
    %255 = vmatprep.subr.mxu0 0.0
    %256 = vmatpush1.msra.mxu0 0.0
    %257 = vmatprep.subr.mxu0 0.0
    %258 = vmatpush1.msra.mxu0 0.0
    %259 = vmatprep.subr.mxu0 0.0
    %260 = vmatpush1.msra.mxu0 0.0
    %261 = vmatprep.subr.mxu0 0.0
    %262 = vmatpush1.msra.mxu0 0.0
    %263 = vmatprep.subr.mxu0 0.0
    %264 = vmatpush1.msra.mxu0 0.0
    %265 = vmatprep.subr.mxu0 0.0
    %266 = vmatpush1.msra.mxu0 0.0
    %267 = vmatprep.subr.mxu0 0.0
    %268 = vmatpush1.msra.mxu0 0.0
    %269 = vmatprep.subr.mxu0 0.0
    %270 = vmatpush1.msra.mxu0 0.0
    %271 = vmatprep.subr.mxu0 0.0
    %272 = vmatpush1.msra.mxu0 0.0
    %273 = vmatprep.subr.mxu0 0.0
    %274 = vmatpush1.msra.mxu0 0.0
    %275 = vmatprep.subr.mxu0 0.0
    %276 = vmatpush1.msra.mxu0 0.0
    %277 = vmatprep.subr.mxu0 0.0
    %278 = vmatpush1.msra.mxu0 0.0
    %279 = vmatprep.subr.mxu0 0.0
    %280 = vmatpush1.msra.mxu0 0.0
    %281 = vmatprep.subr.mxu0 0.0
    %282 = vmatpush1.msra.mxu0 0.0
    %283 = vmatprep.subr.mxu0 0.0
    %284 = vmatpush1.msra.mxu0 0.0
    %285 = vmatprep.subr.mxu0 0.0
    %286 = vmatpush1.msra.mxu0 0.0
    %287 = vmatprep.subr.mxu0 0.0
    %288 = vmatpush1.msra.mxu0 0.0
    %289 = vmatprep.subr.mxu0 0.0
    %290 = vmatpush1.msra.mxu0 0.0
    %291 = vmatprep.subr.mxu0 0.0
    %292 = vmatpush1.msra.mxu0 0.0
    %293 = vmatprep.subr.mxu0 0.0
    %294 = vmatpush1.msra.mxu0 0.0
    %295 = vmatprep.subr.mxu0 0.0
    %296 = vmatpush1.msra.mxu0 0.0
    %297 = vmatprep.subr.mxu0 0.0
    %298 = vmatpush1.msra.mxu0 0.0
    %299 = vmatprep.subr.mxu0 0.0
    %300 = vmatpush1.msra.mxu0 0.0
    %301 = vmatprep.subr.mxu0 0.0
    %302 = vmatpush1.msra.mxu0 0.0
    %303 = vmatprep.mubr.f32.mxu0 0.0
    %304 = vmatmul.mubr.f32.gmra.mrb[0].mxu0 %v234
    %v305 = vpop.f32.mrb[0].mxu0
    %v306 = vadd.f32 %v146, %v305
    %v307 = vpop.f32.mrb[0].mxu0
    %v308 = vadd.f32 %v148, %v307
    %309 = vmatprep.mubr.f32.mxu0 0.0
    %310 = vmatmul.mubr.f32.gmra.mrb[0].mxu0 %v237
    %v311 = vpop.f32.mrb[0].mxu0
    %v312 = vadd.f32 %v152, %v311
    %v313 = vpop.f32.mrb[0].mxu0
    %v314 = vadd.f32 %v154, %v313
    %315 = vdwg.mxu0
    %316 = vmatprep.subr.mxu0 %v31
    %317 = vmatpush1.msra.mxu0 %v30
    %318 = vmatprep.subr.mxu0 0.0
    %319 = vmatpush1.msra.mxu0 0.0
    %320 = vmatprep.subr.mxu0 0.0
    %321 = vmatpush1.msra.mxu0 0.0
    %322 = vmatprep.subr.mxu0 0.0
    %323 = vmatpush1.msra.mxu0 0.0
    %324 = vmatprep.subr.mxu0 0.0
    %325 = vmatpush1.msra.mxu0 0.0
    %326 = vmatprep.subr.mxu0 0.0
    %327 = vmatpush1.msra.mxu0 0.0
    %328 = vmatprep.subr.mxu0 0.0
    %329 = vmatpush1.msra.mxu0 0.0
    %330 = vmatprep.subr.mxu0 0.0
    %331 = vmatpush1.msra.mxu0 0.0
    %332 = vmatprep.subr.mxu0 0.0
    %333 = vmatpush1.msra.mxu0 0.0
    %334 = vmatprep.subr.mxu0 0.0
    %335 = vmatpush1.msra.mxu0 0.0
    %336 = vmatprep.subr.mxu0 0.0
    %337 = vmatpush1.msra.mxu0 0.0
    %338 = vmatprep.subr.mxu0 0.0
    %339 = vmatpush1.msra.mxu0 0.0
    %340 = vmatprep.subr.mxu0 0.0
    %341 = vmatpush1.msra.mxu0 0.0
    %342 = vmatprep.subr.mxu0 0.0
    %343 = vmatpush1.msra.mxu0 0.0
    %344 = vmatprep.subr.mxu0 0.0
    %345 = vmatpush1.msra.mxu0 0.0
    %346 = vmatprep.subr.mxu0 0.0
    %347 = vmatpush1.msra.mxu0 0.0
    %348 = vmatprep.subr.mxu0 0.0
    %349 = vmatpush1.msra.mxu0 0.0
    %350 = vmatprep.subr.mxu0 0.0
    %351 = vmatpush1.msra.mxu0 0.0
    %352 = vmatprep.subr.mxu0 0.0
    %353 = vmatpush1.msra.mxu0 0.0
    %354 = vmatprep.subr.mxu0 0.0
    %355 = vmatpush1.msra.mxu0 0.0
    %356 = vmatprep.subr.mxu0 0.0
    %357 = vmatpush1.msra.mxu0 0.0
    %358 = vmatprep.subr.mxu0 0.0
    %359 = vmatpush1.msra.mxu0 0.0
    %360 = vmatprep.subr.mxu0 0.0
    %361 = vmatpush1.msra.mxu0 0.0
    %362 = vmatprep.subr.mxu0 0.0
    %363 = vmatpush1.msra.mxu0 0.0
    %364 = vmatprep.subr.mxu0 0.0
    %365 = vmatpush1.msra.mxu0 0.0
    %366 = vmatprep.subr.mxu0 0.0
    %367 = vmatpush1.msra.mxu0 0.0
    %368 = vmatprep.subr.mxu0 0.0
    %369 = vmatpush1.msra.mxu0 0.0
    %370 = vmatprep.subr.mxu0 0.0
    %371 = vmatpush1.msra.mxu0 0.0
    %372 = vmatprep.subr.mxu0 0.0
    %373 = vmatpush1.msra.mxu0 0.0
    %374 = vmatprep.subr.mxu0 0.0
    %375 = vmatpush1.msra.mxu0 0.0
    %376 = vmatprep.subr.mxu0 0.0
    %377 = vmatpush1.msra.mxu0 0.0
    %378 = vmatprep.subr.mxu0 0.0
    %379 = vmatpush1.msra.mxu0 0.0
    %380 = vmatprep.mubr.f32.mxu0 0.0
    %381 = vmatmul.mubr.f32.gmra.mrb[0].mxu0 %v234
    %v382 = vpop.f32.mrb[0].mxu0
    %v383 = vadd.f32 %v223, %v382
    %v384 = vpop.f32.mrb[0].mxu0
    %v385 = vadd.f32 %v225, %v384
    %386 = vmatprep.mubr.f32.mxu0 0.0
    %387 = vmatmul.mubr.f32.gmra.mrb[0].mxu0 %v237
    %v388 = vpop.f32.mrb[0].mxu0
    %v389 = vadd.f32 %v229, %v388
    %v390 = vpop.f32.mrb[0].mxu0
    %v391 = vadd.f32 %v231, %v390
    %392 = vdwg.mxu0
    %393 = vrot.lane.b32.xlu0 %v28, 16
    %v394 = vpop.permute.xlu0 %393
    %395 = vrot.lane.b32.xlu0 %v29, 16
    %v396 = vpop.permute.xlu0 %395
    %397 = vrot.lane.b32.xlu0 %v30, 16
    %v398 = vpop.permute.xlu0 %397
    %399 = vrot.lane.b32.xlu0 %v31, 16
    %v400 = vpop.permute.xlu0 %399
    %vm401 = vcmp.lt.s32.totalorder %v44, 16
    %v402 = vsel %vm401, %v398, %v400
    %v403 = vsel %vm401, %v396, %v398
    %v404 = vsel %vm401, %v394, %v396
    %v405 = vsel %vm401, %v400, %v394
    %v406 = vlaneseq
    %v407 = vshrl.u32 %v406, 7
    %v408 = vsub.s32 1, %v407
    %v409 = vrot.slane %v24, %v408
    %v410 = vlaneseq
    %v411 = vshrl.u32 %v410, 7
    %v412 = vsub.s32 1, %v411
    %v413 = vrot.slane %v25, %v412
    %v414 = vlaneseq
    %v415 = vshrl.u32 %v414, 7
    %v416 = vsub.s32 1, %v415
    %v417 = vrot.slane %v26, %v416
    %v418 = vlaneseq
    %v419 = vshrl.u32 %v418, 7
    %v420 = vsub.s32 1, %v419
    %v421 = vrot.slane %v27, %v420
    %v422 = vmul.f32 %v405, %v409
    %v423 = vmul.f32 %v404, %v413
    %v424 = vmul.f32 %v403, %v417
    %v425 = vmul.f32 %v402, %v421
    %s426 = scalar_lea.vmem %s2, 16
    %v427 = vld [vmem:[%s426] sm:$0xff]
    %v428 = vld [vmem:[%s426 + $0x8] sm:$0xff]
    %v430 = vsel %vm72, %v427, 0
    %v433 = vsel %vm72, %v428, 0
    %435 = vmatprep.subr.mxu0 %v423
    %436 = vmatpush1.msra.mxu0 %v422
    %437 = vmatprep.subr.mxu0 0.0
    %438 = vmatpush1.msra.mxu0 0.0
    %439 = vmatprep.subr.mxu0 0.0
    %440 = vmatpush1.msra.mxu0 0.0
    %441 = vmatprep.subr.mxu0 0.0
    %442 = vmatpush1.msra.mxu0 0.0
    %443 = vmatprep.subr.mxu0 0.0
    %444 = vmatpush1.msra.mxu0 0.0
    %445 = vmatprep.subr.mxu0 0.0
    %446 = vmatpush1.msra.mxu0 0.0
    %447 = vmatprep.subr.mxu0 0.0
    %448 = vmatpush1.msra.mxu0 0.0
    %449 = vmatprep.subr.mxu0 0.0
    %450 = vmatpush1.msra.mxu0 0.0
    %451 = vmatprep.subr.mxu0 0.0
    %452 = vmatpush1.msra.mxu0 0.0
    %453 = vmatprep.subr.mxu0 0.0
    %454 = vmatpush1.msra.mxu0 0.0
    %455 = vmatprep.subr.mxu0 0.0
    %456 = vmatpush1.msra.mxu0 0.0
    %457 = vmatprep.subr.mxu0 0.0
    %458 = vmatpush1.msra.mxu0 0.0
    %459 = vmatprep.subr.mxu0 0.0
    %460 = vmatpush1.msra.mxu0 0.0
    %461 = vmatprep.subr.mxu0 0.0
    %462 = vmatpush1.msra.mxu0 0.0
    %463 = vmatprep.subr.mxu0 0.0
    %464 = vmatpush1.msra.mxu0 0.0
    %465 = vmatprep.subr.mxu0 0.0
    %466 = vmatpush1.msra.mxu0 0.0
    %467 = vmatprep.subr.mxu0 0.0
    %468 = vmatpush1.msra.mxu0 0.0
    %469 = vmatprep.subr.mxu0 0.0
    %470 = vmatpush1.msra.mxu0 0.0
    %471 = vmatprep.subr.mxu0 0.0
    %472 = vmatpush1.msra.mxu0 0.0
    %473 = vmatprep.subr.mxu0 0.0
    %474 = vmatpush1.msra.mxu0 0.0
    %475 = vmatprep.subr.mxu0 0.0
    %476 = vmatpush1.msra.mxu0 0.0
    %477 = vmatprep.subr.mxu0 0.0
    %478 = vmatpush1.msra.mxu0 0.0
    %479 = vmatprep.subr.mxu0 0.0
    %480 = vmatpush1.msra.mxu0 0.0
    %481 = vmatprep.subr.mxu0 0.0
    %482 = vmatpush1.msra.mxu0 0.0
    %483 = vmatprep.subr.mxu0 0.0
    %484 = vmatpush1.msra.mxu0 0.0
    %485 = vmatprep.subr.mxu0 0.0
    %486 = vmatpush1.msra.mxu0 0.0
    %487 = vmatprep.subr.mxu0 0.0
    %488 = vmatpush1.msra.mxu0 0.0
    %489 = vmatprep.subr.mxu0 0.0
    %490 = vmatpush1.msra.mxu0 0.0
    %491 = vmatprep.subr.mxu0 0.0
    %492 = vmatpush1.msra.mxu0 0.0
    %493 = vmatprep.subr.mxu0 0.0
    %494 = vmatpush1.msra.mxu0 0.0
    %495 = vmatprep.subr.mxu0 0.0
    %496 = vmatpush1.msra.mxu0 0.0
    %497 = vmatprep.subr.mxu0 0.0
    %498 = vmatpush1.msra.mxu0 0.0
    %499 = vmatprep.mubr.f32.mxu0 0.0
    %500 = vmatmul.mubr.f32.gmra.mrb[0].mxu0 %v430
    %v501 = vpop.f32.mrb[0].mxu0
    %v502 = vadd.f32 0.0, %v501
    %v503 = vpop.f32.mrb[0].mxu0
    %v504 = vadd.f32 0.0, %v503
    %505 = vmatprep.mubr.f32.mxu0 0.0
    %506 = vmatmul.mubr.f32.gmra.mrb[0].mxu0 %v433
    %v507 = vpop.f32.mrb[0].mxu0
    %v508 = vadd.f32 0.0, %v507
    %v509 = vpop.f32.mrb[0].mxu0
    %v510 = vadd.f32 0.0, %v509
    %511 = vdwg.mxu0
    %512 = vmatprep.subr.mxu0 %v425
    %513 = vmatpush1.msra.mxu0 %v424
    %514 = vmatprep.subr.mxu0 0.0
    %515 = vmatpush1.msra.mxu0 0.0
    %516 = vmatprep.subr.mxu0 0.0
    %517 = vmatpush1.msra.mxu0 0.0
    %518 = vmatprep.subr.mxu0 0.0
    %519 = vmatpush1.msra.mxu0 0.0
    %520 = vmatprep.subr.mxu0 0.0
    %521 = vmatpush1.msra.mxu0 0.0
    %522 = vmatprep.subr.mxu0 0.0
    %523 = vmatpush1.msra.mxu0 0.0
    %524 = vmatprep.subr.mxu0 0.0
    %525 = vmatpush1.msra.mxu0 0.0
    %526 = vmatprep.subr.mxu0 0.0
    %527 = vmatpush1.msra.mxu0 0.0
    %528 = vmatprep.subr.mxu0 0.0
    %529 = vmatpush1.msra.mxu0 0.0
    %530 = vmatprep.subr.mxu0 0.0
    %531 = vmatpush1.msra.mxu0 0.0
    %532 = vmatprep.subr.mxu0 0.0
    %533 = vmatpush1.msra.mxu0 0.0
    %534 = vmatprep.subr.mxu0 0.0
    %535 = vmatpush1.msra.mxu0 0.0
    %536 = vmatprep.subr.mxu0 0.0
    %537 = vmatpush1.msra.mxu0 0.0
    %538 = vmatprep.subr.mxu0 0.0
    %539 = vmatpush1.msra.mxu0 0.0
    %540 = vmatprep.subr.mxu0 0.0
    %541 = vmatpush1.msra.mxu0 0.0
    %542 = vmatprep.subr.mxu0 0.0
    %543 = vmatpush1.msra.mxu0 0.0
    %544 = vmatprep.subr.mxu0 0.0
    %545 = vmatpush1.msra.mxu0 0.0
    %546 = vmatprep.subr.mxu0 0.0
    %547 = vmatpush1.msra.mxu0 0.0
    %548 = vmatprep.subr.mxu0 0.0
    %549 = vmatpush1.msra.mxu0 0.0
    %550 = vmatprep.subr.mxu0 0.0
    %551 = vmatpush1.msra.mxu0 0.0
    %552 = vmatprep.subr.mxu0 0.0
    %553 = vmatpush1.msra.mxu0 0.0
    %554 = vmatprep.subr.mxu0 0.0
    %555 = vmatpush1.msra.mxu0 0.0
    %556 = vmatprep.subr.mxu0 0.0
    %557 = vmatpush1.msra.mxu0 0.0
    %558 = vmatprep.subr.mxu0 0.0
    %559 = vmatpush1.msra.mxu0 0.0
    %560 = vmatprep.subr.mxu0 0.0
    %561 = vmatpush1.msra.mxu0 0.0
    %562 = vmatprep.subr.mxu0 0.0
    %563 = vmatpush1.msra.mxu0 0.0
    %564 = vmatprep.subr.mxu0 0.0
    %565 = vmatpush1.msra.mxu0 0.0
    %566 = vmatprep.subr.mxu0 0.0
    %567 = vmatpush1.msra.mxu0 0.0
    %568 = vmatprep.subr.mxu0 0.0
    %569 = vmatpush1.msra.mxu0 0.0
    %570 = vmatprep.subr.mxu0 0.0
    %571 = vmatpush1.msra.mxu0 0.0
    %572 = vmatprep.subr.mxu0 0.0
    %573 = vmatpush1.msra.mxu0 0.0
    %574 = vmatprep.subr.mxu0 0.0
    %575 = vmatpush1.msra.mxu0 0.0
    %576 = vmatprep.mubr.f32.mxu0 0.0
    %577 = vmatmul.mubr.f32.gmra.mrb[0].mxu0 %v430
    %v578 = vpop.f32.mrb[0].mxu0
    %v579 = vadd.f32 0.0, %v578
    %v580 = vpop.f32.mrb[0].mxu0
    %v581 = vadd.f32 0.0, %v580
    %582 = vmatprep.mubr.f32.mxu0 0.0
    %583 = vmatmul.mubr.f32.gmra.mrb[0].mxu0 %v433
    %v584 = vpop.f32.mrb[0].mxu0
    %v585 = vadd.f32 0.0, %v584
    %v586 = vpop.f32.mrb[0].mxu0
    %v587 = vadd.f32 0.0, %v586
    %588 = vdwg.mxu0
    %v589 = vadd.f32 %v306, %v502
    %v590 = vadd.f32 %v308, %v504
    %v591 = vadd.f32 %v383, %v579
    %v592 = vadd.f32 %v385, %v581
    %v593 = vadd.f32 %v312, %v508
    %v594 = vadd.f32 %v314, %v510
    %v595 = vadd.f32 %v389, %v585
    %v596 = vadd.f32 %v391, %v587
    %597 = vrot.lane.b32.xlu0 %v28, 15
    %v598 = vpop.permute.xlu0 %597
    %599 = vrot.lane.b32.xlu0 %v29, 15
    %v600 = vpop.permute.xlu0 %599
    %601 = vrot.lane.b32.xlu0 %v30, 15
    %v602 = vpop.permute.xlu0 %601
    %603 = vrot.lane.b32.xlu0 %v31, 15
    %v604 = vpop.permute.xlu0 %603
    %vm605 = vcmp.lt.s32.totalorder %v44, 15
    %v606 = vsel %vm605, %v602, %v604
    %v607 = vsel %vm605, %v600, %v602
    %v608 = vsel %vm605, %v598, %v600
    %v609 = vsel %vm605, %v604, %v598
    %v610 = vlaneseq
    %v611 = vshrl.u32 %v610, 7
    %v612 = vsub.s32 2, %v611
    %v613 = vrot.slane %v24, %v612
    %v614 = vlaneseq
    %v615 = vshrl.u32 %v614, 7
    %v616 = vsub.s32 2, %v615
    %v617 = vrot.slane %v25, %v616
    %v618 = vlaneseq
    %v619 = vshrl.u32 %v618, 7
    %v620 = vsub.s32 2, %v619
    %v621 = vrot.slane %v26, %v620
    %v622 = vlaneseq
    %v623 = vshrl.u32 %v622, 7
    %v624 = vsub.s32 2, %v623
    %v625 = vrot.slane %v27, %v624
    %v626 = vmul.f32 %v609, %v613
    %v627 = vmul.f32 %v608, %v617
    %v628 = vmul.f32 %v607, %v621
    %v629 = vmul.f32 %v606, %v625
    %s630 = scalar_lea.vmem %s2, 32
    %v631 = vld [vmem:[%s630] sm:$0xff]
    %v632 = vld [vmem:[%s630 + $0x8] sm:$0xff]
    %v634 = vsel %vm72, %v631, 0
    %v637 = vsel %vm72, %v632, 0
    %639 = vmatprep.subr.mxu0 %v627
    %640 = vmatpush1.msra.mxu0 %v626
    %641 = vmatprep.subr.mxu0 0.0
    %642 = vmatpush1.msra.mxu0 0.0
    %643 = vmatprep.subr.mxu0 0.0
    %644 = vmatpush1.msra.mxu0 0.0
    %645 = vmatprep.subr.mxu0 0.0
    %646 = vmatpush1.msra.mxu0 0.0
    %647 = vmatprep.subr.mxu0 0.0
    %648 = vmatpush1.msra.mxu0 0.0
    %649 = vmatprep.subr.mxu0 0.0
    %650 = vmatpush1.msra.mxu0 0.0
    %651 = vmatprep.subr.mxu0 0.0
    %652 = vmatpush1.msra.mxu0 0.0
    %653 = vmatprep.subr.mxu0 0.0
    %654 = vmatpush1.msra.mxu0 0.0
    %655 = vmatprep.subr.mxu0 0.0
    %656 = vmatpush1.msra.mxu0 0.0
    %657 = vmatprep.subr.mxu0 0.0
    %658 = vmatpush1.msra.mxu0 0.0
    %659 = vmatprep.subr.mxu0 0.0
    %660 = vmatpush1.msra.mxu0 0.0
    %661 = vmatprep.subr.mxu0 0.0
    %662 = vmatpush1.msra.mxu0 0.0
    %663 = vmatprep.subr.mxu0 0.0
    %664 = vmatpush1.msra.mxu0 0.0
    %665 = vmatprep.subr.mxu0 0.0
    %666 = vmatpush1.msra.mxu0 0.0
    %667 = vmatprep.subr.mxu0 0.0
    %668 = vmatpush1.msra.mxu0 0.0
    %669 = vmatprep.subr.mxu0 0.0
    %670 = vmatpush1.msra.mxu0 0.0
    %671 = vmatprep.subr.mxu0 0.0
    %672 = vmatpush1.msra.mxu0 0.0
    %673 = vmatprep.subr.mxu0 0.0
    %674 = vmatpush1.msra.mxu0 0.0
    %675 = vmatprep.subr.mxu0 0.0
    %676 = vmatpush1.msra.mxu0 0.0
    %677 = vmatprep.subr.mxu0 0.0
    %678 = vmatpush1.msra.mxu0 0.0
    %679 = vmatprep.subr.mxu0 0.0
    %680 = vmatpush1.msra.mxu0 0.0
    %681 = vmatprep.subr.mxu0 0.0
    %682 = vmatpush1.msra.mxu0 0.0
    %683 = vmatprep.subr.mxu0 0.0
    %684 = vmatpush1.msra.mxu0 0.0
    %685 = vmatprep.subr.mxu0 0.0
    %686 = vmatpush1.msra.mxu0 0.0
    %687 = vmatprep.subr.mxu0 0.0
    %688 = vmatpush1.msra.mxu0 0.0
    %689 = vmatprep.subr.mxu0 0.0
    %690 = vmatpush1.msra.mxu0 0.0
    %691 = vmatprep.subr.mxu0 0.0
    %692 = vmatpush1.msra.mxu0 0.0
    %693 = vmatprep.subr.mxu0 0.0
    %694 = vmatpush1.msra.mxu0 0.0
    %695 = vmatprep.subr.mxu0 0.0
    %696 = vmatpush1.msra.mxu0 0.0
    %697 = vmatprep.subr.mxu0 0.0
    %698 = vmatpush1.msra.mxu0 0.0
    %699 = vmatprep.subr.mxu0 0.0
    %700 = vmatpush1.msra.mxu0 0.0
    %701 = vmatprep.subr.mxu0 0.0
    %702 = vmatpush1.msra.mxu0 0.0
    %703 = vmatprep.mubr.f32.mxu0 0.0
    %704 = vmatmul.mubr.f32.gmra.mrb[0].mxu0 %v634
    %v705 = vpop.f32.mrb[0].mxu0
    %v706 = vadd.f32 0.0, %v705
    %v707 = vpop.f32.mrb[0].mxu0
    %v708 = vadd.f32 0.0, %v707
    %709 = vmatprep.mubr.f32.mxu0 0.0
    %710 = vmatmul.mubr.f32.gmra.mrb[0].mxu0 %v637
    %v711 = vpop.f32.mrb[0].mxu0
    %v712 = vadd.f32 0.0, %v711
    %v713 = vpop.f32.mrb[0].mxu0
    %v714 = vadd.f32 0.0, %v713
    %715 = vdwg.mxu0
    %716 = vmatprep.subr.mxu0 %v629
    %717 = vmatpush1.msra.mxu0 %v628
    %718 = vmatprep.subr.mxu0 0.0
    %719 = vmatpush1.msra.mxu0 0.0
    %720 = vmatprep.subr.mxu0 0.0
    %721 = vmatpush1.msra.mxu0 0.0
    %722 = vmatprep.subr.mxu0 0.0
    %723 = vmatpush1.msra.mxu0 0.0
    %724 = vmatprep.subr.mxu0 0.0
    %725 = vmatpush1.msra.mxu0 0.0
    %726 = vmatprep.subr.mxu0 0.0
    %727 = vmatpush1.msra.mxu0 0.0
    %728 = vmatprep.subr.mxu0 0.0
    %729 = vmatpush1.msra.mxu0 0.0
    %730 = vmatprep.subr.mxu0 0.0
    %731 = vmatpush1.msra.mxu0 0.0
    %732 = vmatprep.subr.mxu0 0.0
    %733 = vmatpush1.msra.mxu0 0.0
    %734 = vmatprep.subr.mxu0 0.0
    %735 = vmatpush1.msra.mxu0 0.0
    %736 = vmatprep.subr.mxu0 0.0
    %737 = vmatpush1.msra.mxu0 0.0
    %738 = vmatprep.subr.mxu0 0.0
    %739 = vmatpush1.msra.mxu0 0.0
    %740 = vmatprep.subr.mxu0 0.0
    %741 = vmatpush1.msra.mxu0 0.0
    %742 = vmatprep.subr.mxu0 0.0
    %743 = vmatpush1.msra.mxu0 0.0
    %744 = vmatprep.subr.mxu0 0.0
    %745 = vmatpush1.msra.mxu0 0.0
    %746 = vmatprep.subr.mxu0 0.0
    %747 = vmatpush1.msra.mxu0 0.0
    %748 = vmatprep.subr.mxu0 0.0
    %749 = vmatpush1.msra.mxu0 0.0
    %750 = vmatprep.subr.mxu0 0.0
    %751 = vmatpush1.msra.mxu0 0.0
    %752 = vmatprep.subr.mxu0 0.0
    %753 = vmatpush1.msra.mxu0 0.0
    %754 = vmatprep.subr.mxu0 0.0
    %755 = vmatpush1.msra.mxu0 0.0
    %756 = vmatprep.subr.mxu0 0.0
    %757 = vmatpush1.msra.mxu0 0.0
    %758 = vmatprep.subr.mxu0 0.0
    %759 = vmatpush1.msra.mxu0 0.0
    %760 = vmatprep.subr.mxu0 0.0
    %761 = vmatpush1.msra.mxu0 0.0
    %762 = vmatprep.subr.mxu0 0.0
    %763 = vmatpush1.msra.mxu0 0.0
    %764 = vmatprep.subr.mxu0 0.0
    %765 = vmatpush1.msra.mxu0 0.0
    %766 = vmatprep.subr.mxu0 0.0
    %767 = vmatpush1.msra.mxu0 0.0
    %768 = vmatprep.subr.mxu0 0.0
    %769 = vmatpush1.msra.mxu0 0.0
    %770 = vmatprep.subr.mxu0 0.0
    %771 = vmatpush1.msra.mxu0 0.0
    %772 = vmatprep.subr.mxu0 0.0
    %773 = vmatpush1.msra.mxu0 0.0
    %774 = vmatprep.subr.mxu0 0.0
    %775 = vmatpush1.msra.mxu0 0.0
    %776 = vmatprep.subr.mxu0 0.0
    %777 = vmatpush1.msra.mxu0 0.0
    %778 = vmatprep.subr.mxu0 0.0
    %779 = vmatpush1.msra.mxu0 0.0
    %780 = vmatprep.mubr.f32.mxu0 0.0
    %781 = vmatmul.mubr.f32.gmra.mrb[0].mxu0 %v634
    %v782 = vpop.f32.mrb[0].mxu0
    %v783 = vadd.f32 0.0, %v782
    %v784 = vpop.f32.mrb[0].mxu0
    %v785 = vadd.f32 0.0, %v784
    %786 = vmatprep.mubr.f32.mxu0 0.0
    %787 = vmatmul.mubr.f32.gmra.mrb[0].mxu0 %v637
    %v788 = vpop.f32.mrb[0].mxu0
    %v789 = vadd.f32 0.0, %v788
    %v790 = vpop.f32.mrb[0].mxu0
    %v791 = vadd.f32 0.0, %v790
    %792 = vdwg.mxu0
    %v793 = vadd.f32 %v589, %v706
    %v794 = vadd.f32 %v590, %v708
    %v795 = vadd.f32 %v591, %v783
    %v796 = vadd.f32 %v592, %v785
    %v797 = vadd.f32 %v593, %v712
    %v798 = vadd.f32 %v594, %v714
    %v799 = vadd.f32 %v595, %v789
    %v800 = vadd.f32 %v596, %v791
    %801 = vrot.lane.b32.xlu0 %v28, 1
    %v802 = vpop.permute.xlu0 %801
    %803 = vrot.lane.b32.xlu0 %v29, 1
    %v804 = vpop.permute.xlu0 %803
    %805 = vrot.lane.b32.xlu0 %v30, 1
    %v806 = vpop.permute.xlu0 %805
    %807 = vrot.lane.b32.xlu0 %v31, 1
    %v808 = vpop.permute.xlu0 %807
    %vm809 = vcmp.lt.s32.totalorder %v44, 1
    %v810 = vsel %vm809, %v806, %v808
    %v811 = vsel %vm809, %v804, %v806
    %v812 = vsel %vm809, %v802, %v804
    %v813 = vsel %vm809, %v808, %v802
    %v814 = vlaneseq
    %v815 = vshrl.u32 %v814, 7
    %v816 = vsub.s32 3, %v815
    %v817 = vrot.slane %v24, %v816
    %v818 = vlaneseq
    %v819 = vshrl.u32 %v818, 7
    %v820 = vsub.s32 3, %v819
    %v821 = vrot.slane %v25, %v820
    %v822 = vlaneseq
    %v823 = vshrl.u32 %v822, 7
    %v824 = vsub.s32 3, %v823
    %v825 = vrot.slane %v26, %v824
    %v826 = vlaneseq
    %v827 = vshrl.u32 %v826, 7
    %v828 = vsub.s32 3, %v827
    %v829 = vrot.slane %v27, %v828
    %v830 = vmul.f32 %v813, %v817
    %v831 = vmul.f32 %v812, %v821
    %v832 = vmul.f32 %v811, %v825
    %v833 = vmul.f32 %v810, %v829
    %s834 = scalar_lea.vmem %s2, 48
    %v835 = vld [vmem:[%s834] sm:$0xff]
    %v836 = vld [vmem:[%s834 + $0x8] sm:$0xff]
    %v838 = vsel %vm72, %v835, 0
    %v841 = vsel %vm72, %v836, 0
    %843 = vmatprep.subr.mxu0 %v831
    %844 = vmatpush1.msra.mxu0 %v830
    %845 = vmatprep.subr.mxu0 0.0
    %846 = vmatpush1.msra.mxu0 0.0
    %847 = vmatprep.subr.mxu0 0.0
    %848 = vmatpush1.msra.mxu0 0.0
    %849 = vmatprep.subr.mxu0 0.0
    %850 = vmatpush1.msra.mxu0 0.0
    %851 = vmatprep.subr.mxu0 0.0
    %852 = vmatpush1.msra.mxu0 0.0
    %853 = vmatprep.subr.mxu0 0.0
    %854 = vmatpush1.msra.mxu0 0.0
    %855 = vmatprep.subr.mxu0 0.0
    %856 = vmatpush1.msra.mxu0 0.0
    %857 = vmatprep.subr.mxu0 0.0
    %858 = vmatpush1.msra.mxu0 0.0
    %859 = vmatprep.subr.mxu0 0.0
    %860 = vmatpush1.msra.mxu0 0.0
    %861 = vmatprep.subr.mxu0 0.0
    %862 = vmatpush1.msra.mxu0 0.0
    %863 = vmatprep.subr.mxu0 0.0
    %864 = vmatpush1.msra.mxu0 0.0
    %865 = vmatprep.subr.mxu0 0.0
    %866 = vmatpush1.msra.mxu0 0.0
    %867 = vmatprep.subr.mxu0 0.0
    %868 = vmatpush1.msra.mxu0 0.0
    %869 = vmatprep.subr.mxu0 0.0
    %870 = vmatpush1.msra.mxu0 0.0
    %871 = vmatprep.subr.mxu0 0.0
    %872 = vmatpush1.msra.mxu0 0.0
    %873 = vmatprep.subr.mxu0 0.0
    %874 = vmatpush1.msra.mxu0 0.0
    %875 = vmatprep.subr.mxu0 0.0
    %876 = vmatpush1.msra.mxu0 0.0
    %877 = vmatprep.subr.mxu0 0.0
    %878 = vmatpush1.msra.mxu0 0.0
    %879 = vmatprep.subr.mxu0 0.0
    %880 = vmatpush1.msra.mxu0 0.0
    %881 = vmatprep.subr.mxu0 0.0
    %882 = vmatpush1.msra.mxu0 0.0
    %883 = vmatprep.subr.mxu0 0.0
    %884 = vmatpush1.msra.mxu0 0.0
    %885 = vmatprep.subr.mxu0 0.0
    %886 = vmatpush1.msra.mxu0 0.0
    %887 = vmatprep.subr.mxu0 0.0
    %888 = vmatpush1.msra.mxu0 0.0
    %889 = vmatprep.subr.mxu0 0.0
    %890 = vmatpush1.msra.mxu0 0.0
    %891 = vmatprep.subr.mxu0 0.0
    %892 = vmatpush1.msra.mxu0 0.0
    %893 = vmatprep.subr.mxu0 0.0
    %894 = vmatpush1.msra.mxu0 0.0
    %895 = vmatprep.subr.mxu0 0.0
    %896 = vmatpush1.msra.mxu0 0.0
    %897 = vmatprep.subr.mxu0 0.0
    %898 = vmatpush1.msra.mxu0 0.0
    %899 = vmatprep.subr.mxu0 0.0
    %900 = vmatpush1.msra.mxu0 0.0
    %901 = vmatprep.subr.mxu0 0.0
    %902 = vmatpush1.msra.mxu0 0.0
    %903 = vmatprep.subr.mxu0 0.0
    %904 = vmatpush1.msra.mxu0 0.0
    %905 = vmatprep.subr.mxu0 0.0
    %906 = vmatpush1.msra.mxu0 0.0
    %907 = vmatprep.mubr.f32.mxu0 0.0
    %908 = vmatmul.mubr.f32.gmra.mrb[0].mxu0 %v838
    %v909 = vpop.f32.mrb[0].mxu0
    %v910 = vadd.f32 0.0, %v909
    %v911 = vpop.f32.mrb[0].mxu0
    %v912 = vadd.f32 0.0, %v911
    %913 = vmatprep.mubr.f32.mxu0 0.0
    %914 = vmatmul.mubr.f32.gmra.mrb[0].mxu0 %v841
    %v915 = vpop.f32.mrb[0].mxu0
    %v916 = vadd.f32 0.0, %v915
    %v917 = vpop.f32.mrb[0].mxu0
    %v918 = vadd.f32 0.0, %v917
    %919 = vdwg.mxu0
    %920 = vmatprep.subr.mxu0 %v833
    %921 = vmatpush1.msra.mxu0 %v832
    %922 = vmatprep.subr.mxu0 0.0
    %923 = vmatpush1.msra.mxu0 0.0
    %924 = vmatprep.subr.mxu0 0.0
    %925 = vmatpush1.msra.mxu0 0.0
    %926 = vmatprep.subr.mxu0 0.0
    %927 = vmatpush1.msra.mxu0 0.0
    %928 = vmatprep.subr.mxu0 0.0
    %929 = vmatpush1.msra.mxu0 0.0
    %930 = vmatprep.subr.mxu0 0.0
    %931 = vmatpush1.msra.mxu0 0.0
    %932 = vmatprep.subr.mxu0 0.0
    %933 = vmatpush1.msra.mxu0 0.0
    %934 = vmatprep.subr.mxu0 0.0
    %935 = vmatpush1.msra.mxu0 0.0
    %936 = vmatprep.subr.mxu0 0.0
    %937 = vmatpush1.msra.mxu0 0.0
    %938 = vmatprep.subr.mxu0 0.0
    %939 = vmatpush1.msra.mxu0 0.0
    %940 = vmatprep.subr.mxu0 0.0
    %941 = vmatpush1.msra.mxu0 0.0
    %942 = vmatprep.subr.mxu0 0.0
    %943 = vmatpush1.msra.mxu0 0.0
    %944 = vmatprep.subr.mxu0 0.0
    %945 = vmatpush1.msra.mxu0 0.0
    %946 = vmatprep.subr.mxu0 0.0
    %947 = vmatpush1.msra.mxu0 0.0
    %948 = vmatprep.subr.mxu0 0.0
    %949 = vmatpush1.msra.mxu0 0.0
    %950 = vmatprep.subr.mxu0 0.0
    %951 = vmatpush1.msra.mxu0 0.0
    %952 = vmatprep.subr.mxu0 0.0
    %953 = vmatpush1.msra.mxu0 0.0
    %954 = vmatprep.subr.mxu0 0.0
    %955 = vmatpush1.msra.mxu0 0.0
    %956 = vmatprep.subr.mxu0 0.0
    %957 = vmatpush1.msra.mxu0 0.0
    %958 = vmatprep.subr.mxu0 0.0
    %959 = vmatpush1.msra.mxu0 0.0
    %960 = vmatprep.subr.mxu0 0.0
    %961 = vmatpush1.msra.mxu0 0.0
    %962 = vmatprep.subr.mxu0 0.0
    %963 = vmatpush1.msra.mxu0 0.0
    %964 = vmatprep.subr.mxu0 0.0
    %965 = vmatpush1.msra.mxu0 0.0
    %966 = vmatprep.subr.mxu0 0.0
    %967 = vmatpush1.msra.mxu0 0.0
    %968 = vmatprep.subr.mxu0 0.0
    %969 = vmatpush1.msra.mxu0 0.0
    %970 = vmatprep.subr.mxu0 0.0
    %971 = vmatpush1.msra.mxu0 0.0
    %972 = vmatprep.subr.mxu0 0.0
    %973 = vmatpush1.msra.mxu0 0.0
    %974 = vmatprep.subr.mxu0 0.0
    %975 = vmatpush1.msra.mxu0 0.0
    %976 = vmatprep.subr.mxu0 0.0
    %977 = vmatpush1.msra.mxu0 0.0
    %978 = vmatprep.subr.mxu0 0.0
    %979 = vmatpush1.msra.mxu0 0.0
    %980 = vmatprep.subr.mxu0 0.0
    %981 = vmatpush1.msra.mxu0 0.0
    %982 = vmatprep.subr.mxu0 0.0
    %983 = vmatpush1.msra.mxu0 0.0
    %984 = vmatprep.mubr.f32.mxu0 0.0
    %985 = vmatmul.mubr.f32.gmra.mrb[0].mxu0 %v838
    %v986 = vpop.f32.mrb[0].mxu0
    %v987 = vadd.f32 0.0, %v986
    %v988 = vpop.f32.mrb[0].mxu0
    %v989 = vadd.f32 0.0, %v988
    %990 = vmatprep.mubr.f32.mxu0 0.0
    %991 = vmatmul.mubr.f32.gmra.mrb[0].mxu0 %v841
    %v992 = vpop.f32.mrb[0].mxu0
    %v993 = vadd.f32 0.0, %v992
    %v994 = vpop.f32.mrb[0].mxu0
    %v995 = vadd.f32 0.0, %v994
    %996 = vdwg.mxu0
    %v997 = vadd.f32 %v793, %v910
    %v998 = vadd.f32 %v794, %v912
    %v999 = vadd.f32 %v795, %v987
    %v1000 = vadd.f32 %v796, %v989
    %v1001 = vadd.f32 %v797, %v916
    %v1002 = vadd.f32 %v798, %v918
    %v1003 = vadd.f32 %v799, %v993
    %v1004 = vadd.f32 %v800, %v995
    %1005 = vrot.lane.b32.xlu0 %v28, 127
    %v1006 = vpop.permute.xlu0 %1005
    %1007 = vrot.lane.b32.xlu0 %v29, 127
    %v1008 = vpop.permute.xlu0 %1007
    %1009 = vrot.lane.b32.xlu0 %v30, 127
    %v1010 = vpop.permute.xlu0 %1009
    %1011 = vrot.lane.b32.xlu0 %v31, 127
    %v1012 = vpop.permute.xlu0 %1011
    %vm1013 = vcmp.lt.s32.totalorder %v44, 127
    %v1014 = vsel %vm1013, %v1010, %v1012
    %v1015 = vsel %vm1013, %v1008, %v1010
    %v1016 = vsel %vm1013, %v1006, %v1008
    %v1017 = vsel %vm1013, %v1012, %v1006
    %v1018 = vlaneseq
    %v1019 = vshrl.u32 %v1018, 7
    %v1020 = vsub.s32 4, %v1019
    %v1021 = vrot.slane %v24, %v1020
    %v1022 = vlaneseq
    %v1023 = vshrl.u32 %v1022, 7
    %v1024 = vsub.s32 4, %v1023
    %v1025 = vrot.slane %v25, %v1024
    %v1026 = vlaneseq
    %v1027 = vshrl.u32 %v1026, 7
    %v1028 = vsub.s32 4, %v1027
    %v1029 = vrot.slane %v26, %v1028
    %v1030 = vlaneseq
    %v1031 = vshrl.u32 %v1030, 7
    %v1032 = vsub.s32 4, %v1031
    %v1033 = vrot.slane %v27, %v1032
    %v1034 = vmul.f32 %v1016, %v1021
    %v1035 = vmul.f32 %v1015, %v1025
    %v1036 = vmul.f32 %v1014, %v1029
    %v1037 = vmul.f32 %v1017, %v1033
    %s1038 = scalar_lea.vmem %s2, 80
    %v1039 = vld [vmem:[%s1038] sm:$0xff]
    %v1040 = vld [vmem:[%s1038 + $0x8] sm:$0xff]
    %v1042 = vsel %vm72, %v1039, 0
    %v1045 = vsel %vm72, %v1040, 0
    %1047 = vmatprep.subr.mxu0 %v1035
    %1048 = vmatpush1.msra.mxu0 %v1034
    %1049 = vmatprep.subr.mxu0 0.0
    %1050 = vmatpush1.msra.mxu0 0.0
    %1051 = vmatprep.subr.mxu0 0.0
    %1052 = vmatpush1.msra.mxu0 0.0
    %1053 = vmatprep.subr.mxu0 0.0
    %1054 = vmatpush1.msra.mxu0 0.0
    %1055 = vmatprep.subr.mxu0 0.0
    %1056 = vmatpush1.msra.mxu0 0.0
    %1057 = vmatprep.subr.mxu0 0.0
    %1058 = vmatpush1.msra.mxu0 0.0
    %1059 = vmatprep.subr.mxu0 0.0
    %1060 = vmatpush1.msra.mxu0 0.0
    %1061 = vmatprep.subr.mxu0 0.0
    %1062 = vmatpush1.msra.mxu0 0.0
    %1063 = vmatprep.subr.mxu0 0.0
    %1064 = vmatpush1.msra.mxu0 0.0
    %1065 = vmatprep.subr.mxu0 0.0
    %1066 = vmatpush1.msra.mxu0 0.0
    %1067 = vmatprep.subr.mxu0 0.0
    %1068 = vmatpush1.msra.mxu0 0.0
    %1069 = vmatprep.subr.mxu0 0.0
    %1070 = vmatpush1.msra.mxu0 0.0
    %1071 = vmatprep.subr.mxu0 0.0
    %1072 = vmatpush1.msra.mxu0 0.0
    %1073 = vmatprep.subr.mxu0 0.0
    %1074 = vmatpush1.msra.mxu0 0.0
    %1075 = vmatprep.subr.mxu0 0.0
    %1076 = vmatpush1.msra.mxu0 0.0
    %1077 = vmatprep.subr.mxu0 0.0
    %1078 = vmatpush1.msra.mxu0 0.0
    %1079 = vmatprep.subr.mxu0 0.0
    %1080 = vmatpush1.msra.mxu0 0.0
    %1081 = vmatprep.subr.mxu0 0.0
    %1082 = vmatpush1.msra.mxu0 0.0
    %1083 = vmatprep.subr.mxu0 0.0
    %1084 = vmatpush1.msra.mxu0 0.0
    %1085 = vmatprep.subr.mxu0 0.0
    %1086 = vmatpush1.msra.mxu0 0.0
    %1087 = vmatprep.subr.mxu0 0.0
    %1088 = vmatpush1.msra.mxu0 0.0
    %1089 = vmatprep.subr.mxu0 0.0
    %1090 = vmatpush1.msra.mxu0 0.0
    %1091 = vmatprep.subr.mxu0 0.0
    %1092 = vmatpush1.msra.mxu0 0.0
    %1093 = vmatprep.subr.mxu0 0.0
    %1094 = vmatpush1.msra.mxu0 0.0
    %1095 = vmatprep.subr.mxu0 0.0
    %1096 = vmatpush1.msra.mxu0 0.0
    %1097 = vmatprep.subr.mxu0 0.0
    %1098 = vmatpush1.msra.mxu0 0.0
    %1099 = vmatprep.subr.mxu0 0.0
    %1100 = vmatpush1.msra.mxu0 0.0
    %1101 = vmatprep.subr.mxu0 0.0
    %1102 = vmatpush1.msra.mxu0 0.0
    %1103 = vmatprep.subr.mxu0 0.0
    %1104 = vmatpush1.msra.mxu0 0.0
    %1105 = vmatprep.subr.mxu0 0.0
    %1106 = vmatpush1.msra.mxu0 0.0
    %1107 = vmatprep.subr.mxu0 0.0
    %1108 = vmatpush1.msra.mxu0 0.0
    %1109 = vmatprep.subr.mxu0 0.0
    %1110 = vmatpush1.msra.mxu0 0.0
    %1111 = vmatprep.mubr.f32.mxu0 0.0
    %1112 = vmatmul.mubr.f32.gmra.mrb[0].mxu0 %v1042
    %v1113 = vpop.f32.mrb[0].mxu0
    %v1114 = vadd.f32 0.0, %v1113
    %v1115 = vpop.f32.mrb[0].mxu0
    %v1116 = vadd.f32 0.0, %v1115
    %1117 = vmatprep.mubr.f32.mxu0 0.0
    %1118 = vmatmul.mubr.f32.gmra.mrb[0].mxu0 %v1045
    %v1119 = vpop.f32.mrb[0].mxu0
    %v1120 = vadd.f32 0.0, %v1119
    %v1121 = vpop.f32.mrb[0].mxu0
    %v1122 = vadd.f32 0.0, %v1121
    %1123 = vdwg.mxu0
    %1124 = vmatprep.subr.mxu0 %v1037
    %1125 = vmatpush1.msra.mxu0 %v1036
    %1126 = vmatprep.subr.mxu0 0.0
    %1127 = vmatpush1.msra.mxu0 0.0
    %1128 = vmatprep.subr.mxu0 0.0
    %1129 = vmatpush1.msra.mxu0 0.0
    %1130 = vmatprep.subr.mxu0 0.0
    %1131 = vmatpush1.msra.mxu0 0.0
    %1132 = vmatprep.subr.mxu0 0.0
    %1133 = vmatpush1.msra.mxu0 0.0
    %1134 = vmatprep.subr.mxu0 0.0
    %1135 = vmatpush1.msra.mxu0 0.0
    %1136 = vmatprep.subr.mxu0 0.0
    %1137 = vmatpush1.msra.mxu0 0.0
    %1138 = vmatprep.subr.mxu0 0.0
    %1139 = vmatpush1.msra.mxu0 0.0
    %1140 = vmatprep.subr.mxu0 0.0
    %1141 = vmatpush1.msra.mxu0 0.0
    %1142 = vmatprep.subr.mxu0 0.0
    %1143 = vmatpush1.msra.mxu0 0.0
    %1144 = vmatprep.subr.mxu0 0.0
    %1145 = vmatpush1.msra.mxu0 0.0
    %1146 = vmatprep.subr.mxu0 0.0
    %1147 = vmatpush1.msra.mxu0 0.0
    %1148 = vmatprep.subr.mxu0 0.0
    %1149 = vmatpush1.msra.mxu0 0.0
    %1150 = vmatprep.subr.mxu0 0.0
    %1151 = vmatpush1.msra.mxu0 0.0
    %1152 = vmatprep.subr.mxu0 0.0
    %1153 = vmatpush1.msra.mxu0 0.0
    %1154 = vmatprep.subr.mxu0 0.0
    %1155 = vmatpush1.msra.mxu0 0.0
    %1156 = vmatprep.subr.mxu0 0.0
    %1157 = vmatpush1.msra.mxu0 0.0
    %1158 = vmatprep.subr.mxu0 0.0
    %1159 = vmatpush1.msra.mxu0 0.0
    %1160 = vmatprep.subr.mxu0 0.0
    %1161 = vmatpush1.msra.mxu0 0.0
    %1162 = vmatprep.subr.mxu0 0.0
    %1163 = vmatpush1.msra.mxu0 0.0
    %1164 = vmatprep.subr.mxu0 0.0
    %1165 = vmatpush1.msra.mxu0 0.0
    %1166 = vmatprep.subr.mxu0 0.0
    %1167 = vmatpush1.msra.mxu0 0.0
    %1168 = vmatprep.subr.mxu0 0.0
    %1169 = vmatpush1.msra.mxu0 0.0
    %1170 = vmatprep.subr.mxu0 0.0
    %1171 = vmatpush1.msra.mxu0 0.0
    %1172 = vmatprep.subr.mxu0 0.0
    %1173 = vmatpush1.msra.mxu0 0.0
    %1174 = vmatprep.subr.mxu0 0.0
    %1175 = vmatpush1.msra.mxu0 0.0
    %1176 = vmatprep.subr.mxu0 0.0
    %1177 = vmatpush1.msra.mxu0 0.0
    %1178 = vmatprep.subr.mxu0 0.0
    %1179 = vmatpush1.msra.mxu0 0.0
    %1180 = vmatprep.subr.mxu0 0.0
    %1181 = vmatpush1.msra.mxu0 0.0
    %1182 = vmatprep.subr.mxu0 0.0
    %1183 = vmatpush1.msra.mxu0 0.0
    %1184 = vmatprep.subr.mxu0 0.0
    %1185 = vmatpush1.msra.mxu0 0.0
    %1186 = vmatprep.subr.mxu0 0.0
    %1187 = vmatpush1.msra.mxu0 0.0
    %1188 = vmatprep.mubr.f32.mxu0 0.0
    %1189 = vmatmul.mubr.f32.gmra.mrb[0].mxu0 %v1042
    %v1190 = vpop.f32.mrb[0].mxu0
    %v1191 = vadd.f32 0.0, %v1190
    %v1192 = vpop.f32.mrb[0].mxu0
    %v1193 = vadd.f32 0.0, %v1192
    %1194 = vmatprep.mubr.f32.mxu0 0.0
    %1195 = vmatmul.mubr.f32.gmra.mrb[0].mxu0 %v1045
    %v1196 = vpop.f32.mrb[0].mxu0
    %v1197 = vadd.f32 0.0, %v1196
    %v1198 = vpop.f32.mrb[0].mxu0
    %v1199 = vadd.f32 0.0, %v1198
    %1200 = vdwg.mxu0
    %v1201 = vadd.f32 %v997, %v1114
    %v1202 = vadd.f32 %v998, %v1116
    %v1203 = vadd.f32 %v999, %v1191
    %v1204 = vadd.f32 %v1000, %v1193
    %v1205 = vadd.f32 %v1001, %v1120
    %v1206 = vadd.f32 %v1002, %v1122
    %v1207 = vadd.f32 %v1003, %v1197
    %v1208 = vadd.f32 %v1004, %v1199
    %1209 = vrot.lane.b32.xlu0 %v28, 113
    %v1210 = vpop.permute.xlu0 %1209
    %1211 = vrot.lane.b32.xlu0 %v29, 113
    %v1212 = vpop.permute.xlu0 %1211
    %1213 = vrot.lane.b32.xlu0 %v30, 113
    %v1214 = vpop.permute.xlu0 %1213
    %1215 = vrot.lane.b32.xlu0 %v31, 113
    %v1216 = vpop.permute.xlu0 %1215
    %vm1217 = vcmp.lt.s32.totalorder %v44, 113
    %v1218 = vsel %vm1217, %v1214, %v1216
    %v1219 = vsel %vm1217, %v1212, %v1214
    %v1220 = vsel %vm1217, %v1210, %v1212
    %v1221 = vsel %vm1217, %v1216, %v1210
    %v1222 = vlaneseq
    %v1223 = vshrl.u32 %v1222, 7
    %v1224 = vsub.s32 5, %v1223
    %v1225 = vrot.slane %v24, %v1224
    %v1226 = vlaneseq
    %v1227 = vshrl.u32 %v1226, 7
    %v1228 = vsub.s32 5, %v1227
    %v1229 = vrot.slane %v25, %v1228
    %v1230 = vlaneseq
    %v1231 = vshrl.u32 %v1230, 7
    %v1232 = vsub.s32 5, %v1231
    %v1233 = vrot.slane %v26, %v1232
    %v1234 = vlaneseq
    %v1235 = vshrl.u32 %v1234, 7
    %v1236 = vsub.s32 5, %v1235
    %v1237 = vrot.slane %v27, %v1236
    %v1238 = vmul.f32 %v1220, %v1225
    %v1239 = vmul.f32 %v1219, %v1229
    %v1240 = vmul.f32 %v1218, %v1233
    %v1241 = vmul.f32 %v1221, %v1237
    %s1242 = scalar_lea.vmem %s2, 96
    %v1243 = vld [vmem:[%s1242] sm:$0xff]
    %v1244 = vld [vmem:[%s1242 + $0x8] sm:$0xff]
    %v1246 = vsel %vm72, %v1243, 0
    %v1249 = vsel %vm72, %v1244, 0
    %1251 = vmatprep.subr.mxu0 %v1239
    %1252 = vmatpush1.msra.mxu0 %v1238
    %1253 = vmatprep.subr.mxu0 0.0
    %1254 = vmatpush1.msra.mxu0 0.0
    %1255 = vmatprep.subr.mxu0 0.0
    %1256 = vmatpush1.msra.mxu0 0.0
    %1257 = vmatprep.subr.mxu0 0.0
    %1258 = vmatpush1.msra.mxu0 0.0
    %1259 = vmatprep.subr.mxu0 0.0
    %1260 = vmatpush1.msra.mxu0 0.0
    %1261 = vmatprep.subr.mxu0 0.0
    %1262 = vmatpush1.msra.mxu0 0.0
    %1263 = vmatprep.subr.mxu0 0.0
    %1264 = vmatpush1.msra.mxu0 0.0
    %1265 = vmatprep.subr.mxu0 0.0
    %1266 = vmatpush1.msra.mxu0 0.0
    %1267 = vmatprep.subr.mxu0 0.0
    %1268 = vmatpush1.msra.mxu0 0.0
    %1269 = vmatprep.subr.mxu0 0.0
    %1270 = vmatpush1.msra.mxu0 0.0
    %1271 = vmatprep.subr.mxu0 0.0
    %1272 = vmatpush1.msra.mxu0 0.0
    %1273 = vmatprep.subr.mxu0 0.0
    %1274 = vmatpush1.msra.mxu0 0.0
    %1275 = vmatprep.subr.mxu0 0.0
    %1276 = vmatpush1.msra.mxu0 0.0
    %1277 = vmatprep.subr.mxu0 0.0
    %1278 = vmatpush1.msra.mxu0 0.0
    %1279 = vmatprep.subr.mxu0 0.0
    %1280 = vmatpush1.msra.mxu0 0.0
    %1281 = vmatprep.subr.mxu0 0.0
    %1282 = vmatpush1.msra.mxu0 0.0
    %1283 = vmatprep.subr.mxu0 0.0
    %1284 = vmatpush1.msra.mxu0 0.0
    %1285 = vmatprep.subr.mxu0 0.0
    %1286 = vmatpush1.msra.mxu0 0.0
    %1287 = vmatprep.subr.mxu0 0.0
    %1288 = vmatpush1.msra.mxu0 0.0
    %1289 = vmatprep.subr.mxu0 0.0
    %1290 = vmatpush1.msra.mxu0 0.0
    %1291 = vmatprep.subr.mxu0 0.0
    %1292 = vmatpush1.msra.mxu0 0.0
    %1293 = vmatprep.subr.mxu0 0.0
    %1294 = vmatpush1.msra.mxu0 0.0
    %1295 = vmatprep.subr.mxu0 0.0
    %1296 = vmatpush1.msra.mxu0 0.0
    %1297 = vmatprep.subr.mxu0 0.0
    %1298 = vmatpush1.msra.mxu0 0.0
    %1299 = vmatprep.subr.mxu0 0.0
    %1300 = vmatpush1.msra.mxu0 0.0
    %1301 = vmatprep.subr.mxu0 0.0
    %1302 = vmatpush1.msra.mxu0 0.0
    %1303 = vmatprep.subr.mxu0 0.0
    %1304 = vmatpush1.msra.mxu0 0.0
    %1305 = vmatprep.subr.mxu0 0.0
    %1306 = vmatpush1.msra.mxu0 0.0
    %1307 = vmatprep.subr.mxu0 0.0
    %1308 = vmatpush1.msra.mxu0 0.0
    %1309 = vmatprep.subr.mxu0 0.0
    %1310 = vmatpush1.msra.mxu0 0.0
    %1311 = vmatprep.subr.mxu0 0.0
    %1312 = vmatpush1.msra.mxu0 0.0
    %1313 = vmatprep.subr.mxu0 0.0
    %1314 = vmatpush1.msra.mxu0 0.0
    %1315 = vmatprep.mubr.f32.mxu0 0.0
    %1316 = vmatmul.mubr.f32.gmra.mrb[0].mxu0 %v1246
    %v1317 = vpop.f32.mrb[0].mxu0
    %v1318 = vadd.f32 0.0, %v1317
    %v1319 = vpop.f32.mrb[0].mxu0
    %v1320 = vadd.f32 0.0, %v1319
    %1321 = vmatprep.mubr.f32.mxu0 0.0
    %1322 = vmatmul.mubr.f32.gmra.mrb[0].mxu0 %v1249
    %v1323 = vpop.f32.mrb[0].mxu0
    %v1324 = vadd.f32 0.0, %v1323
    %v1325 = vpop.f32.mrb[0].mxu0
    %v1326 = vadd.f32 0.0, %v1325
    %1327 = vdwg.mxu0
    %1328 = vmatprep.subr.mxu0 %v1241
    %1329 = vmatpush1.msra.mxu0 %v1240
    %1330 = vmatprep.subr.mxu0 0.0
    %1331 = vmatpush1.msra.mxu0 0.0
    %1332 = vmatprep.subr.mxu0 0.0
    %1333 = vmatpush1.msra.mxu0 0.0
    %1334 = vmatprep.subr.mxu0 0.0
    %1335 = vmatpush1.msra.mxu0 0.0
    %1336 = vmatprep.subr.mxu0 0.0
    %1337 = vmatpush1.msra.mxu0 0.0
    %1338 = vmatprep.subr.mxu0 0.0
    %1339 = vmatpush1.msra.mxu0 0.0
    %1340 = vmatprep.subr.mxu0 0.0
    %1341 = vmatpush1.msra.mxu0 0.0
    %1342 = vmatprep.subr.mxu0 0.0
    %1343 = vmatpush1.msra.mxu0 0.0
    %1344 = vmatprep.subr.mxu0 0.0
    %1345 = vmatpush1.msra.mxu0 0.0
    %1346 = vmatprep.subr.mxu0 0.0
    %1347 = vmatpush1.msra.mxu0 0.0
    %1348 = vmatprep.subr.mxu0 0.0
    %1349 = vmatpush1.msra.mxu0 0.0
    %1350 = vmatprep.subr.mxu0 0.0
    %1351 = vmatpush1.msra.mxu0 0.0
    %1352 = vmatprep.subr.mxu0 0.0
    %1353 = vmatpush1.msra.mxu0 0.0
    %1354 = vmatprep.subr.mxu0 0.0
    %1355 = vmatpush1.msra.mxu0 0.0
    %1356 = vmatprep.subr.mxu0 0.0
    %1357 = vmatpush1.msra.mxu0 0.0
    %1358 = vmatprep.subr.mxu0 0.0
    %1359 = vmatpush1.msra.mxu0 0.0
    %1360 = vmatprep.subr.mxu0 0.0
    %1361 = vmatpush1.msra.mxu0 0.0
    %1362 = vmatprep.subr.mxu0 0.0
    %1363 = vmatpush1.msra.mxu0 0.0
    %1364 = vmatprep.subr.mxu0 0.0
    %1365 = vmatpush1.msra.mxu0 0.0
    %1366 = vmatprep.subr.mxu0 0.0
    %1367 = vmatpush1.msra.mxu0 0.0
    %1368 = vmatprep.subr.mxu0 0.0
    %1369 = vmatpush1.msra.mxu0 0.0
    %1370 = vmatprep.subr.mxu0 0.0
    %1371 = vmatpush1.msra.mxu0 0.0
    %1372 = vmatprep.subr.mxu0 0.0
    %1373 = vmatpush1.msra.mxu0 0.0
    %1374 = vmatprep.subr.mxu0 0.0
    %1375 = vmatpush1.msra.mxu0 0.0
    %1376 = vmatprep.subr.mxu0 0.0
    %1377 = vmatpush1.msra.mxu0 0.0
    %1378 = vmatprep.subr.mxu0 0.0
    %1379 = vmatpush1.msra.mxu0 0.0
    %1380 = vmatprep.subr.mxu0 0.0
    %1381 = vmatpush1.msra.mxu0 0.0
    %1382 = vmatprep.subr.mxu0 0.0
    %1383 = vmatpush1.msra.mxu0 0.0
    %1384 = vmatprep.subr.mxu0 0.0
    %1385 = vmatpush1.msra.mxu0 0.0
    %1386 = vmatprep.subr.mxu0 0.0
    %1387 = vmatpush1.msra.mxu0 0.0
    %1388 = vmatprep.subr.mxu0 0.0
    %1389 = vmatpush1.msra.mxu0 0.0
    %1390 = vmatprep.subr.mxu0 0.0
    %1391 = vmatpush1.msra.mxu0 0.0
    %1392 = vmatprep.mubr.f32.mxu0 0.0
    %1393 = vmatmul.mubr.f32.gmra.mrb[0].mxu0 %v1246
    %v1394 = vpop.f32.mrb[0].mxu0
    %v1395 = vadd.f32 0.0, %v1394
    %v1396 = vpop.f32.mrb[0].mxu0
    %v1397 = vadd.f32 0.0, %v1396
    %1398 = vmatprep.mubr.f32.mxu0 0.0
    %1399 = vmatmul.mubr.f32.gmra.mrb[0].mxu0 %v1249
    %v1400 = vpop.f32.mrb[0].mxu0
    %v1401 = vadd.f32 0.0, %v1400
    %v1402 = vpop.f32.mrb[0].mxu0
    %v1403 = vadd.f32 0.0, %v1402
    %1404 = vdwg.mxu0
    %v1405 = vadd.f32 %v1201, %v1318
    %v1406 = vadd.f32 %v1202, %v1320
    %v1407 = vadd.f32 %v1203, %v1395
    %v1408 = vadd.f32 %v1204, %v1397
    %v1409 = vadd.f32 %v1205, %v1324
    %v1410 = vadd.f32 %v1206, %v1326
    %v1411 = vadd.f32 %v1207, %v1401
    %v1412 = vadd.f32 %v1208, %v1403
    %1413 = vrot.lane.b32.xlu0 %v28, 112
    %v1414 = vpop.permute.xlu0 %1413
    %1415 = vrot.lane.b32.xlu0 %v29, 112
    %v1416 = vpop.permute.xlu0 %1415
    %1417 = vrot.lane.b32.xlu0 %v30, 112
    %v1418 = vpop.permute.xlu0 %1417
    %1419 = vrot.lane.b32.xlu0 %v31, 112
    %v1420 = vpop.permute.xlu0 %1419
    %vm1421 = vcmp.lt.s32.totalorder %v44, 112
    %v1422 = vsel %vm1421, %v1418, %v1420
    %v1423 = vsel %vm1421, %v1416, %v1418
    %v1424 = vsel %vm1421, %v1414, %v1416
    %v1425 = vsel %vm1421, %v1420, %v1414
    %v1426 = vlaneseq
    %v1427 = vshrl.u32 %v1426, 7
    %v1428 = vsub.s32 6, %v1427
    %v1429 = vrot.slane %v24, %v1428
    %v1430 = vlaneseq
    %v1431 = vshrl.u32 %v1430, 7
    %v1432 = vsub.s32 6, %v1431
    %v1433 = vrot.slane %v25, %v1432
    %v1434 = vlaneseq
    %v1435 = vshrl.u32 %v1434, 7
    %v1436 = vsub.s32 6, %v1435
    %v1437 = vrot.slane %v26, %v1436
    %v1438 = vlaneseq
    %v1439 = vshrl.u32 %v1438, 7
    %v1440 = vsub.s32 6, %v1439
    %v1441 = vrot.slane %v27, %v1440
    %v1442 = vmul.f32 %v1424, %v1429
    %v1443 = vmul.f32 %v1423, %v1433
    %v1444 = vmul.f32 %v1422, %v1437
    %v1445 = vmul.f32 %v1425, %v1441
    %s1446 = scalar_lea.vmem %s2, 112
    %v1447 = vld [vmem:[%s1446] sm:$0xff]
    %v1448 = vld [vmem:[%s1446 + $0x8] sm:$0xff]
    %v1450 = vsel %vm72, %v1447, 0
    %v1453 = vsel %vm72, %v1448, 0
    %1455 = vmatprep.subr.mxu0 %v1443
    %1456 = vmatpush1.msra.mxu0 %v1442
    %1457 = vmatprep.subr.mxu0 0.0
    %1458 = vmatpush1.msra.mxu0 0.0
    %1459 = vmatprep.subr.mxu0 0.0
    %1460 = vmatpush1.msra.mxu0 0.0
    %1461 = vmatprep.subr.mxu0 0.0
    %1462 = vmatpush1.msra.mxu0 0.0
    %1463 = vmatprep.subr.mxu0 0.0
    %1464 = vmatpush1.msra.mxu0 0.0
    %1465 = vmatprep.subr.mxu0 0.0
    %1466 = vmatpush1.msra.mxu0 0.0
    %1467 = vmatprep.subr.mxu0 0.0
    %1468 = vmatpush1.msra.mxu0 0.0
    %1469 = vmatprep.subr.mxu0 0.0
    %1470 = vmatpush1.msra.mxu0 0.0
    %1471 = vmatprep.subr.mxu0 0.0
    %1472 = vmatpush1.msra.mxu0 0.0
    %1473 = vmatprep.subr.mxu0 0.0
    %1474 = vmatpush1.msra.mxu0 0.0
    %1475 = vmatprep.subr.mxu0 0.0
    %1476 = vmatpush1.msra.mxu0 0.0
    %1477 = vmatprep.subr.mxu0 0.0
    %1478 = vmatpush1.msra.mxu0 0.0
    %1479 = vmatprep.subr.mxu0 0.0
    %1480 = vmatpush1.msra.mxu0 0.0
    %1481 = vmatprep.subr.mxu0 0.0
    %1482 = vmatpush1.msra.mxu0 0.0
    %1483 = vmatprep.subr.mxu0 0.0
    %1484 = vmatpush1.msra.mxu0 0.0
    %1485 = vmatprep.subr.mxu0 0.0
    %1486 = vmatpush1.msra.mxu0 0.0
    %1487 = vmatprep.subr.mxu0 0.0
    %1488 = vmatpush1.msra.mxu0 0.0
    %1489 = vmatprep.subr.mxu0 0.0
    %1490 = vmatpush1.msra.mxu0 0.0
    %1491 = vmatprep.subr.mxu0 0.0
    %1492 = vmatpush1.msra.mxu0 0.0
    %1493 = vmatprep.subr.mxu0 0.0
    %1494 = vmatpush1.msra.mxu0 0.0
    %1495 = vmatprep.subr.mxu0 0.0
    %1496 = vmatpush1.msra.mxu0 0.0
    %1497 = vmatprep.subr.mxu0 0.0
    %1498 = vmatpush1.msra.mxu0 0.0
    %1499 = vmatprep.subr.mxu0 0.0
    %1500 = vmatpush1.msra.mxu0 0.0
    %1501 = vmatprep.subr.mxu0 0.0
    %1502 = vmatpush1.msra.mxu0 0.0
    %1503 = vmatprep.subr.mxu0 0.0
    %1504 = vmatpush1.msra.mxu0 0.0
    %1505 = vmatprep.subr.mxu0 0.0
    %1506 = vmatpush1.msra.mxu0 0.0
    %1507 = vmatprep.subr.mxu0 0.0
    %1508 = vmatpush1.msra.mxu0 0.0
    %1509 = vmatprep.subr.mxu0 0.0
    %1510 = vmatpush1.msra.mxu0 0.0
    %1511 = vmatprep.subr.mxu0 0.0
    %1512 = vmatpush1.msra.mxu0 0.0
    %1513 = vmatprep.subr.mxu0 0.0
    %1514 = vmatpush1.msra.mxu0 0.0
    %1515 = vmatprep.subr.mxu0 0.0
    %1516 = vmatpush1.msra.mxu0 0.0
    %1517 = vmatprep.subr.mxu0 0.0
    %1518 = vmatpush1.msra.mxu0 0.0
    %1519 = vmatprep.mubr.f32.mxu0 0.0
    %1520 = vmatmul.mubr.f32.gmra.mrb[0].mxu0 %v1450
    %v1521 = vpop.f32.mrb[0].mxu0
    %v1522 = vadd.f32 0.0, %v1521
    %v1523 = vpop.f32.mrb[0].mxu0
    %v1524 = vadd.f32 0.0, %v1523
    %1525 = vmatprep.mubr.f32.mxu0 0.0
    %1526 = vmatmul.mubr.f32.gmra.mrb[0].mxu0 %v1453
    %v1527 = vpop.f32.mrb[0].mxu0
    %v1528 = vadd.f32 0.0, %v1527
    %v1529 = vpop.f32.mrb[0].mxu0
    %v1530 = vadd.f32 0.0, %v1529
    %1531 = vdwg.mxu0
    %1532 = vmatprep.subr.mxu0 %v1445
    %1533 = vmatpush1.msra.mxu0 %v1444
    %1534 = vmatprep.subr.mxu0 0.0
    %1535 = vmatpush1.msra.mxu0 0.0
    %1536 = vmatprep.subr.mxu0 0.0
    %1537 = vmatpush1.msra.mxu0 0.0
    %1538 = vmatprep.subr.mxu0 0.0
    %1539 = vmatpush1.msra.mxu0 0.0
    %1540 = vmatprep.subr.mxu0 0.0
    %1541 = vmatpush1.msra.mxu0 0.0
    %1542 = vmatprep.subr.mxu0 0.0
    %1543 = vmatpush1.msra.mxu0 0.0
    %1544 = vmatprep.subr.mxu0 0.0
    %1545 = vmatpush1.msra.mxu0 0.0
    %1546 = vmatprep.subr.mxu0 0.0
    %1547 = vmatpush1.msra.mxu0 0.0
    %1548 = vmatprep.subr.mxu0 0.0
    %1549 = vmatpush1.msra.mxu0 0.0
    %1550 = vmatprep.subr.mxu0 0.0
    %1551 = vmatpush1.msra.mxu0 0.0
    %1552 = vmatprep.subr.mxu0 0.0
    %1553 = vmatpush1.msra.mxu0 0.0
    %1554 = vmatprep.subr.mxu0 0.0
    %1555 = vmatpush1.msra.mxu0 0.0
    %1556 = vmatprep.subr.mxu0 0.0
    %1557 = vmatpush1.msra.mxu0 0.0
    %1558 = vmatprep.subr.mxu0 0.0
    %1559 = vmatpush1.msra.mxu0 0.0
    %1560 = vmatprep.subr.mxu0 0.0
    %1561 = vmatpush1.msra.mxu0 0.0
    %1562 = vmatprep.subr.mxu0 0.0
    %1563 = vmatpush1.msra.mxu0 0.0
    %1564 = vmatprep.subr.mxu0 0.0
    %1565 = vmatpush1.msra.mxu0 0.0
    %1566 = vmatprep.subr.mxu0 0.0
    %1567 = vmatpush1.msra.mxu0 0.0
    %1568 = vmatprep.subr.mxu0 0.0
    %1569 = vmatpush1.msra.mxu0 0.0
    %1570 = vmatprep.subr.mxu0 0.0
    %1571 = vmatpush1.msra.mxu0 0.0
    %1572 = vmatprep.subr.mxu0 0.0
    %1573 = vmatpush1.msra.mxu0 0.0
    %1574 = vmatprep.subr.mxu0 0.0
    %1575 = vmatpush1.msra.mxu0 0.0
    %1576 = vmatprep.subr.mxu0 0.0
    %1577 = vmatpush1.msra.mxu0 0.0
    %1578 = vmatprep.subr.mxu0 0.0
    %1579 = vmatpush1.msra.mxu0 0.0
    %1580 = vmatprep.subr.mxu0 0.0
    %1581 = vmatpush1.msra.mxu0 0.0
    %1582 = vmatprep.subr.mxu0 0.0
    %1583 = vmatpush1.msra.mxu0 0.0
    %1584 = vmatprep.subr.mxu0 0.0
    %1585 = vmatpush1.msra.mxu0 0.0
    %1586 = vmatprep.subr.mxu0 0.0
    %1587 = vmatpush1.msra.mxu0 0.0
    %1588 = vmatprep.subr.mxu0 0.0
    %1589 = vmatpush1.msra.mxu0 0.0
    %1590 = vmatprep.subr.mxu0 0.0
    %1591 = vmatpush1.msra.mxu0 0.0
    %1592 = vmatprep.subr.mxu0 0.0
    %1593 = vmatpush1.msra.mxu0 0.0
    %1594 = vmatprep.subr.mxu0 0.0
    %1595 = vmatpush1.msra.mxu0 0.0
    %1596 = vmatprep.mubr.f32.mxu0 0.0
    %1597 = vmatmul.mubr.f32.gmra.mrb[0].mxu0 %v1450
    %v1598 = vpop.f32.mrb[0].mxu0
    %v1599 = vadd.f32 0.0, %v1598
    %v1600 = vpop.f32.mrb[0].mxu0
    %v1601 = vadd.f32 0.0, %v1600
    %1602 = vmatprep.mubr.f32.mxu0 0.0
    %1603 = vmatmul.mubr.f32.gmra.mrb[0].mxu0 %v1453
    %v1604 = vpop.f32.mrb[0].mxu0
    %v1605 = vadd.f32 0.0, %v1604
    %v1606 = vpop.f32.mrb[0].mxu0
    %v1607 = vadd.f32 0.0, %v1606
    %1608 = vdwg.mxu0
    %v1609 = vadd.f32 %v1405, %v1522
    %v1610 = vadd.f32 %v1406, %v1524
    %v1611 = vadd.f32 %v1407, %v1599
    %v1612 = vadd.f32 %v1408, %v1601
    %v1613 = vadd.f32 %v1409, %v1528
    %v1614 = vadd.f32 %v1410, %v1530
    %v1615 = vadd.f32 %v1411, %v1605
    %v1616 = vadd.f32 %v1412, %v1607
    %1617 = vrot.lane.b32.xlu0 %v28, 111
    %v1618 = vpop.permute.xlu0 %1617
    %1619 = vrot.lane.b32.xlu0 %v29, 111
    %v1620 = vpop.permute.xlu0 %1619
    %1621 = vrot.lane.b32.xlu0 %v30, 111
    %v1622 = vpop.permute.xlu0 %1621
    %1623 = vrot.lane.b32.xlu0 %v31, 111
    %v1624 = vpop.permute.xlu0 %1623
    %vm1625 = vcmp.lt.s32.totalorder %v44, 111
    %v1626 = vsel %vm1625, %v1622, %v1624
    %v1627 = vsel %vm1625, %v1620, %v1622
    %v1628 = vsel %vm1625, %v1618, %v1620
    %v1629 = vsel %vm1625, %v1624, %v1618
    %v1630 = vlaneseq
    %v1631 = vshrl.u32 %v1630, 7
    %v1632 = vsub.s32 7, %v1631
    %v1633 = vrot.slane %v24, %v1632
    %v1634 = vlaneseq
    %v1635 = vshrl.u32 %v1634, 7
    %v1636 = vsub.s32 7, %v1635
    %v1637 = vrot.slane %v25, %v1636
    %v1638 = vlaneseq
    %v1639 = vshrl.u32 %v1638, 7
    %v1640 = vsub.s32 7, %v1639
    %v1641 = vrot.slane %v26, %v1640
    %v1642 = vlaneseq
    %v1643 = vshrl.u32 %v1642, 7
    %v1644 = vsub.s32 7, %v1643
    %v1645 = vrot.slane %v27, %v1644
    %v1646 = vmul.f32 %v1628, %v1633
    %v1647 = vmul.f32 %v1627, %v1637
    %v1648 = vmul.f32 %v1626, %v1641
    %v1649 = vmul.f32 %v1629, %v1645
    %s1650 = scalar_lea.vmem %s2, 128
    %v1651 = vld [vmem:[%s1650] sm:$0xff]
    %v1652 = vld [vmem:[%s1650 + $0x8] sm:$0xff]
    %v1654 = vsel %vm72, %v1651, 0
    %v1657 = vsel %vm72, %v1652, 0
    %1659 = vmatprep.subr.mxu0 %v1647
    %1660 = vmatpush1.msra.mxu0 %v1646
    %1661 = vmatprep.subr.mxu0 0.0
    %1662 = vmatpush1.msra.mxu0 0.0
    %1663 = vmatprep.subr.mxu0 0.0
    %1664 = vmatpush1.msra.mxu0 0.0
    %1665 = vmatprep.subr.mxu0 0.0
    %1666 = vmatpush1.msra.mxu0 0.0
    %1667 = vmatprep.subr.mxu0 0.0
    %1668 = vmatpush1.msra.mxu0 0.0
    %1669 = vmatprep.subr.mxu0 0.0
    %1670 = vmatpush1.msra.mxu0 0.0
    %1671 = vmatprep.subr.mxu0 0.0
    %1672 = vmatpush1.msra.mxu0 0.0
    %1673 = vmatprep.subr.mxu0 0.0
    %1674 = vmatpush1.msra.mxu0 0.0
    %1675 = vmatprep.subr.mxu0 0.0
    %1676 = vmatpush1.msra.mxu0 0.0
    %1677 = vmatprep.subr.mxu0 0.0
    %1678 = vmatpush1.msra.mxu0 0.0
    %1679 = vmatprep.subr.mxu0 0.0
    %1680 = vmatpush1.msra.mxu0 0.0
    %1681 = vmatprep.subr.mxu0 0.0
    %1682 = vmatpush1.msra.mxu0 0.0
    %1683 = vmatprep.subr.mxu0 0.0
    %1684 = vmatpush1.msra.mxu0 0.0
    %1685 = vmatprep.subr.mxu0 0.0
    %1686 = vmatpush1.msra.mxu0 0.0
    %1687 = vmatprep.subr.mxu0 0.0
    %1688 = vmatpush1.msra.mxu0 0.0
    %1689 = vmatprep.subr.mxu0 0.0
    %1690 = vmatpush1.msra.mxu0 0.0
    %1691 = vmatprep.subr.mxu0 0.0
    %1692 = vmatpush1.msra.mxu0 0.0
    %1693 = vmatprep.subr.mxu0 0.0
    %1694 = vmatpush1.msra.mxu0 0.0
    %1695 = vmatprep.subr.mxu0 0.0
    %1696 = vmatpush1.msra.mxu0 0.0
    %1697 = vmatprep.subr.mxu0 0.0
    %1698 = vmatpush1.msra.mxu0 0.0
    %1699 = vmatprep.subr.mxu0 0.0
    %1700 = vmatpush1.msra.mxu0 0.0
    %1701 = vmatprep.subr.mxu0 0.0
    %1702 = vmatpush1.msra.mxu0 0.0
    %1703 = vmatprep.subr.mxu0 0.0
    %1704 = vmatpush1.msra.mxu0 0.0
    %1705 = vmatprep.subr.mxu0 0.0
    %1706 = vmatpush1.msra.mxu0 0.0
    %1707 = vmatprep.subr.mxu0 0.0
    %1708 = vmatpush1.msra.mxu0 0.0
    %1709 = vmatprep.subr.mxu0 0.0
    %1710 = vmatpush1.msra.mxu0 0.0
    %1711 = vmatprep.subr.mxu0 0.0
    %1712 = vmatpush1.msra.mxu0 0.0
    %1713 = vmatprep.subr.mxu0 0.0
    %1714 = vmatpush1.msra.mxu0 0.0
    %1715 = vmatprep.subr.mxu0 0.0
    %1716 = vmatpush1.msra.mxu0 0.0
    %1717 = vmatprep.subr.mxu0 0.0
    %1718 = vmatpush1.msra.mxu0 0.0
    %1719 = vmatprep.subr.mxu0 0.0
    %1720 = vmatpush1.msra.mxu0 0.0
    %1721 = vmatprep.subr.mxu0 0.0
    %1722 = vmatpush1.msra.mxu0 0.0
    %1723 = vmatprep.mubr.f32.mxu0 0.0
    %1724 = vmatmul.mubr.f32.gmra.mrb[0].mxu0 %v1654
    %v1725 = vpop.f32.mrb[0].mxu0
    %v1726 = vadd.f32 0.0, %v1725
    %v1727 = vpop.f32.mrb[0].mxu0
    %v1728 = vadd.f32 0.0, %v1727
    %1729 = vmatprep.mubr.f32.mxu0 0.0
    %1730 = vmatmul.mubr.f32.gmra.mrb[0].mxu0 %v1657
    %v1731 = vpop.f32.mrb[0].mxu0
    %v1732 = vadd.f32 0.0, %v1731
    %v1733 = vpop.f32.mrb[0].mxu0
    %v1734 = vadd.f32 0.0, %v1733
    %1735 = vdwg.mxu0
    %1736 = vmatprep.subr.mxu0 %v1649
    %1737 = vmatpush1.msra.mxu0 %v1648
    %1738 = vmatprep.subr.mxu0 0.0
    %1739 = vmatpush1.msra.mxu0 0.0
    %1740 = vmatprep.subr.mxu0 0.0
    %1741 = vmatpush1.msra.mxu0 0.0
    %1742 = vmatprep.subr.mxu0 0.0
    %1743 = vmatpush1.msra.mxu0 0.0
    %1744 = vmatprep.subr.mxu0 0.0
    %1745 = vmatpush1.msra.mxu0 0.0
    %1746 = vmatprep.subr.mxu0 0.0
    %1747 = vmatpush1.msra.mxu0 0.0
    %1748 = vmatprep.subr.mxu0 0.0
    %1749 = vmatpush1.msra.mxu0 0.0
    %1750 = vmatprep.subr.mxu0 0.0
    %1751 = vmatpush1.msra.mxu0 0.0
    %1752 = vmatprep.subr.mxu0 0.0
    %1753 = vmatpush1.msra.mxu0 0.0
    %1754 = vmatprep.subr.mxu0 0.0
    %1755 = vmatpush1.msra.mxu0 0.0
    %1756 = vmatprep.subr.mxu0 0.0
    %1757 = vmatpush1.msra.mxu0 0.0
    %1758 = vmatprep.subr.mxu0 0.0
    %1759 = vmatpush1.msra.mxu0 0.0
    %1760 = vmatprep.subr.mxu0 0.0
    %1761 = vmatpush1.msra.mxu0 0.0
    %1762 = vmatprep.subr.mxu0 0.0
    %1763 = vmatpush1.msra.mxu0 0.0
    %1764 = vmatprep.subr.mxu0 0.0
    %1765 = vmatpush1.msra.mxu0 0.0
    %1766 = vmatprep.subr.mxu0 0.0
    %1767 = vmatpush1.msra.mxu0 0.0
    %1768 = vmatprep.subr.mxu0 0.0
    %1769 = vmatpush1.msra.mxu0 0.0
    %1770 = vmatprep.subr.mxu0 0.0
    %1771 = vmatpush1.msra.mxu0 0.0
    %1772 = vmatprep.subr.mxu0 0.0
    %1773 = vmatpush1.msra.mxu0 0.0
    %1774 = vmatprep.subr.mxu0 0.0
    %1775 = vmatpush1.msra.mxu0 0.0
    %1776 = vmatprep.subr.mxu0 0.0
    %1777 = vmatpush1.msra.mxu0 0.0
    %1778 = vmatprep.subr.mxu0 0.0
    %1779 = vmatpush1.msra.mxu0 0.0
    %1780 = vmatprep.subr.mxu0 0.0
    %1781 = vmatpush1.msra.mxu0 0.0
    %1782 = vmatprep.subr.mxu0 0.0
    %1783 = vmatpush1.msra.mxu0 0.0
    %1784 = vmatprep.subr.mxu0 0.0
    %1785 = vmatpush1.msra.mxu0 0.0
    %1786 = vmatprep.subr.mxu0 0.0
    %1787 = vmatpush1.msra.mxu0 0.0
    %1788 = vmatprep.subr.mxu0 0.0
    %1789 = vmatpush1.msra.mxu0 0.0
    %1790 = vmatprep.subr.mxu0 0.0
    %1791 = vmatpush1.msra.mxu0 0.0
    %1792 = vmatprep.subr.mxu0 0.0
    %1793 = vmatpush1.msra.mxu0 0.0
    %1794 = vmatprep.subr.mxu0 0.0
    %1795 = vmatpush1.msra.mxu0 0.0
    %1796 = vmatprep.subr.mxu0 0.0
    %1797 = vmatpush1.msra.mxu0 0.0
    %1798 = vmatprep.subr.mxu0 0.0
    %1799 = vmatpush1.msra.mxu0 0.0
    %1800 = vmatprep.mubr.f32.mxu0 0.0
    %1801 = vmatmul.mubr.f32.gmra.mrb[0].mxu0 %v1654
    %v1802 = vpop.f32.mrb[0].mxu0
    %v1803 = vadd.f32 0.0, %v1802
    %v1804 = vpop.f32.mrb[0].mxu0
    %v1805 = vadd.f32 0.0, %v1804
    %1806 = vmatprep.mubr.f32.mxu0 0.0
    %1807 = vmatmul.mubr.f32.gmra.mrb[0].mxu0 %v1657
    %v1808 = vpop.f32.mrb[0].mxu0
    %v1809 = vadd.f32 0.0, %v1808
    %v1810 = vpop.f32.mrb[0].mxu0
    %v1811 = vadd.f32 0.0, %v1810
    %1812 = vdwg.mxu0
    %v1813 = vadd.f32 %v1609, %v1726
    %v1814 = vadd.f32 %v1610, %v1728
    %v1815 = vadd.f32 %v1611, %v1803
    %v1816 = vadd.f32 %v1612, %v1805
    %v1817 = vadd.f32 %v1613, %v1732
    %v1818 = vadd.f32 %v1614, %v1734
    %v1819 = vadd.f32 %v1615, %v1809
    %v1820 = vadd.f32 %v1616, %v1811
    %v1821 = vld [vmem:[%s3] sm:$0xff]
    %v1822 = vld [vmem:[%s3 + $0x8] sm:$0xff]
    %1824 = vset.pattern.permute.xlu0 0
    %1825 = vperm.xlu0 %1824, %v1821
    %v1826 = vpop.permute.xlu0 %1825
    %1829 = vset.pattern.permute.xlu0 0
    %1830 = vperm.xlu0 %1829, %v1822
    %v1831 = vpop.permute.xlu0 %1830
    %v1833 = vadd.f32 %v1813, %v1826
    %v1834 = vadd.f32 %v1814, %v1826
    %v1835 = vadd.f32 %v1815, %v1826
    %v1836 = vadd.f32 %v1816, %v1826
    %v1837 = vadd.f32 %v1817, %v1831
    %v1838 = vadd.f32 %v1818, %v1831
    %v1839 = vadd.f32 %v1819, %v1831
    %v1840 = vadd.f32 %v1820, %v1831
    %v1841 = vmax.f32 %v1833, 0.0
    %v1842 = vmax.f32 %v1834, 0.0
    %v1843 = vmax.f32 %v1835, 0.0
    %v1844 = vmax.f32 %v1836, 0.0
    %v1845 = vmax.f32 %v1837, 0.0
    %v1846 = vmax.f32 %v1838, 0.0
    %v1847 = vmax.f32 %v1839, 0.0
    %v1848 = vmax.f32 %v1840, 0.0
    %s1849 = scalar_lea.vmem %s4, 32
    %v1850 = vld [vmem:[%s1849] sm:$0xff]
    %1851 = vrot.lane.b32.xlu0 %v1841, 17
    %v1852 = vpop.permute.xlu0 %1851
    %1853 = vrot.lane.b32.xlu0 %v1845, 17
    %v1854 = vpop.permute.xlu0 %1853
    %1855 = vrot.lane.b32.xlu0 %v1842, 17
    %v1856 = vpop.permute.xlu0 %1855
    %1857 = vrot.lane.b32.xlu0 %v1846, 17
    %v1858 = vpop.permute.xlu0 %1857
    %1859 = vrot.lane.b32.xlu0 %v1843, 17
    %v1860 = vpop.permute.xlu0 %1859
    %1861 = vrot.lane.b32.xlu0 %v1847, 17
    %v1862 = vpop.permute.xlu0 %1861
    %1863 = vrot.lane.b32.xlu0 %v1844, 17
    %v1864 = vpop.permute.xlu0 %1863
    %1865 = vrot.lane.b32.xlu0 %v1848, 17
    %v1866 = vpop.permute.xlu0 %1865
    %v1867 = vsel %vm45, %v1860, %v1864
    %v1868 = vsel %vm45, %v1862, %v1866
    %v1869 = vsel %vm45, %v1856, %v1860
    %v1870 = vsel %vm45, %v1858, %v1862
    %v1871 = vsel %vm45, %v1852, %v1856
    %v1872 = vsel %vm45, %v1854, %v1858
    %v1873 = vsel %vm45, %v1864, %v1852
    %v1874 = vsel %vm45, %v1866, %v1854
    %v1875 = vmul.f32 %v1873, %v53
    %v1876 = vmul.f32 %v1871, %v57
    %v1877 = vmul.f32 %v1869, %v61
    %v1878 = vmul.f32 %v1867, %v65
    %v1879 = vmul.f32 %v1874, %v53
    %v1880 = vmul.f32 %v1872, %v57
    %v1881 = vmul.f32 %v1870, %v61
    %v1882 = vmul.f32 %v1868, %v65
    %v1883 = vld [vmem:[%s4] sm:$0xff]
    %vm1884 = vcmask 130048
    %v1886 = vsel %vm1884, %v1883, 0
    %1888 = vmatprep.subr.mxu0 %v1876
    %1889 = vmatpush1.msra.mxu0 %v1875
    %1890 = vmatprep.subr.mxu0 %v1880
    %1891 = vmatpush1.msra.mxu0 %v1879
    %1892 = vmatprep.subr.mxu0 0.0
    %1893 = vmatpush1.msra.mxu0 0.0
    %1894 = vmatprep.subr.mxu0 0.0
    %1895 = vmatpush1.msra.mxu0 0.0
    %1896 = vmatprep.subr.mxu0 0.0
    %1897 = vmatpush1.msra.mxu0 0.0
    %1898 = vmatprep.subr.mxu0 0.0
    %1899 = vmatpush1.msra.mxu0 0.0
    %1900 = vmatprep.subr.mxu0 0.0
    %1901 = vmatpush1.msra.mxu0 0.0
    %1902 = vmatprep.subr.mxu0 0.0
    %1903 = vmatpush1.msra.mxu0 0.0
    %1904 = vmatprep.subr.mxu0 0.0
    %1905 = vmatpush1.msra.mxu0 0.0
    %1906 = vmatprep.subr.mxu0 0.0
    %1907 = vmatpush1.msra.mxu0 0.0
    %1908 = vmatprep.subr.mxu0 0.0
    %1909 = vmatpush1.msra.mxu0 0.0
    %1910 = vmatprep.subr.mxu0 0.0
    %1911 = vmatpush1.msra.mxu0 0.0
    %1912 = vmatprep.subr.mxu0 0.0
    %1913 = vmatpush1.msra.mxu0 0.0
    %1914 = vmatprep.subr.mxu0 0.0
    %1915 = vmatpush1.msra.mxu0 0.0
    %1916 = vmatprep.subr.mxu0 0.0
    %1917 = vmatpush1.msra.mxu0 0.0
    %1918 = vmatprep.subr.mxu0 0.0
    %1919 = vmatpush1.msra.mxu0 0.0
    %1920 = vmatprep.subr.mxu0 0.0
    %1921 = vmatpush1.msra.mxu0 0.0
    %1922 = vmatprep.subr.mxu0 0.0
    %1923 = vmatpush1.msra.mxu0 0.0
    %1924 = vmatprep.subr.mxu0 0.0
    %1925 = vmatpush1.msra.mxu0 0.0
    %1926 = vmatprep.subr.mxu0 0.0
    %1927 = vmatpush1.msra.mxu0 0.0
    %1928 = vmatprep.subr.mxu0 0.0
    %1929 = vmatpush1.msra.mxu0 0.0
    %1930 = vmatprep.subr.mxu0 0.0
    %1931 = vmatpush1.msra.mxu0 0.0
    %1932 = vmatprep.subr.mxu0 0.0
    %1933 = vmatpush1.msra.mxu0 0.0
    %1934 = vmatprep.subr.mxu0 0.0
    %1935 = vmatpush1.msra.mxu0 0.0
    %1936 = vmatprep.subr.mxu0 0.0
    %1937 = vmatpush1.msra.mxu0 0.0
    %1938 = vmatprep.subr.mxu0 0.0
    %1939 = vmatpush1.msra.mxu0 0.0
    %1940 = vmatprep.subr.mxu0 0.0
    %1941 = vmatpush1.msra.mxu0 0.0
    %1942 = vmatprep.subr.mxu0 0.0
    %1943 = vmatpush1.msra.mxu0 0.0
    %1944 = vmatprep.subr.mxu0 0.0
    %1945 = vmatpush1.msra.mxu0 0.0
    %1946 = vmatprep.subr.mxu0 0.0
    %1947 = vmatpush1.msra.mxu0 0.0
    %1948 = vmatprep.subr.mxu0 0.0
    %1949 = vmatpush1.msra.mxu0 0.0
    %1950 = vmatprep.subr.mxu0 0.0
    %1951 = vmatpush1.msra.mxu0 0.0
    %1952 = vmatprep.mubr.f32.mxu0 0.0
    %1953 = vmatmul.mubr.f32.gmra.mrb[0].mxu0 %v1886
    %v1954 = vpop.f32.mrb[0].mxu0
    %v1955 = vadd.f32 0.0, %v1954
    %v1956 = vpop.f32.mrb[0].mxu0
    %v1957 = vadd.f32 0.0, %v1956
    %1958 = vdwg.mxu0
    %1959 = vmatprep.subr.mxu0 %v1878
    %1960 = vmatpush1.msra.mxu0 %v1877
    %1961 = vmatprep.subr.mxu0 %v1882
    %1962 = vmatpush1.msra.mxu0 %v1881
    %1963 = vmatprep.subr.mxu0 0.0
    %1964 = vmatpush1.msra.mxu0 0.0
    %1965 = vmatprep.subr.mxu0 0.0
    %1966 = vmatpush1.msra.mxu0 0.0
    %1967 = vmatprep.subr.mxu0 0.0
    %1968 = vmatpush1.msra.mxu0 0.0
    %1969 = vmatprep.subr.mxu0 0.0
    %1970 = vmatpush1.msra.mxu0 0.0
    %1971 = vmatprep.subr.mxu0 0.0
    %1972 = vmatpush1.msra.mxu0 0.0
    %1973 = vmatprep.subr.mxu0 0.0
    %1974 = vmatpush1.msra.mxu0 0.0
    %1975 = vmatprep.subr.mxu0 0.0
    %1976 = vmatpush1.msra.mxu0 0.0
    %1977 = vmatprep.subr.mxu0 0.0
    %1978 = vmatpush1.msra.mxu0 0.0
    %1979 = vmatprep.subr.mxu0 0.0
    %1980 = vmatpush1.msra.mxu0 0.0
    %1981 = vmatprep.subr.mxu0 0.0
    %1982 = vmatpush1.msra.mxu0 0.0
    %1983 = vmatprep.subr.mxu0 0.0
    %1984 = vmatpush1.msra.mxu0 0.0
    %1985 = vmatprep.subr.mxu0 0.0
    %1986 = vmatpush1.msra.mxu0 0.0
    %1987 = vmatprep.subr.mxu0 0.0
    %1988 = vmatpush1.msra.mxu0 0.0
    %1989 = vmatprep.subr.mxu0 0.0
    %1990 = vmatpush1.msra.mxu0 0.0
    %1991 = vmatprep.subr.mxu0 0.0
    %1992 = vmatpush1.msra.mxu0 0.0
    %1993 = vmatprep.subr.mxu0 0.0
    %1994 = vmatpush1.msra.mxu0 0.0
    %1995 = vmatprep.subr.mxu0 0.0
    %1996 = vmatpush1.msra.mxu0 0.0
    %1997 = vmatprep.subr.mxu0 0.0
    %1998 = vmatpush1.msra.mxu0 0.0
    %1999 = vmatprep.subr.mxu0 0.0
    %2000 = vmatpush1.msra.mxu0 0.0
    %2001 = vmatprep.subr.mxu0 0.0
    %2002 = vmatpush1.msra.mxu0 0.0
    %2003 = vmatprep.subr.mxu0 0.0
    %2004 = vmatpush1.msra.mxu0 0.0
    %2005 = vmatprep.subr.mxu0 0.0
    %2006 = vmatpush1.msra.mxu0 0.0
    %2007 = vmatprep.subr.mxu0 0.0
    %2008 = vmatpush1.msra.mxu0 0.0
    %2009 = vmatprep.subr.mxu0 0.0
    %2010 = vmatpush1.msra.mxu0 0.0
    %2011 = vmatprep.subr.mxu0 0.0
    %2012 = vmatpush1.msra.mxu0 0.0
    %2013 = vmatprep.subr.mxu0 0.0
    %2014 = vmatpush1.msra.mxu0 0.0
    %2015 = vmatprep.subr.mxu0 0.0
    %2016 = vmatpush1.msra.mxu0 0.0
    %2017 = vmatprep.subr.mxu0 0.0
    %2018 = vmatpush1.msra.mxu0 0.0
    %2019 = vmatprep.subr.mxu0 0.0
    %2020 = vmatpush1.msra.mxu0 0.0
    %2021 = vmatprep.subr.mxu0 0.0
    %2022 = vmatpush1.msra.mxu0 0.0
    %2023 = vmatprep.mubr.f32.mxu0 0.0
    %2024 = vmatmul.mubr.f32.gmra.mrb[0].mxu0 %v1886
    %v2025 = vpop.f32.mrb[0].mxu0
    %v2026 = vadd.f32 0.0, %v2025
    %v2027 = vpop.f32.mrb[0].mxu0
    %v2028 = vadd.f32 0.0, %v2027
    %2029 = vdwg.mxu0
    %v2031 = vsel %vm1884, %v1850, 0
    %2033 = vmatprep.subr.mxu0 %v1842
    %2034 = vmatpush1.msra.mxu0 %v1841
    %2035 = vmatprep.subr.mxu0 %v1846
    %2036 = vmatpush1.msra.mxu0 %v1845
    %2037 = vmatprep.subr.mxu0 0.0
    %2038 = vmatpush1.msra.mxu0 0.0
    %2039 = vmatprep.subr.mxu0 0.0
    %2040 = vmatpush1.msra.mxu0 0.0
    %2041 = vmatprep.subr.mxu0 0.0
    %2042 = vmatpush1.msra.mxu0 0.0
    %2043 = vmatprep.subr.mxu0 0.0
    %2044 = vmatpush1.msra.mxu0 0.0
    %2045 = vmatprep.subr.mxu0 0.0
    %2046 = vmatpush1.msra.mxu0 0.0
    %2047 = vmatprep.subr.mxu0 0.0
    %2048 = vmatpush1.msra.mxu0 0.0
    %2049 = vmatprep.subr.mxu0 0.0
    %2050 = vmatpush1.msra.mxu0 0.0
    %2051 = vmatprep.subr.mxu0 0.0
    %2052 = vmatpush1.msra.mxu0 0.0
    %2053 = vmatprep.subr.mxu0 0.0
    %2054 = vmatpush1.msra.mxu0 0.0
    %2055 = vmatprep.subr.mxu0 0.0
    %2056 = vmatpush1.msra.mxu0 0.0
    %2057 = vmatprep.subr.mxu0 0.0
    %2058 = vmatpush1.msra.mxu0 0.0
    %2059 = vmatprep.subr.mxu0 0.0
    %2060 = vmatpush1.msra.mxu0 0.0
    %2061 = vmatprep.subr.mxu0 0.0
    %2062 = vmatpush1.msra.mxu0 0.0
    %2063 = vmatprep.subr.mxu0 0.0
    %2064 = vmatpush1.msra.mxu0 0.0
    %2065 = vmatprep.subr.mxu0 0.0
    %2066 = vmatpush1.msra.mxu0 0.0
    %2067 = vmatprep.subr.mxu0 0.0
    %2068 = vmatpush1.msra.mxu0 0.0
    %2069 = vmatprep.subr.mxu0 0.0
    %2070 = vmatpush1.msra.mxu0 0.0
    %2071 = vmatprep.subr.mxu0 0.0
    %2072 = vmatpush1.msra.mxu0 0.0
    %2073 = vmatprep.subr.mxu0 0.0
    %2074 = vmatpush1.msra.mxu0 0.0
    %2075 = vmatprep.subr.mxu0 0.0
    %2076 = vmatpush1.msra.mxu0 0.0
    %2077 = vmatprep.subr.mxu0 0.0
    %2078 = vmatpush1.msra.mxu0 0.0
    %2079 = vmatprep.subr.mxu0 0.0
    %2080 = vmatpush1.msra.mxu0 0.0
    %2081 = vmatprep.subr.mxu0 0.0
    %2082 = vmatpush1.msra.mxu0 0.0
    %2083 = vmatprep.subr.mxu0 0.0
    %2084 = vmatpush1.msra.mxu0 0.0
    %2085 = vmatprep.subr.mxu0 0.0
    %2086 = vmatpush1.msra.mxu0 0.0
    %2087 = vmatprep.subr.mxu0 0.0
    %2088 = vmatpush1.msra.mxu0 0.0
    %2089 = vmatprep.subr.mxu0 0.0
    %2090 = vmatpush1.msra.mxu0 0.0
    %2091 = vmatprep.subr.mxu0 0.0
    %2092 = vmatpush1.msra.mxu0 0.0
    %2093 = vmatprep.subr.mxu0 0.0
    %2094 = vmatpush1.msra.mxu0 0.0
    %2095 = vmatprep.subr.mxu0 0.0
    %2096 = vmatpush1.msra.mxu0 0.0
    %2097 = vmatprep.mubr.f32.mxu0 0.0
    %2098 = vmatmul.mubr.f32.gmra.mrb[0].mxu0 %v2031
    %v2099 = vpop.f32.mrb[0].mxu0
    %v2100 = vadd.f32 %v1955, %v2099
    %v2101 = vpop.f32.mrb[0].mxu0
    %v2102 = vadd.f32 %v1957, %v2101
    %2103 = vdwg.mxu0
    %2104 = vmatprep.subr.mxu0 %v1844
    %2105 = vmatpush1.msra.mxu0 %v1843
    %2106 = vmatprep.subr.mxu0 %v1848
    %2107 = vmatpush1.msra.mxu0 %v1847
    %2108 = vmatprep.subr.mxu0 0.0
    %2109 = vmatpush1.msra.mxu0 0.0
    %2110 = vmatprep.subr.mxu0 0.0
    %2111 = vmatpush1.msra.mxu0 0.0
    %2112 = vmatprep.subr.mxu0 0.0
    %2113 = vmatpush1.msra.mxu0 0.0
    %2114 = vmatprep.subr.mxu0 0.0
    %2115 = vmatpush1.msra.mxu0 0.0
    %2116 = vmatprep.subr.mxu0 0.0
    %2117 = vmatpush1.msra.mxu0 0.0
    %2118 = vmatprep.subr.mxu0 0.0
    %2119 = vmatpush1.msra.mxu0 0.0
    %2120 = vmatprep.subr.mxu0 0.0
    %2121 = vmatpush1.msra.mxu0 0.0
    %2122 = vmatprep.subr.mxu0 0.0
    %2123 = vmatpush1.msra.mxu0 0.0
    %2124 = vmatprep.subr.mxu0 0.0
    %2125 = vmatpush1.msra.mxu0 0.0
    %2126 = vmatprep.subr.mxu0 0.0
    %2127 = vmatpush1.msra.mxu0 0.0
    %2128 = vmatprep.subr.mxu0 0.0
    %2129 = vmatpush1.msra.mxu0 0.0
    %2130 = vmatprep.subr.mxu0 0.0
    %2131 = vmatpush1.msra.mxu0 0.0
    %2132 = vmatprep.subr.mxu0 0.0
    %2133 = vmatpush1.msra.mxu0 0.0
    %2134 = vmatprep.subr.mxu0 0.0
    %2135 = vmatpush1.msra.mxu0 0.0
    %2136 = vmatprep.subr.mxu0 0.0
    %2137 = vmatpush1.msra.mxu0 0.0
    %2138 = vmatprep.subr.mxu0 0.0
    %2139 = vmatpush1.msra.mxu0 0.0
    %2140 = vmatprep.subr.mxu0 0.0
    %2141 = vmatpush1.msra.mxu0 0.0
    %2142 = vmatprep.subr.mxu0 0.0
    %2143 = vmatpush1.msra.mxu0 0.0
    %2144 = vmatprep.subr.mxu0 0.0
    %2145 = vmatpush1.msra.mxu0 0.0
    %2146 = vmatprep.subr.mxu0 0.0
    %2147 = vmatpush1.msra.mxu0 0.0
    %2148 = vmatprep.subr.mxu0 0.0
    %2149 = vmatpush1.msra.mxu0 0.0
    %2150 = vmatprep.subr.mxu0 0.0
    %2151 = vmatpush1.msra.mxu0 0.0
    %2152 = vmatprep.subr.mxu0 0.0
    %2153 = vmatpush1.msra.mxu0 0.0
    %2154 = vmatprep.subr.mxu0 0.0
    %2155 = vmatpush1.msra.mxu0 0.0
    %2156 = vmatprep.subr.mxu0 0.0
    %2157 = vmatpush1.msra.mxu0 0.0
    %2158 = vmatprep.subr.mxu0 0.0
    %2159 = vmatpush1.msra.mxu0 0.0
    %2160 = vmatprep.subr.mxu0 0.0
    %2161 = vmatpush1.msra.mxu0 0.0
    %2162 = vmatprep.subr.mxu0 0.0
    %2163 = vmatpush1.msra.mxu0 0.0
    %2164 = vmatprep.subr.mxu0 0.0
    %2165 = vmatpush1.msra.mxu0 0.0
    %2166 = vmatprep.subr.mxu0 0.0
    %2167 = vmatpush1.msra.mxu0 0.0
    %2168 = vmatprep.mubr.f32.mxu0 0.0
    %2169 = vmatmul.mubr.f32.gmra.mrb[0].mxu0 %v2031
    %v2170 = vpop.f32.mrb[0].mxu0
    %v2171 = vadd.f32 %v2026, %v2170
    %v2172 = vpop.f32.mrb[0].mxu0
    %v2173 = vadd.f32 %v2028, %v2172
    %2174 = vdwg.mxu0
    %2175 = vrot.lane.b32.xlu0 %v1841, 16
    %v2176 = vpop.permute.xlu0 %2175
    %2177 = vrot.lane.b32.xlu0 %v1845, 16
    %v2178 = vpop.permute.xlu0 %2177
    %2179 = vrot.lane.b32.xlu0 %v1842, 16
    %v2180 = vpop.permute.xlu0 %2179
    %2181 = vrot.lane.b32.xlu0 %v1846, 16
    %v2182 = vpop.permute.xlu0 %2181
    %2183 = vrot.lane.b32.xlu0 %v1843, 16
    %v2184 = vpop.permute.xlu0 %2183
    %2185 = vrot.lane.b32.xlu0 %v1847, 16
    %v2186 = vpop.permute.xlu0 %2185
    %2187 = vrot.lane.b32.xlu0 %v1844, 16
    %v2188 = vpop.permute.xlu0 %2187
    %2189 = vrot.lane.b32.xlu0 %v1848, 16
    %v2190 = vpop.permute.xlu0 %2189
    %v2191 = vsel %vm401, %v2184, %v2188
    %v2192 = vsel %vm401, %v2186, %v2190
    %v2193 = vsel %vm401, %v2180, %v2184
    %v2194 = vsel %vm401, %v2182, %v2186
    %v2195 = vsel %vm401, %v2176, %v2180
    %v2196 = vsel %vm401, %v2178, %v2182
    %v2197 = vsel %vm401, %v2188, %v2176
    %v2198 = vsel %vm401, %v2190, %v2178
    %v2199 = vmul.f32 %v2197, %v409
    %v2200 = vmul.f32 %v2195, %v413
    %v2201 = vmul.f32 %v2193, %v417
    %v2202 = vmul.f32 %v2191, %v421
    %v2203 = vmul.f32 %v2198, %v409
    %v2204 = vmul.f32 %v2196, %v413
    %v2205 = vmul.f32 %v2194, %v417
    %v2206 = vmul.f32 %v2192, %v421
    %s2207 = scalar_lea.vmem %s4, 8
    %v2208 = vld [vmem:[%s2207] sm:$0xff]
    %v2210 = vsel %vm1884, %v2208, 0
    %2212 = vmatprep.subr.mxu0 %v2200
    %2213 = vmatpush1.msra.mxu0 %v2199
    %2214 = vmatprep.subr.mxu0 %v2204
    %2215 = vmatpush1.msra.mxu0 %v2203
    %2216 = vmatprep.subr.mxu0 0.0
    %2217 = vmatpush1.msra.mxu0 0.0
    %2218 = vmatprep.subr.mxu0 0.0
    %2219 = vmatpush1.msra.mxu0 0.0
    %2220 = vmatprep.subr.mxu0 0.0
    %2221 = vmatpush1.msra.mxu0 0.0
    %2222 = vmatprep.subr.mxu0 0.0
    %2223 = vmatpush1.msra.mxu0 0.0
    %2224 = vmatprep.subr.mxu0 0.0
    %2225 = vmatpush1.msra.mxu0 0.0
    %2226 = vmatprep.subr.mxu0 0.0
    %2227 = vmatpush1.msra.mxu0 0.0
    %2228 = vmatprep.subr.mxu0 0.0
    %2229 = vmatpush1.msra.mxu0 0.0
    %2230 = vmatprep.subr.mxu0 0.0
    %2231 = vmatpush1.msra.mxu0 0.0
    %2232 = vmatprep.subr.mxu0 0.0
    %2233 = vmatpush1.msra.mxu0 0.0
    %2234 = vmatprep.subr.mxu0 0.0
    %2235 = vmatpush1.msra.mxu0 0.0
    %2236 = vmatprep.subr.mxu0 0.0
    %2237 = vmatpush1.msra.mxu0 0.0
    %2238 = vmatprep.subr.mxu0 0.0
    %2239 = vmatpush1.msra.mxu0 0.0
    %2240 = vmatprep.subr.mxu0 0.0
    %2241 = vmatpush1.msra.mxu0 0.0
    %2242 = vmatprep.subr.mxu0 0.0
    %2243 = vmatpush1.msra.mxu0 0.0
    %2244 = vmatprep.subr.mxu0 0.0
    %2245 = vmatpush1.msra.mxu0 0.0
    %2246 = vmatprep.subr.mxu0 0.0
    %2247 = vmatpush1.msra.mxu0 0.0
    %2248 = vmatprep.subr.mxu0 0.0
    %2249 = vmatpush1.msra.mxu0 0.0
    %2250 = vmatprep.subr.mxu0 0.0
    %2251 = vmatpush1.msra.mxu0 0.0
    %2252 = vmatprep.subr.mxu0 0.0
    %2253 = vmatpush1.msra.mxu0 0.0
    %2254 = vmatprep.subr.mxu0 0.0
    %2255 = vmatpush1.msra.mxu0 0.0
    %2256 = vmatprep.subr.mxu0 0.0
    %2257 = vmatpush1.msra.mxu0 0.0
    %2258 = vmatprep.subr.mxu0 0.0
    %2259 = vmatpush1.msra.mxu0 0.0
    %2260 = vmatprep.subr.mxu0 0.0
    %2261 = vmatpush1.msra.mxu0 0.0
    %2262 = vmatprep.subr.mxu0 0.0
    %2263 = vmatpush1.msra.mxu0 0.0
    %2264 = vmatprep.subr.mxu0 0.0
    %2265 = vmatpush1.msra.mxu0 0.0
    %2266 = vmatprep.subr.mxu0 0.0
    %2267 = vmatpush1.msra.mxu0 0.0
    %2268 = vmatprep.subr.mxu0 0.0
    %2269 = vmatpush1.msra.mxu0 0.0
    %2270 = vmatprep.subr.mxu0 0.0
    %2271 = vmatpush1.msra.mxu0 0.0
    %2272 = vmatprep.subr.mxu0 0.0
    %2273 = vmatpush1.msra.mxu0 0.0
    %2274 = vmatprep.subr.mxu0 0.0
    %2275 = vmatpush1.msra.mxu0 0.0
    %2276 = vmatprep.mubr.f32.mxu0 0.0
    %2277 = vmatmul.mubr.f32.gmra.mrb[0].mxu0 %v2210
    %v2278 = vpop.f32.mrb[0].mxu0
    %v2279 = vadd.f32 0.0, %v2278
    %v2280 = vpop.f32.mrb[0].mxu0
    %v2281 = vadd.f32 0.0, %v2280
    %2282 = vdwg.mxu0
    %2283 = vmatprep.subr.mxu0 %v2202
    %2284 = vmatpush1.msra.mxu0 %v2201
    %2285 = vmatprep.subr.mxu0 %v2206
    %2286 = vmatpush1.msra.mxu0 %v2205
    %2287 = vmatprep.subr.mxu0 0.0
    %2288 = vmatpush1.msra.mxu0 0.0
    %2289 = vmatprep.subr.mxu0 0.0
    %2290 = vmatpush1.msra.mxu0 0.0
    %2291 = vmatprep.subr.mxu0 0.0
    %2292 = vmatpush1.msra.mxu0 0.0
    %2293 = vmatprep.subr.mxu0 0.0
    %2294 = vmatpush1.msra.mxu0 0.0
    %2295 = vmatprep.subr.mxu0 0.0
    %2296 = vmatpush1.msra.mxu0 0.0
    %2297 = vmatprep.subr.mxu0 0.0
    %2298 = vmatpush1.msra.mxu0 0.0
    %2299 = vmatprep.subr.mxu0 0.0
    %2300 = vmatpush1.msra.mxu0 0.0
    %2301 = vmatprep.subr.mxu0 0.0
    %2302 = vmatpush1.msra.mxu0 0.0
    %2303 = vmatprep.subr.mxu0 0.0
    %2304 = vmatpush1.msra.mxu0 0.0
    %2305 = vmatprep.subr.mxu0 0.0
    %2306 = vmatpush1.msra.mxu0 0.0
    %2307 = vmatprep.subr.mxu0 0.0
    %2308 = vmatpush1.msra.mxu0 0.0
    %2309 = vmatprep.subr.mxu0 0.0
    %2310 = vmatpush1.msra.mxu0 0.0
    %2311 = vmatprep.subr.mxu0 0.0
    %2312 = vmatpush1.msra.mxu0 0.0
    %2313 = vmatprep.subr.mxu0 0.0
    %2314 = vmatpush1.msra.mxu0 0.0
    %2315 = vmatprep.subr.mxu0 0.0
    %2316 = vmatpush1.msra.mxu0 0.0
    %2317 = vmatprep.subr.mxu0 0.0
    %2318 = vmatpush1.msra.mxu0 0.0
    %2319 = vmatprep.subr.mxu0 0.0
    %2320 = vmatpush1.msra.mxu0 0.0
    %2321 = vmatprep.subr.mxu0 0.0
    %2322 = vmatpush1.msra.mxu0 0.0
    %2323 = vmatprep.subr.mxu0 0.0
    %2324 = vmatpush1.msra.mxu0 0.0
    %2325 = vmatprep.subr.mxu0 0.0
    %2326 = vmatpush1.msra.mxu0 0.0
    %2327 = vmatprep.subr.mxu0 0.0
    %2328 = vmatpush1.msra.mxu0 0.0
    %2329 = vmatprep.subr.mxu0 0.0
    %2330 = vmatpush1.msra.mxu0 0.0
    %2331 = vmatprep.subr.mxu0 0.0
    %2332 = vmatpush1.msra.mxu0 0.0
    %2333 = vmatprep.subr.mxu0 0.0
    %2334 = vmatpush1.msra.mxu0 0.0
    %2335 = vmatprep.subr.mxu0 0.0
    %2336 = vmatpush1.msra.mxu0 0.0
    %2337 = vmatprep.subr.mxu0 0.0
    %2338 = vmatpush1.msra.mxu0 0.0
    %2339 = vmatprep.subr.mxu0 0.0
    %2340 = vmatpush1.msra.mxu0 0.0
    %2341 = vmatprep.subr.mxu0 0.0
    %2342 = vmatpush1.msra.mxu0 0.0
    %2343 = vmatprep.subr.mxu0 0.0
    %2344 = vmatpush1.msra.mxu0 0.0
    %2345 = vmatprep.subr.mxu0 0.0
    %2346 = vmatpush1.msra.mxu0 0.0
    %2347 = vmatprep.mubr.f32.mxu0 0.0
    %2348 = vmatmul.mubr.f32.gmra.mrb[0].mxu0 %v2210
    %v2349 = vpop.f32.mrb[0].mxu0
    %v2350 = vadd.f32 0.0, %v2349
    %v2351 = vpop.f32.mrb[0].mxu0
    %v2352 = vadd.f32 0.0, %v2351
    %2353 = vdwg.mxu0
    %v2354 = vadd.f32 %v2100, %v2279
    %v2355 = vadd.f32 %v2102, %v2281
    %v2356 = vadd.f32 %v2171, %v2350
    %v2357 = vadd.f32 %v2173, %v2352
    %2358 = vrot.lane.b32.xlu0 %v1841, 15
    %v2359 = vpop.permute.xlu0 %2358
    %2360 = vrot.lane.b32.xlu0 %v1845, 15
    %v2361 = vpop.permute.xlu0 %2360
    %2362 = vrot.lane.b32.xlu0 %v1842, 15
    %v2363 = vpop.permute.xlu0 %2362
    %2364 = vrot.lane.b32.xlu0 %v1846, 15
    %v2365 = vpop.permute.xlu0 %2364
    %2366 = vrot.lane.b32.xlu0 %v1843, 15
    %v2367 = vpop.permute.xlu0 %2366
    %2368 = vrot.lane.b32.xlu0 %v1847, 15
    %v2369 = vpop.permute.xlu0 %2368
    %2370 = vrot.lane.b32.xlu0 %v1844, 15
    %v2371 = vpop.permute.xlu0 %2370
    %2372 = vrot.lane.b32.xlu0 %v1848, 15
    %v2373 = vpop.permute.xlu0 %2372
    %v2374 = vsel %vm605, %v2367, %v2371
    %v2375 = vsel %vm605, %v2369, %v2373
    %v2376 = vsel %vm605, %v2363, %v2367
    %v2377 = vsel %vm605, %v2365, %v2369
    %v2378 = vsel %vm605, %v2359, %v2363
    %v2379 = vsel %vm605, %v2361, %v2365
    %v2380 = vsel %vm605, %v2371, %v2359
    %v2381 = vsel %vm605, %v2373, %v2361
    %v2382 = vmul.f32 %v2380, %v613
    %v2383 = vmul.f32 %v2378, %v617
    %v2384 = vmul.f32 %v2376, %v621
    %v2385 = vmul.f32 %v2374, %v625
    %v2386 = vmul.f32 %v2381, %v613
    %v2387 = vmul.f32 %v2379, %v617
    %v2388 = vmul.f32 %v2377, %v621
    %v2389 = vmul.f32 %v2375, %v625
    %s2390 = scalar_lea.vmem %s4, 16
    %v2391 = vld [vmem:[%s2390] sm:$0xff]
    %v2393 = vsel %vm1884, %v2391, 0
    %2395 = vmatprep.subr.mxu0 %v2383
    %2396 = vmatpush1.msra.mxu0 %v2382
    %2397 = vmatprep.subr.mxu0 %v2387
    %2398 = vmatpush1.msra.mxu0 %v2386
    %2399 = vmatprep.subr.mxu0 0.0
    %2400 = vmatpush1.msra.mxu0 0.0
    %2401 = vmatprep.subr.mxu0 0.0
    %2402 = vmatpush1.msra.mxu0 0.0
    %2403 = vmatprep.subr.mxu0 0.0
    %2404 = vmatpush1.msra.mxu0 0.0
    %2405 = vmatprep.subr.mxu0 0.0
    %2406 = vmatpush1.msra.mxu0 0.0
    %2407 = vmatprep.subr.mxu0 0.0
    %2408 = vmatpush1.msra.mxu0 0.0
    %2409 = vmatprep.subr.mxu0 0.0
    %2410 = vmatpush1.msra.mxu0 0.0
    %2411 = vmatprep.subr.mxu0 0.0
    %2412 = vmatpush1.msra.mxu0 0.0
    %2413 = vmatprep.subr.mxu0 0.0
    %2414 = vmatpush1.msra.mxu0 0.0
    %2415 = vmatprep.subr.mxu0 0.0
    %2416 = vmatpush1.msra.mxu0 0.0
    %2417 = vmatprep.subr.mxu0 0.0
    %2418 = vmatpush1.msra.mxu0 0.0
    %2419 = vmatprep.subr.mxu0 0.0
    %2420 = vmatpush1.msra.mxu0 0.0
    %2421 = vmatprep.subr.mxu0 0.0
    %2422 = vmatpush1.msra.mxu0 0.0
    %2423 = vmatprep.subr.mxu0 0.0
    %2424 = vmatpush1.msra.mxu0 0.0
    %2425 = vmatprep.subr.mxu0 0.0
    %2426 = vmatpush1.msra.mxu0 0.0
    %2427 = vmatprep.subr.mxu0 0.0
    %2428 = vmatpush1.msra.mxu0 0.0
    %2429 = vmatprep.subr.mxu0 0.0
    %2430 = vmatpush1.msra.mxu0 0.0
    %2431 = vmatprep.subr.mxu0 0.0
    %2432 = vmatpush1.msra.mxu0 0.0
    %2433 = vmatprep.subr.mxu0 0.0
    %2434 = vmatpush1.msra.mxu0 0.0
    %2435 = vmatprep.subr.mxu0 0.0
    %2436 = vmatpush1.msra.mxu0 0.0
    %2437 = vmatprep.subr.mxu0 0.0
    %2438 = vmatpush1.msra.mxu0 0.0
    %2439 = vmatprep.subr.mxu0 0.0
    %2440 = vmatpush1.msra.mxu0 0.0
    %2441 = vmatprep.subr.mxu0 0.0
    %2442 = vmatpush1.msra.mxu0 0.0
    %2443 = vmatprep.subr.mxu0 0.0
    %2444 = vmatpush1.msra.mxu0 0.0
    %2445 = vmatprep.subr.mxu0 0.0
    %2446 = vmatpush1.msra.mxu0 0.0
    %2447 = vmatprep.subr.mxu0 0.0
    %2448 = vmatpush1.msra.mxu0 0.0
    %2449 = vmatprep.subr.mxu0 0.0
    %2450 = vmatpush1.msra.mxu0 0.0
    %2451 = vmatprep.subr.mxu0 0.0
    %2452 = vmatpush1.msra.mxu0 0.0
    %2453 = vmatprep.subr.mxu0 0.0
    %2454 = vmatpush1.msra.mxu0 0.0
    %2455 = vmatprep.subr.mxu0 0.0
    %2456 = vmatpush1.msra.mxu0 0.0
    %2457 = vmatprep.subr.mxu0 0.0
    %2458 = vmatpush1.msra.mxu0 0.0
    %2459 = vmatprep.mubr.f32.mxu0 0.0
    %2460 = vmatmul.mubr.f32.gmra.mrb[0].mxu0 %v2393
    %v2461 = vpop.f32.mrb[0].mxu0
    %v2462 = vadd.f32 0.0, %v2461
    %v2463 = vpop.f32.mrb[0].mxu0
    %v2464 = vadd.f32 0.0, %v2463
    %2465 = vdwg.mxu0
    %2466 = vmatprep.subr.mxu0 %v2385
    %2467 = vmatpush1.msra.mxu0 %v2384
    %2468 = vmatprep.subr.mxu0 %v2389
    %2469 = vmatpush1.msra.mxu0 %v2388
    %2470 = vmatprep.subr.mxu0 0.0
    %2471 = vmatpush1.msra.mxu0 0.0
    %2472 = vmatprep.subr.mxu0 0.0
    %2473 = vmatpush1.msra.mxu0 0.0
    %2474 = vmatprep.subr.mxu0 0.0
    %2475 = vmatpush1.msra.mxu0 0.0
    %2476 = vmatprep.subr.mxu0 0.0
    %2477 = vmatpush1.msra.mxu0 0.0
    %2478 = vmatprep.subr.mxu0 0.0
    %2479 = vmatpush1.msra.mxu0 0.0
    %2480 = vmatprep.subr.mxu0 0.0
    %2481 = vmatpush1.msra.mxu0 0.0
    %2482 = vmatprep.subr.mxu0 0.0
    %2483 = vmatpush1.msra.mxu0 0.0
    %2484 = vmatprep.subr.mxu0 0.0
    %2485 = vmatpush1.msra.mxu0 0.0
    %2486 = vmatprep.subr.mxu0 0.0
    %2487 = vmatpush1.msra.mxu0 0.0
    %2488 = vmatprep.subr.mxu0 0.0
    %2489 = vmatpush1.msra.mxu0 0.0
    %2490 = vmatprep.subr.mxu0 0.0
    %2491 = vmatpush1.msra.mxu0 0.0
    %2492 = vmatprep.subr.mxu0 0.0
    %2493 = vmatpush1.msra.mxu0 0.0
    %2494 = vmatprep.subr.mxu0 0.0
    %2495 = vmatpush1.msra.mxu0 0.0
    %2496 = vmatprep.subr.mxu0 0.0
    %2497 = vmatpush1.msra.mxu0 0.0
    %2498 = vmatprep.subr.mxu0 0.0
    %2499 = vmatpush1.msra.mxu0 0.0
    %2500 = vmatprep.subr.mxu0 0.0
    %2501 = vmatpush1.msra.mxu0 0.0
    %2502 = vmatprep.subr.mxu0 0.0
    %2503 = vmatpush1.msra.mxu0 0.0
    %2504 = vmatprep.subr.mxu0 0.0
    %2505 = vmatpush1.msra.mxu0 0.0
    %2506 = vmatprep.subr.mxu0 0.0
    %2507 = vmatpush1.msra.mxu0 0.0
    %2508 = vmatprep.subr.mxu0 0.0
    %2509 = vmatpush1.msra.mxu0 0.0
    %2510 = vmatprep.subr.mxu0 0.0
    %2511 = vmatpush1.msra.mxu0 0.0
    %2512 = vmatprep.subr.mxu0 0.0
    %2513 = vmatpush1.msra.mxu0 0.0
    %2514 = vmatprep.subr.mxu0 0.0
    %2515 = vmatpush1.msra.mxu0 0.0
    %2516 = vmatprep.subr.mxu0 0.0
    %2517 = vmatpush1.msra.mxu0 0.0
    %2518 = vmatprep.subr.mxu0 0.0
    %2519 = vmatpush1.msra.mxu0 0.0
    %2520 = vmatprep.subr.mxu0 0.0
    %2521 = vmatpush1.msra.mxu0 0.0
    %2522 = vmatprep.subr.mxu0 0.0
    %2523 = vmatpush1.msra.mxu0 0.0
    %2524 = vmatprep.subr.mxu0 0.0
    %2525 = vmatpush1.msra.mxu0 0.0
    %2526 = vmatprep.subr.mxu0 0.0
    %2527 = vmatpush1.msra.mxu0 0.0
    %2528 = vmatprep.subr.mxu0 0.0
    %2529 = vmatpush1.msra.mxu0 0.0
    %2530 = vmatprep.mubr.f32.mxu0 0.0
    %2531 = vmatmul.mubr.f32.gmra.mrb[0].mxu0 %v2393
    %v2532 = vpop.f32.mrb[0].mxu0
    %v2533 = vadd.f32 0.0, %v2532
    %v2534 = vpop.f32.mrb[0].mxu0
    %v2535 = vadd.f32 0.0, %v2534
    %2536 = vdwg.mxu0
    %v2537 = vadd.f32 %v2354, %v2462
    %v2538 = vadd.f32 %v2355, %v2464
    %v2539 = vadd.f32 %v2356, %v2533
    %v2540 = vadd.f32 %v2357, %v2535
    %2541 = vrot.lane.b32.xlu0 %v1841, 1
    %v2542 = vpop.permute.xlu0 %2541
    %2543 = vrot.lane.b32.xlu0 %v1845, 1
    %v2544 = vpop.permute.xlu0 %2543
    %2545 = vrot.lane.b32.xlu0 %v1842, 1
    %v2546 = vpop.permute.xlu0 %2545
    %2547 = vrot.lane.b32.xlu0 %v1846, 1
    %v2548 = vpop.permute.xlu0 %2547
    %2549 = vrot.lane.b32.xlu0 %v1843, 1
    %v2550 = vpop.permute.xlu0 %2549
    %2551 = vrot.lane.b32.xlu0 %v1847, 1
    %v2552 = vpop.permute.xlu0 %2551
    %2553 = vrot.lane.b32.xlu0 %v1844, 1
    %v2554 = vpop.permute.xlu0 %2553
    %2555 = vrot.lane.b32.xlu0 %v1848, 1
    %v2556 = vpop.permute.xlu0 %2555
    %v2557 = vsel %vm809, %v2550, %v2554
    %v2558 = vsel %vm809, %v2552, %v2556
    %v2559 = vsel %vm809, %v2546, %v2550
    %v2560 = vsel %vm809, %v2548, %v2552
    %v2561 = vsel %vm809, %v2542, %v2546
    %v2562 = vsel %vm809, %v2544, %v2548
    %v2563 = vsel %vm809, %v2554, %v2542
    %v2564 = vsel %vm809, %v2556, %v2544
    %v2565 = vmul.f32 %v2563, %v817
    %v2566 = vmul.f32 %v2561, %v821
    %v2567 = vmul.f32 %v2559, %v825
    %v2568 = vmul.f32 %v2557, %v829
    %v2569 = vmul.f32 %v2564, %v817
    %v2570 = vmul.f32 %v2562, %v821
    %v2571 = vmul.f32 %v2560, %v825
    %v2572 = vmul.f32 %v2558, %v829
    %s2573 = scalar_lea.vmem %s4, 24
    %v2574 = vld [vmem:[%s2573] sm:$0xff]
    %v2576 = vsel %vm1884, %v2574, 0
    %2578 = vmatprep.subr.mxu0 %v2566
    %2579 = vmatpush1.msra.mxu0 %v2565
    %2580 = vmatprep.subr.mxu0 %v2570
    %2581 = vmatpush1.msra.mxu0 %v2569
    %2582 = vmatprep.subr.mxu0 0.0
    %2583 = vmatpush1.msra.mxu0 0.0
    %2584 = vmatprep.subr.mxu0 0.0
    %2585 = vmatpush1.msra.mxu0 0.0
    %2586 = vmatprep.subr.mxu0 0.0
    %2587 = vmatpush1.msra.mxu0 0.0
    %2588 = vmatprep.subr.mxu0 0.0
    %2589 = vmatpush1.msra.mxu0 0.0
    %2590 = vmatprep.subr.mxu0 0.0
    %2591 = vmatpush1.msra.mxu0 0.0
    %2592 = vmatprep.subr.mxu0 0.0
    %2593 = vmatpush1.msra.mxu0 0.0
    %2594 = vmatprep.subr.mxu0 0.0
    %2595 = vmatpush1.msra.mxu0 0.0
    %2596 = vmatprep.subr.mxu0 0.0
    %2597 = vmatpush1.msra.mxu0 0.0
    %2598 = vmatprep.subr.mxu0 0.0
    %2599 = vmatpush1.msra.mxu0 0.0
    %2600 = vmatprep.subr.mxu0 0.0
    %2601 = vmatpush1.msra.mxu0 0.0
    %2602 = vmatprep.subr.mxu0 0.0
    %2603 = vmatpush1.msra.mxu0 0.0
    %2604 = vmatprep.subr.mxu0 0.0
    %2605 = vmatpush1.msra.mxu0 0.0
    %2606 = vmatprep.subr.mxu0 0.0
    %2607 = vmatpush1.msra.mxu0 0.0
    %2608 = vmatprep.subr.mxu0 0.0
    %2609 = vmatpush1.msra.mxu0 0.0
    %2610 = vmatprep.subr.mxu0 0.0
    %2611 = vmatpush1.msra.mxu0 0.0
    %2612 = vmatprep.subr.mxu0 0.0
    %2613 = vmatpush1.msra.mxu0 0.0
    %2614 = vmatprep.subr.mxu0 0.0
    %2615 = vmatpush1.msra.mxu0 0.0
    %2616 = vmatprep.subr.mxu0 0.0
    %2617 = vmatpush1.msra.mxu0 0.0
    %2618 = vmatprep.subr.mxu0 0.0
    %2619 = vmatpush1.msra.mxu0 0.0
    %2620 = vmatprep.subr.mxu0 0.0
    %2621 = vmatpush1.msra.mxu0 0.0
    %2622 = vmatprep.subr.mxu0 0.0
    %2623 = vmatpush1.msra.mxu0 0.0
    %2624 = vmatprep.subr.mxu0 0.0
    %2625 = vmatpush1.msra.mxu0 0.0
    %2626 = vmatprep.subr.mxu0 0.0
    %2627 = vmatpush1.msra.mxu0 0.0
    %2628 = vmatprep.subr.mxu0 0.0
    %2629 = vmatpush1.msra.mxu0 0.0
    %2630 = vmatprep.subr.mxu0 0.0
    %2631 = vmatpush1.msra.mxu0 0.0
    %2632 = vmatprep.subr.mxu0 0.0
    %2633 = vmatpush1.msra.mxu0 0.0
    %2634 = vmatprep.subr.mxu0 0.0
    %2635 = vmatpush1.msra.mxu0 0.0
    %2636 = vmatprep.subr.mxu0 0.0
    %2637 = vmatpush1.msra.mxu0 0.0
    %2638 = vmatprep.subr.mxu0 0.0
    %2639 = vmatpush1.msra.mxu0 0.0
    %2640 = vmatprep.subr.mxu0 0.0
    %2641 = vmatpush1.msra.mxu0 0.0
    %2642 = vmatprep.mubr.f32.mxu0 0.0
    %2643 = vmatmul.mubr.f32.gmra.mrb[0].mxu0 %v2576
    %v2644 = vpop.f32.mrb[0].mxu0
    %v2645 = vadd.f32 0.0, %v2644
    %v2646 = vpop.f32.mrb[0].mxu0
    %v2647 = vadd.f32 0.0, %v2646
    %2648 = vdwg.mxu0
    %2649 = vmatprep.subr.mxu0 %v2568
    %2650 = vmatpush1.msra.mxu0 %v2567
    %2651 = vmatprep.subr.mxu0 %v2572
    %2652 = vmatpush1.msra.mxu0 %v2571
    %2653 = vmatprep.subr.mxu0 0.0
    %2654 = vmatpush1.msra.mxu0 0.0
    %2655 = vmatprep.subr.mxu0 0.0
    %2656 = vmatpush1.msra.mxu0 0.0
    %2657 = vmatprep.subr.mxu0 0.0
    %2658 = vmatpush1.msra.mxu0 0.0
    %2659 = vmatprep.subr.mxu0 0.0
    %2660 = vmatpush1.msra.mxu0 0.0
    %2661 = vmatprep.subr.mxu0 0.0
    %2662 = vmatpush1.msra.mxu0 0.0
    %2663 = vmatprep.subr.mxu0 0.0
    %2664 = vmatpush1.msra.mxu0 0.0
    %2665 = vmatprep.subr.mxu0 0.0
    %2666 = vmatpush1.msra.mxu0 0.0
    %2667 = vmatprep.subr.mxu0 0.0
    %2668 = vmatpush1.msra.mxu0 0.0
    %2669 = vmatprep.subr.mxu0 0.0
    %2670 = vmatpush1.msra.mxu0 0.0
    %2671 = vmatprep.subr.mxu0 0.0
    %2672 = vmatpush1.msra.mxu0 0.0
    %2673 = vmatprep.subr.mxu0 0.0
    %2674 = vmatpush1.msra.mxu0 0.0
    %2675 = vmatprep.subr.mxu0 0.0
    %2676 = vmatpush1.msra.mxu0 0.0
    %2677 = vmatprep.subr.mxu0 0.0
    %2678 = vmatpush1.msra.mxu0 0.0
    %2679 = vmatprep.subr.mxu0 0.0
    %2680 = vmatpush1.msra.mxu0 0.0
    %2681 = vmatprep.subr.mxu0 0.0
    %2682 = vmatpush1.msra.mxu0 0.0
    %2683 = vmatprep.subr.mxu0 0.0
    %2684 = vmatpush1.msra.mxu0 0.0
    %2685 = vmatprep.subr.mxu0 0.0
    %2686 = vmatpush1.msra.mxu0 0.0
    %2687 = vmatprep.subr.mxu0 0.0
    %2688 = vmatpush1.msra.mxu0 0.0
    %2689 = vmatprep.subr.mxu0 0.0
    %2690 = vmatpush1.msra.mxu0 0.0
    %2691 = vmatprep.subr.mxu0 0.0
    %2692 = vmatpush1.msra.mxu0 0.0
    %2693 = vmatprep.subr.mxu0 0.0
    %2694 = vmatpush1.msra.mxu0 0.0
    %2695 = vmatprep.subr.mxu0 0.0
    %2696 = vmatpush1.msra.mxu0 0.0
    %2697 = vmatprep.subr.mxu0 0.0
    %2698 = vmatpush1.msra.mxu0 0.0
    %2699 = vmatprep.subr.mxu0 0.0
    %2700 = vmatpush1.msra.mxu0 0.0
    %2701 = vmatprep.subr.mxu0 0.0
    %2702 = vmatpush1.msra.mxu0 0.0
    %2703 = vmatprep.subr.mxu0 0.0
    %2704 = vmatpush1.msra.mxu0 0.0
    %2705 = vmatprep.subr.mxu0 0.0
    %2706 = vmatpush1.msra.mxu0 0.0
    %2707 = vmatprep.subr.mxu0 0.0
    %2708 = vmatpush1.msra.mxu0 0.0
    %2709 = vmatprep.subr.mxu0 0.0
    %2710 = vmatpush1.msra.mxu0 0.0
    %2711 = vmatprep.subr.mxu0 0.0
    %2712 = vmatpush1.msra.mxu0 0.0
    %2713 = vmatprep.mubr.f32.mxu0 0.0
    %2714 = vmatmul.mubr.f32.gmra.mrb[0].mxu0 %v2576
    %v2715 = vpop.f32.mrb[0].mxu0
    %v2716 = vadd.f32 0.0, %v2715
    %v2717 = vpop.f32.mrb[0].mxu0
    %v2718 = vadd.f32 0.0, %v2717
    %2719 = vdwg.mxu0
    %v2720 = vadd.f32 %v2537, %v2645
    %v2721 = vadd.f32 %v2538, %v2647
    %v2722 = vadd.f32 %v2539, %v2716
    %v2723 = vadd.f32 %v2540, %v2718
    %2724 = vrot.lane.b32.xlu0 %v1841, 127
    %v2725 = vpop.permute.xlu0 %2724
    %2726 = vrot.lane.b32.xlu0 %v1845, 127
    %v2727 = vpop.permute.xlu0 %2726
    %2728 = vrot.lane.b32.xlu0 %v1842, 127
    %v2729 = vpop.permute.xlu0 %2728
    %2730 = vrot.lane.b32.xlu0 %v1846, 127
    %v2731 = vpop.permute.xlu0 %2730
    %2732 = vrot.lane.b32.xlu0 %v1843, 127
    %v2733 = vpop.permute.xlu0 %2732
    %2734 = vrot.lane.b32.xlu0 %v1847, 127
    %v2735 = vpop.permute.xlu0 %2734
    %2736 = vrot.lane.b32.xlu0 %v1844, 127
    %v2737 = vpop.permute.xlu0 %2736
    %2738 = vrot.lane.b32.xlu0 %v1848, 127
    %v2739 = vpop.permute.xlu0 %2738
    %v2740 = vsel %vm1013, %v2733, %v2737
    %v2741 = vsel %vm1013, %v2735, %v2739
    %v2742 = vsel %vm1013, %v2729, %v2733
    %v2743 = vsel %vm1013, %v2731, %v2735
    %v2744 = vsel %vm1013, %v2725, %v2729
    %v2745 = vsel %vm1013, %v2727, %v2731
    %v2746 = vsel %vm1013, %v2737, %v2725
    %v2747 = vsel %vm1013, %v2739, %v2727
    %v2748 = vmul.f32 %v2744, %v1021
    %v2749 = vmul.f32 %v2742, %v1025
    %v2750 = vmul.f32 %v2740, %v1029
    %v2751 = vmul.f32 %v2746, %v1033
    %v2752 = vmul.f32 %v2745, %v1021
    %v2753 = vmul.f32 %v2743, %v1025
    %v2754 = vmul.f32 %v2741, %v1029
    %v2755 = vmul.f32 %v2747, %v1033
    %s2756 = scalar_lea.vmem %s4, 40
    %v2757 = vld [vmem:[%s2756] sm:$0xff]
    %v2759 = vsel %vm1884, %v2757, 0
    %2761 = vmatprep.subr.mxu0 %v2749
    %2762 = vmatpush1.msra.mxu0 %v2748
    %2763 = vmatprep.subr.mxu0 %v2753
    %2764 = vmatpush1.msra.mxu0 %v2752
    %2765 = vmatprep.subr.mxu0 0.0
    %2766 = vmatpush1.msra.mxu0 0.0
    %2767 = vmatprep.subr.mxu0 0.0
    %2768 = vmatpush1.msra.mxu0 0.0
    %2769 = vmatprep.subr.mxu0 0.0
    %2770 = vmatpush1.msra.mxu0 0.0
    %2771 = vmatprep.subr.mxu0 0.0
    %2772 = vmatpush1.msra.mxu0 0.0
    %2773 = vmatprep.subr.mxu0 0.0
    %2774 = vmatpush1.msra.mxu0 0.0
    %2775 = vmatprep.subr.mxu0 0.0
    %2776 = vmatpush1.msra.mxu0 0.0
    %2777 = vmatprep.subr.mxu0 0.0
    %2778 = vmatpush1.msra.mxu0 0.0
    %2779 = vmatprep.subr.mxu0 0.0
    %2780 = vmatpush1.msra.mxu0 0.0
    %2781 = vmatprep.subr.mxu0 0.0
    %2782 = vmatpush1.msra.mxu0 0.0
    %2783 = vmatprep.subr.mxu0 0.0
    %2784 = vmatpush1.msra.mxu0 0.0
    %2785 = vmatprep.subr.mxu0 0.0
    %2786 = vmatpush1.msra.mxu0 0.0
    %2787 = vmatprep.subr.mxu0 0.0
    %2788 = vmatpush1.msra.mxu0 0.0
    %2789 = vmatprep.subr.mxu0 0.0
    %2790 = vmatpush1.msra.mxu0 0.0
    %2791 = vmatprep.subr.mxu0 0.0
    %2792 = vmatpush1.msra.mxu0 0.0
    %2793 = vmatprep.subr.mxu0 0.0
    %2794 = vmatpush1.msra.mxu0 0.0
    %2795 = vmatprep.subr.mxu0 0.0
    %2796 = vmatpush1.msra.mxu0 0.0
    %2797 = vmatprep.subr.mxu0 0.0
    %2798 = vmatpush1.msra.mxu0 0.0
    %2799 = vmatprep.subr.mxu0 0.0
    %2800 = vmatpush1.msra.mxu0 0.0
    %2801 = vmatprep.subr.mxu0 0.0
    %2802 = vmatpush1.msra.mxu0 0.0
    %2803 = vmatprep.subr.mxu0 0.0
    %2804 = vmatpush1.msra.mxu0 0.0
    %2805 = vmatprep.subr.mxu0 0.0
    %2806 = vmatpush1.msra.mxu0 0.0
    %2807 = vmatprep.subr.mxu0 0.0
    %2808 = vmatpush1.msra.mxu0 0.0
    %2809 = vmatprep.subr.mxu0 0.0
    %2810 = vmatpush1.msra.mxu0 0.0
    %2811 = vmatprep.subr.mxu0 0.0
    %2812 = vmatpush1.msra.mxu0 0.0
    %2813 = vmatprep.subr.mxu0 0.0
    %2814 = vmatpush1.msra.mxu0 0.0
    %2815 = vmatprep.subr.mxu0 0.0
    %2816 = vmatpush1.msra.mxu0 0.0
    %2817 = vmatprep.subr.mxu0 0.0
    %2818 = vmatpush1.msra.mxu0 0.0
    %2819 = vmatprep.subr.mxu0 0.0
    %2820 = vmatpush1.msra.mxu0 0.0
    %2821 = vmatprep.subr.mxu0 0.0
    %2822 = vmatpush1.msra.mxu0 0.0
    %2823 = vmatprep.subr.mxu0 0.0
    %2824 = vmatpush1.msra.mxu0 0.0
    %2825 = vmatprep.mubr.f32.mxu0 0.0
    %2826 = vmatmul.mubr.f32.gmra.mrb[0].mxu0 %v2759
    %v2827 = vpop.f32.mrb[0].mxu0
    %v2828 = vadd.f32 0.0, %v2827
    %v2829 = vpop.f32.mrb[0].mxu0
    %v2830 = vadd.f32 0.0, %v2829
    %2831 = vdwg.mxu0
    %2832 = vmatprep.subr.mxu0 %v2751
    %2833 = vmatpush1.msra.mxu0 %v2750
    %2834 = vmatprep.subr.mxu0 %v2755
    %2835 = vmatpush1.msra.mxu0 %v2754
    %2836 = vmatprep.subr.mxu0 0.0
    %2837 = vmatpush1.msra.mxu0 0.0
    %2838 = vmatprep.subr.mxu0 0.0
    %2839 = vmatpush1.msra.mxu0 0.0
    %2840 = vmatprep.subr.mxu0 0.0
    %2841 = vmatpush1.msra.mxu0 0.0
    %2842 = vmatprep.subr.mxu0 0.0
    %2843 = vmatpush1.msra.mxu0 0.0
    %2844 = vmatprep.subr.mxu0 0.0
    %2845 = vmatpush1.msra.mxu0 0.0
    %2846 = vmatprep.subr.mxu0 0.0
    %2847 = vmatpush1.msra.mxu0 0.0
    %2848 = vmatprep.subr.mxu0 0.0
    %2849 = vmatpush1.msra.mxu0 0.0
    %2850 = vmatprep.subr.mxu0 0.0
    %2851 = vmatpush1.msra.mxu0 0.0
    %2852 = vmatprep.subr.mxu0 0.0
    %2853 = vmatpush1.msra.mxu0 0.0
    %2854 = vmatprep.subr.mxu0 0.0
    %2855 = vmatpush1.msra.mxu0 0.0
    %2856 = vmatprep.subr.mxu0 0.0
    %2857 = vmatpush1.msra.mxu0 0.0
    %2858 = vmatprep.subr.mxu0 0.0
    %2859 = vmatpush1.msra.mxu0 0.0
    %2860 = vmatprep.subr.mxu0 0.0
    %2861 = vmatpush1.msra.mxu0 0.0
    %2862 = vmatprep.subr.mxu0 0.0
    %2863 = vmatpush1.msra.mxu0 0.0
    %2864 = vmatprep.subr.mxu0 0.0
    %2865 = vmatpush1.msra.mxu0 0.0
    %2866 = vmatprep.subr.mxu0 0.0
    %2867 = vmatpush1.msra.mxu0 0.0
    %2868 = vmatprep.subr.mxu0 0.0
    %2869 = vmatpush1.msra.mxu0 0.0
    %2870 = vmatprep.subr.mxu0 0.0
    %2871 = vmatpush1.msra.mxu0 0.0
    %2872 = vmatprep.subr.mxu0 0.0
    %2873 = vmatpush1.msra.mxu0 0.0
    %2874 = vmatprep.subr.mxu0 0.0
    %2875 = vmatpush1.msra.mxu0 0.0
    %2876 = vmatprep.subr.mxu0 0.0
    %2877 = vmatpush1.msra.mxu0 0.0
    %2878 = vmatprep.subr.mxu0 0.0
    %2879 = vmatpush1.msra.mxu0 0.0
    %2880 = vmatprep.subr.mxu0 0.0
    %2881 = vmatpush1.msra.mxu0 0.0
    %2882 = vmatprep.subr.mxu0 0.0
    %2883 = vmatpush1.msra.mxu0 0.0
    %2884 = vmatprep.subr.mxu0 0.0
    %2885 = vmatpush1.msra.mxu0 0.0
    %2886 = vmatprep.subr.mxu0 0.0
    %2887 = vmatpush1.msra.mxu0 0.0
    %2888 = vmatprep.subr.mxu0 0.0
    %2889 = vmatpush1.msra.mxu0 0.0
    %2890 = vmatprep.subr.mxu0 0.0
    %2891 = vmatpush1.msra.mxu0 0.0
    %2892 = vmatprep.subr.mxu0 0.0
    %2893 = vmatpush1.msra.mxu0 0.0
    %2894 = vmatprep.subr.mxu0 0.0
    %2895 = vmatpush1.msra.mxu0 0.0
    %2896 = vmatprep.mubr.f32.mxu0 0.0
    %2897 = vmatmul.mubr.f32.gmra.mrb[0].mxu0 %v2759
    %v2898 = vpop.f32.mrb[0].mxu0
    %v2899 = vadd.f32 0.0, %v2898
    %v2900 = vpop.f32.mrb[0].mxu0
    %v2901 = vadd.f32 0.0, %v2900
    %2902 = vdwg.mxu0
    %v2903 = vadd.f32 %v2720, %v2828
    %v2904 = vadd.f32 %v2721, %v2830
    %v2905 = vadd.f32 %v2722, %v2899
    %v2906 = vadd.f32 %v2723, %v2901
    %2907 = vrot.lane.b32.xlu0 %v1841, 113
    %v2908 = vpop.permute.xlu0 %2907
    %2909 = vrot.lane.b32.xlu0 %v1845, 113
    %v2910 = vpop.permute.xlu0 %2909
    %2911 = vrot.lane.b32.xlu0 %v1842, 113
    %v2912 = vpop.permute.xlu0 %2911
    %2913 = vrot.lane.b32.xlu0 %v1846, 113
    %v2914 = vpop.permute.xlu0 %2913
    %2915 = vrot.lane.b32.xlu0 %v1843, 113
    %v2916 = vpop.permute.xlu0 %2915
    %2917 = vrot.lane.b32.xlu0 %v1847, 113
    %v2918 = vpop.permute.xlu0 %2917
    %2919 = vrot.lane.b32.xlu0 %v1844, 113
    %v2920 = vpop.permute.xlu0 %2919
    %2921 = vrot.lane.b32.xlu0 %v1848, 113
    %v2922 = vpop.permute.xlu0 %2921
    %v2923 = vsel %vm1217, %v2916, %v2920
    %v2924 = vsel %vm1217, %v2918, %v2922
    %v2925 = vsel %vm1217, %v2912, %v2916
    %v2926 = vsel %vm1217, %v2914, %v2918
    %v2927 = vsel %vm1217, %v2908, %v2912
    %v2928 = vsel %vm1217, %v2910, %v2914
    %v2929 = vsel %vm1217, %v2920, %v2908
    %v2930 = vsel %vm1217, %v2922, %v2910
    %v2931 = vmul.f32 %v2927, %v1225
    %v2932 = vmul.f32 %v2925, %v1229
    %v2933 = vmul.f32 %v2923, %v1233
    %v2934 = vmul.f32 %v2929, %v1237
    %v2935 = vmul.f32 %v2928, %v1225
    %v2936 = vmul.f32 %v2926, %v1229
    %v2937 = vmul.f32 %v2924, %v1233
    %v2938 = vmul.f32 %v2930, %v1237
    %s2939 = scalar_lea.vmem %s4, 48
    %v2940 = vld [vmem:[%s2939] sm:$0xff]
    %v2942 = vsel %vm1884, %v2940, 0
    %2944 = vmatprep.subr.mxu0 %v2932
    %2945 = vmatpush1.msra.mxu0 %v2931
    %2946 = vmatprep.subr.mxu0 %v2936
    %2947 = vmatpush1.msra.mxu0 %v2935
    %2948 = vmatprep.subr.mxu0 0.0
    %2949 = vmatpush1.msra.mxu0 0.0
    %2950 = vmatprep.subr.mxu0 0.0
    %2951 = vmatpush1.msra.mxu0 0.0
    %2952 = vmatprep.subr.mxu0 0.0
    %2953 = vmatpush1.msra.mxu0 0.0
    %2954 = vmatprep.subr.mxu0 0.0
    %2955 = vmatpush1.msra.mxu0 0.0
    %2956 = vmatprep.subr.mxu0 0.0
    %2957 = vmatpush1.msra.mxu0 0.0
    %2958 = vmatprep.subr.mxu0 0.0
    %2959 = vmatpush1.msra.mxu0 0.0
    %2960 = vmatprep.subr.mxu0 0.0
    %2961 = vmatpush1.msra.mxu0 0.0
    %2962 = vmatprep.subr.mxu0 0.0
    %2963 = vmatpush1.msra.mxu0 0.0
    %2964 = vmatprep.subr.mxu0 0.0
    %2965 = vmatpush1.msra.mxu0 0.0
    %2966 = vmatprep.subr.mxu0 0.0
    %2967 = vmatpush1.msra.mxu0 0.0
    %2968 = vmatprep.subr.mxu0 0.0
    %2969 = vmatpush1.msra.mxu0 0.0
    %2970 = vmatprep.subr.mxu0 0.0
    %2971 = vmatpush1.msra.mxu0 0.0
    %2972 = vmatprep.subr.mxu0 0.0
    %2973 = vmatpush1.msra.mxu0 0.0
    %2974 = vmatprep.subr.mxu0 0.0
    %2975 = vmatpush1.msra.mxu0 0.0
    %2976 = vmatprep.subr.mxu0 0.0
    %2977 = vmatpush1.msra.mxu0 0.0
    %2978 = vmatprep.subr.mxu0 0.0
    %2979 = vmatpush1.msra.mxu0 0.0
    %2980 = vmatprep.subr.mxu0 0.0
    %2981 = vmatpush1.msra.mxu0 0.0
    %2982 = vmatprep.subr.mxu0 0.0
    %2983 = vmatpush1.msra.mxu0 0.0
    %2984 = vmatprep.subr.mxu0 0.0
    %2985 = vmatpush1.msra.mxu0 0.0
    %2986 = vmatprep.subr.mxu0 0.0
    %2987 = vmatpush1.msra.mxu0 0.0
    %2988 = vmatprep.subr.mxu0 0.0
    %2989 = vmatpush1.msra.mxu0 0.0
    %2990 = vmatprep.subr.mxu0 0.0
    %2991 = vmatpush1.msra.mxu0 0.0
    %2992 = vmatprep.subr.mxu0 0.0
    %2993 = vmatpush1.msra.mxu0 0.0
    %2994 = vmatprep.subr.mxu0 0.0
    %2995 = vmatpush1.msra.mxu0 0.0
    %2996 = vmatprep.subr.mxu0 0.0
    %2997 = vmatpush1.msra.mxu0 0.0
    %2998 = vmatprep.subr.mxu0 0.0
    %2999 = vmatpush1.msra.mxu0 0.0
    %3000 = vmatprep.subr.mxu0 0.0
    %3001 = vmatpush1.msra.mxu0 0.0
    %3002 = vmatprep.subr.mxu0 0.0
    %3003 = vmatpush1.msra.mxu0 0.0
    %3004 = vmatprep.subr.mxu0 0.0
    %3005 = vmatpush1.msra.mxu0 0.0
    %3006 = vmatprep.subr.mxu0 0.0
    %3007 = vmatpush1.msra.mxu0 0.0
    %3008 = vmatprep.mubr.f32.mxu0 0.0
    %3009 = vmatmul.mubr.f32.gmra.mrb[0].mxu0 %v2942
    %v3010 = vpop.f32.mrb[0].mxu0
    %v3011 = vadd.f32 0.0, %v3010
    %v3012 = vpop.f32.mrb[0].mxu0
    %v3013 = vadd.f32 0.0, %v3012
    %3014 = vdwg.mxu0
    %3015 = vmatprep.subr.mxu0 %v2934
    %3016 = vmatpush1.msra.mxu0 %v2933
    %3017 = vmatprep.subr.mxu0 %v2938
    %3018 = vmatpush1.msra.mxu0 %v2937
    %3019 = vmatprep.subr.mxu0 0.0
    %3020 = vmatpush1.msra.mxu0 0.0
    %3021 = vmatprep.subr.mxu0 0.0
    %3022 = vmatpush1.msra.mxu0 0.0
    %3023 = vmatprep.subr.mxu0 0.0
    %3024 = vmatpush1.msra.mxu0 0.0
    %3025 = vmatprep.subr.mxu0 0.0
    %3026 = vmatpush1.msra.mxu0 0.0
    %3027 = vmatprep.subr.mxu0 0.0
    %3028 = vmatpush1.msra.mxu0 0.0
    %3029 = vmatprep.subr.mxu0 0.0
    %3030 = vmatpush1.msra.mxu0 0.0
    %3031 = vmatprep.subr.mxu0 0.0
    %3032 = vmatpush1.msra.mxu0 0.0
    %3033 = vmatprep.subr.mxu0 0.0
    %3034 = vmatpush1.msra.mxu0 0.0
    %3035 = vmatprep.subr.mxu0 0.0
    %3036 = vmatpush1.msra.mxu0 0.0
    %3037 = vmatprep.subr.mxu0 0.0
    %3038 = vmatpush1.msra.mxu0 0.0
    %3039 = vmatprep.subr.mxu0 0.0
    %3040 = vmatpush1.msra.mxu0 0.0
    %3041 = vmatprep.subr.mxu0 0.0
    %3042 = vmatpush1.msra.mxu0 0.0
    %3043 = vmatprep.subr.mxu0 0.0
    %3044 = vmatpush1.msra.mxu0 0.0
    %3045 = vmatprep.subr.mxu0 0.0
    %3046 = vmatpush1.msra.mxu0 0.0
    %3047 = vmatprep.subr.mxu0 0.0
    %3048 = vmatpush1.msra.mxu0 0.0
    %3049 = vmatprep.subr.mxu0 0.0
    %3050 = vmatpush1.msra.mxu0 0.0
    %3051 = vmatprep.subr.mxu0 0.0
    %3052 = vmatpush1.msra.mxu0 0.0
    %3053 = vmatprep.subr.mxu0 0.0
    %3054 = vmatpush1.msra.mxu0 0.0
    %3055 = vmatprep.subr.mxu0 0.0
    %3056 = vmatpush1.msra.mxu0 0.0
    %3057 = vmatprep.subr.mxu0 0.0
    %3058 = vmatpush1.msra.mxu0 0.0
    %3059 = vmatprep.subr.mxu0 0.0
    %3060 = vmatpush1.msra.mxu0 0.0
    %3061 = vmatprep.subr.mxu0 0.0
    %3062 = vmatpush1.msra.mxu0 0.0
    %3063 = vmatprep.subr.mxu0 0.0
    %3064 = vmatpush1.msra.mxu0 0.0
    %3065 = vmatprep.subr.mxu0 0.0
    %3066 = vmatpush1.msra.mxu0 0.0
    %3067 = vmatprep.subr.mxu0 0.0
    %3068 = vmatpush1.msra.mxu0 0.0
    %3069 = vmatprep.subr.mxu0 0.0
    %3070 = vmatpush1.msra.mxu0 0.0
    %3071 = vmatprep.subr.mxu0 0.0
    %3072 = vmatpush1.msra.mxu0 0.0
    %3073 = vmatprep.subr.mxu0 0.0
    %3074 = vmatpush1.msra.mxu0 0.0
    %3075 = vmatprep.subr.mxu0 0.0
    %3076 = vmatpush1.msra.mxu0 0.0
    %3077 = vmatprep.subr.mxu0 0.0
    %3078 = vmatpush1.msra.mxu0 0.0
    %3079 = vmatprep.mubr.f32.mxu0 0.0
    %3080 = vmatmul.mubr.f32.gmra.mrb[0].mxu0 %v2942
    %v3081 = vpop.f32.mrb[0].mxu0
    %v3082 = vadd.f32 0.0, %v3081
    %v3083 = vpop.f32.mrb[0].mxu0
    %v3084 = vadd.f32 0.0, %v3083
    %3085 = vdwg.mxu0
    %v3086 = vadd.f32 %v2903, %v3011
    %v3087 = vadd.f32 %v2904, %v3013
    %v3088 = vadd.f32 %v2905, %v3082
    %v3089 = vadd.f32 %v2906, %v3084
    %3090 = vrot.lane.b32.xlu0 %v1841, 112
    %v3091 = vpop.permute.xlu0 %3090
    %3092 = vrot.lane.b32.xlu0 %v1845, 112
    %v3093 = vpop.permute.xlu0 %3092
    %3094 = vrot.lane.b32.xlu0 %v1842, 112
    %v3095 = vpop.permute.xlu0 %3094
    %3096 = vrot.lane.b32.xlu0 %v1846, 112
    %v3097 = vpop.permute.xlu0 %3096
    %3098 = vrot.lane.b32.xlu0 %v1843, 112
    %v3099 = vpop.permute.xlu0 %3098
    %3100 = vrot.lane.b32.xlu0 %v1847, 112
    %v3101 = vpop.permute.xlu0 %3100
    %3102 = vrot.lane.b32.xlu0 %v1844, 112
    %v3103 = vpop.permute.xlu0 %3102
    %3104 = vrot.lane.b32.xlu0 %v1848, 112
    %v3105 = vpop.permute.xlu0 %3104
    %v3106 = vsel %vm1421, %v3099, %v3103
    %v3107 = vsel %vm1421, %v3101, %v3105
    %v3108 = vsel %vm1421, %v3095, %v3099
    %v3109 = vsel %vm1421, %v3097, %v3101
    %v3110 = vsel %vm1421, %v3091, %v3095
    %v3111 = vsel %vm1421, %v3093, %v3097
    %v3112 = vsel %vm1421, %v3103, %v3091
    %v3113 = vsel %vm1421, %v3105, %v3093
    %v3114 = vmul.f32 %v3110, %v1429
    %v3115 = vmul.f32 %v3108, %v1433
    %v3116 = vmul.f32 %v3106, %v1437
    %v3117 = vmul.f32 %v3112, %v1441
    %v3118 = vmul.f32 %v3111, %v1429
    %v3119 = vmul.f32 %v3109, %v1433
    %v3120 = vmul.f32 %v3107, %v1437
    %v3121 = vmul.f32 %v3113, %v1441
    %s3122 = scalar_lea.vmem %s4, 56
    %v3123 = vld [vmem:[%s3122] sm:$0xff]
    %v3125 = vsel %vm1884, %v3123, 0
    %3127 = vmatprep.subr.mxu0 %v3115
    %3128 = vmatpush1.msra.mxu0 %v3114
    %3129 = vmatprep.subr.mxu0 %v3119
    %3130 = vmatpush1.msra.mxu0 %v3118
    %3131 = vmatprep.subr.mxu0 0.0
    %3132 = vmatpush1.msra.mxu0 0.0
    %3133 = vmatprep.subr.mxu0 0.0
    %3134 = vmatpush1.msra.mxu0 0.0
    %3135 = vmatprep.subr.mxu0 0.0
    %3136 = vmatpush1.msra.mxu0 0.0
    %3137 = vmatprep.subr.mxu0 0.0
    %3138 = vmatpush1.msra.mxu0 0.0
    %3139 = vmatprep.subr.mxu0 0.0
    %3140 = vmatpush1.msra.mxu0 0.0
    %3141 = vmatprep.subr.mxu0 0.0
    %3142 = vmatpush1.msra.mxu0 0.0
    %3143 = vmatprep.subr.mxu0 0.0
    %3144 = vmatpush1.msra.mxu0 0.0
    %3145 = vmatprep.subr.mxu0 0.0
    %3146 = vmatpush1.msra.mxu0 0.0
    %3147 = vmatprep.subr.mxu0 0.0
    %3148 = vmatpush1.msra.mxu0 0.0
    %3149 = vmatprep.subr.mxu0 0.0
    %3150 = vmatpush1.msra.mxu0 0.0
    %3151 = vmatprep.subr.mxu0 0.0
    %3152 = vmatpush1.msra.mxu0 0.0
    %3153 = vmatprep.subr.mxu0 0.0
    %3154 = vmatpush1.msra.mxu0 0.0
    %3155 = vmatprep.subr.mxu0 0.0
    %3156 = vmatpush1.msra.mxu0 0.0
    %3157 = vmatprep.subr.mxu0 0.0
    %3158 = vmatpush1.msra.mxu0 0.0
    %3159 = vmatprep.subr.mxu0 0.0
    %3160 = vmatpush1.msra.mxu0 0.0
    %3161 = vmatprep.subr.mxu0 0.0
    %3162 = vmatpush1.msra.mxu0 0.0
    %3163 = vmatprep.subr.mxu0 0.0
    %3164 = vmatpush1.msra.mxu0 0.0
    %3165 = vmatprep.subr.mxu0 0.0
    %3166 = vmatpush1.msra.mxu0 0.0
    %3167 = vmatprep.subr.mxu0 0.0
    %3168 = vmatpush1.msra.mxu0 0.0
    %3169 = vmatprep.subr.mxu0 0.0
    %3170 = vmatpush1.msra.mxu0 0.0
    %3171 = vmatprep.subr.mxu0 0.0
    %3172 = vmatpush1.msra.mxu0 0.0
    %3173 = vmatprep.subr.mxu0 0.0
    %3174 = vmatpush1.msra.mxu0 0.0
    %3175 = vmatprep.subr.mxu0 0.0
    %3176 = vmatpush1.msra.mxu0 0.0
    %3177 = vmatprep.subr.mxu0 0.0
    %3178 = vmatpush1.msra.mxu0 0.0
    %3179 = vmatprep.subr.mxu0 0.0
    %3180 = vmatpush1.msra.mxu0 0.0
    %3181 = vmatprep.subr.mxu0 0.0
    %3182 = vmatpush1.msra.mxu0 0.0
    %3183 = vmatprep.subr.mxu0 0.0
    %3184 = vmatpush1.msra.mxu0 0.0
    %3185 = vmatprep.subr.mxu0 0.0
    %3186 = vmatpush1.msra.mxu0 0.0
    %3187 = vmatprep.subr.mxu0 0.0
    %3188 = vmatpush1.msra.mxu0 0.0
    %3189 = vmatprep.subr.mxu0 0.0
    %3190 = vmatpush1.msra.mxu0 0.0
    %3191 = vmatprep.mubr.f32.mxu0 0.0
    %3192 = vmatmul.mubr.f32.gmra.mrb[0].mxu0 %v3125
    %v3193 = vpop.f32.mrb[0].mxu0
    %v3194 = vadd.f32 0.0, %v3193
    %v3195 = vpop.f32.mrb[0].mxu0
    %v3196 = vadd.f32 0.0, %v3195
    %3197 = vdwg.mxu0
    %3198 = vmatprep.subr.mxu0 %v3117
    %3199 = vmatpush1.msra.mxu0 %v3116
    %3200 = vmatprep.subr.mxu0 %v3121
    %3201 = vmatpush1.msra.mxu0 %v3120
    %3202 = vmatprep.subr.mxu0 0.0
    %3203 = vmatpush1.msra.mxu0 0.0
    %3204 = vmatprep.subr.mxu0 0.0
    %3205 = vmatpush1.msra.mxu0 0.0
    %3206 = vmatprep.subr.mxu0 0.0
    %3207 = vmatpush1.msra.mxu0 0.0
    %3208 = vmatprep.subr.mxu0 0.0
    %3209 = vmatpush1.msra.mxu0 0.0
    %3210 = vmatprep.subr.mxu0 0.0
    %3211 = vmatpush1.msra.mxu0 0.0
    %3212 = vmatprep.subr.mxu0 0.0
    %3213 = vmatpush1.msra.mxu0 0.0
    %3214 = vmatprep.subr.mxu0 0.0
    %3215 = vmatpush1.msra.mxu0 0.0
    %3216 = vmatprep.subr.mxu0 0.0
    %3217 = vmatpush1.msra.mxu0 0.0
    %3218 = vmatprep.subr.mxu0 0.0
    %3219 = vmatpush1.msra.mxu0 0.0
    %3220 = vmatprep.subr.mxu0 0.0
    %3221 = vmatpush1.msra.mxu0 0.0
    %3222 = vmatprep.subr.mxu0 0.0
    %3223 = vmatpush1.msra.mxu0 0.0
    %3224 = vmatprep.subr.mxu0 0.0
    %3225 = vmatpush1.msra.mxu0 0.0
    %3226 = vmatprep.subr.mxu0 0.0
    %3227 = vmatpush1.msra.mxu0 0.0
    %3228 = vmatprep.subr.mxu0 0.0
    %3229 = vmatpush1.msra.mxu0 0.0
    %3230 = vmatprep.subr.mxu0 0.0
    %3231 = vmatpush1.msra.mxu0 0.0
    %3232 = vmatprep.subr.mxu0 0.0
    %3233 = vmatpush1.msra.mxu0 0.0
    %3234 = vmatprep.subr.mxu0 0.0
    %3235 = vmatpush1.msra.mxu0 0.0
    %3236 = vmatprep.subr.mxu0 0.0
    %3237 = vmatpush1.msra.mxu0 0.0
    %3238 = vmatprep.subr.mxu0 0.0
    %3239 = vmatpush1.msra.mxu0 0.0
    %3240 = vmatprep.subr.mxu0 0.0
    %3241 = vmatpush1.msra.mxu0 0.0
    %3242 = vmatprep.subr.mxu0 0.0
    %3243 = vmatpush1.msra.mxu0 0.0
    %3244 = vmatprep.subr.mxu0 0.0
    %3245 = vmatpush1.msra.mxu0 0.0
    %3246 = vmatprep.subr.mxu0 0.0
    %3247 = vmatpush1.msra.mxu0 0.0
    %3248 = vmatprep.subr.mxu0 0.0
    %3249 = vmatpush1.msra.mxu0 0.0
    %3250 = vmatprep.subr.mxu0 0.0
    %3251 = vmatpush1.msra.mxu0 0.0
    %3252 = vmatprep.subr.mxu0 0.0
    %3253 = vmatpush1.msra.mxu0 0.0
    %3254 = vmatprep.subr.mxu0 0.0
    %3255 = vmatpush1.msra.mxu0 0.0
    %3256 = vmatprep.subr.mxu0 0.0
    %3257 = vmatpush1.msra.mxu0 0.0
    %3258 = vmatprep.subr.mxu0 0.0
    %3259 = vmatpush1.msra.mxu0 0.0
    %3260 = vmatprep.subr.mxu0 0.0
    %3261 = vmatpush1.msra.mxu0 0.0
    %3262 = vmatprep.mubr.f32.mxu0 0.0
    %3263 = vmatmul.mubr.f32.gmra.mrb[0].mxu0 %v3125
    %v3264 = vpop.f32.mrb[0].mxu0
    %v3265 = vadd.f32 0.0, %v3264
    %v3266 = vpop.f32.mrb[0].mxu0
    %v3267 = vadd.f32 0.0, %v3266
    %3268 = vdwg.mxu0
    %v3269 = vadd.f32 %v3086, %v3194
    %v3270 = vadd.f32 %v3087, %v3196
    %v3271 = vadd.f32 %v3088, %v3265
    %v3272 = vadd.f32 %v3089, %v3267
    %3273 = vrot.lane.b32.xlu0 %v1841, 111
    %v3274 = vpop.permute.xlu0 %3273
    %3275 = vrot.lane.b32.xlu0 %v1845, 111
    %v3276 = vpop.permute.xlu0 %3275
    %3277 = vrot.lane.b32.xlu0 %v1842, 111
    %v3278 = vpop.permute.xlu0 %3277
    %3279 = vrot.lane.b32.xlu0 %v1846, 111
    %v3280 = vpop.permute.xlu0 %3279
    %3281 = vrot.lane.b32.xlu0 %v1843, 111
    %v3282 = vpop.permute.xlu0 %3281
    %3283 = vrot.lane.b32.xlu0 %v1847, 111
    %v3284 = vpop.permute.xlu0 %3283
    %3285 = vrot.lane.b32.xlu0 %v1844, 111
    %v3286 = vpop.permute.xlu0 %3285
    %3287 = vrot.lane.b32.xlu0 %v1848, 111
    %v3288 = vpop.permute.xlu0 %3287
    %v3289 = vsel %vm1625, %v3282, %v3286
    %v3290 = vsel %vm1625, %v3284, %v3288
    %v3291 = vsel %vm1625, %v3278, %v3282
    %v3292 = vsel %vm1625, %v3280, %v3284
    %v3293 = vsel %vm1625, %v3274, %v3278
    %v3294 = vsel %vm1625, %v3276, %v3280
    %v3295 = vsel %vm1625, %v3286, %v3274
    %v3296 = vsel %vm1625, %v3288, %v3276
    %v3297 = vmul.f32 %v3293, %v1633
    %v3298 = vmul.f32 %v3291, %v1637
    %v3299 = vmul.f32 %v3289, %v1641
    %v3300 = vmul.f32 %v3295, %v1645
    %v3301 = vmul.f32 %v3294, %v1633
    %v3302 = vmul.f32 %v3292, %v1637
    %v3303 = vmul.f32 %v3290, %v1641
    %v3304 = vmul.f32 %v3296, %v1645
    %s3305 = scalar_lea.vmem %s4, 64
    %v3306 = vld [vmem:[%s3305] sm:$0xff]
    %v3308 = vsel %vm1884, %v3306, 0
    %3310 = vmatprep.subr.mxu0 %v3298
    %3311 = vmatpush1.msra.mxu0 %v3297
    %3312 = vmatprep.subr.mxu0 %v3302
    %3313 = vmatpush1.msra.mxu0 %v3301
    %3314 = vmatprep.subr.mxu0 0.0
    %3315 = vmatpush1.msra.mxu0 0.0
    %3316 = vmatprep.subr.mxu0 0.0
    %3317 = vmatpush1.msra.mxu0 0.0
    %3318 = vmatprep.subr.mxu0 0.0
    %3319 = vmatpush1.msra.mxu0 0.0
    %3320 = vmatprep.subr.mxu0 0.0
    %3321 = vmatpush1.msra.mxu0 0.0
    %3322 = vmatprep.subr.mxu0 0.0
    %3323 = vmatpush1.msra.mxu0 0.0
    %3324 = vmatprep.subr.mxu0 0.0
    %3325 = vmatpush1.msra.mxu0 0.0
    %3326 = vmatprep.subr.mxu0 0.0
    %3327 = vmatpush1.msra.mxu0 0.0
    %3328 = vmatprep.subr.mxu0 0.0
    %3329 = vmatpush1.msra.mxu0 0.0
    %3330 = vmatprep.subr.mxu0 0.0
    %3331 = vmatpush1.msra.mxu0 0.0
    %3332 = vmatprep.subr.mxu0 0.0
    %3333 = vmatpush1.msra.mxu0 0.0
    %3334 = vmatprep.subr.mxu0 0.0
    %3335 = vmatpush1.msra.mxu0 0.0
    %3336 = vmatprep.subr.mxu0 0.0
    %3337 = vmatpush1.msra.mxu0 0.0
    %3338 = vmatprep.subr.mxu0 0.0
    %3339 = vmatpush1.msra.mxu0 0.0
    %3340 = vmatprep.subr.mxu0 0.0
    %3341 = vmatpush1.msra.mxu0 0.0
    %3342 = vmatprep.subr.mxu0 0.0
    %3343 = vmatpush1.msra.mxu0 0.0
    %3344 = vmatprep.subr.mxu0 0.0
    %3345 = vmatpush1.msra.mxu0 0.0
    %3346 = vmatprep.subr.mxu0 0.0
    %3347 = vmatpush1.msra.mxu0 0.0
    %3348 = vmatprep.subr.mxu0 0.0
    %3349 = vmatpush1.msra.mxu0 0.0
    %3350 = vmatprep.subr.mxu0 0.0
    %3351 = vmatpush1.msra.mxu0 0.0
    %3352 = vmatprep.subr.mxu0 0.0
    %3353 = vmatpush1.msra.mxu0 0.0
    %3354 = vmatprep.subr.mxu0 0.0
    %3355 = vmatpush1.msra.mxu0 0.0
    %3356 = vmatprep.subr.mxu0 0.0
    %3357 = vmatpush1.msra.mxu0 0.0
    %3358 = vmatprep.subr.mxu0 0.0
    %3359 = vmatpush1.msra.mxu0 0.0
    %3360 = vmatprep.subr.mxu0 0.0
    %3361 = vmatpush1.msra.mxu0 0.0
    %3362 = vmatprep.subr.mxu0 0.0
    %3363 = vmatpush1.msra.mxu0 0.0
    %3364 = vmatprep.subr.mxu0 0.0
    %3365 = vmatpush1.msra.mxu0 0.0
    %3366 = vmatprep.subr.mxu0 0.0
    %3367 = vmatpush1.msra.mxu0 0.0
    %3368 = vmatprep.subr.mxu0 0.0
    %3369 = vmatpush1.msra.mxu0 0.0
    %3370 = vmatprep.subr.mxu0 0.0
    %3371 = vmatpush1.msra.mxu0 0.0
    %3372 = vmatprep.subr.mxu0 0.0
    %3373 = vmatpush1.msra.mxu0 0.0
    %3374 = vmatprep.mubr.f32.mxu0 0.0
    %3375 = vmatmul.mubr.f32.gmra.mrb[0].mxu0 %v3308
    %v3376 = vpop.f32.mrb[0].mxu0
    %v3377 = vadd.f32 0.0, %v3376
    %v3378 = vpop.f32.mrb[0].mxu0
    %v3379 = vadd.f32 0.0, %v3378
    %3380 = vdwg.mxu0
    %3381 = vmatprep.subr.mxu0 %v3300
    %3382 = vmatpush1.msra.mxu0 %v3299
    %3383 = vmatprep.subr.mxu0 %v3304
    %3384 = vmatpush1.msra.mxu0 %v3303
    %3385 = vmatprep.subr.mxu0 0.0
    %3386 = vmatpush1.msra.mxu0 0.0
    %3387 = vmatprep.subr.mxu0 0.0
    %3388 = vmatpush1.msra.mxu0 0.0
    %3389 = vmatprep.subr.mxu0 0.0
    %3390 = vmatpush1.msra.mxu0 0.0
    %3391 = vmatprep.subr.mxu0 0.0
    %3392 = vmatpush1.msra.mxu0 0.0
    %3393 = vmatprep.subr.mxu0 0.0
    %3394 = vmatpush1.msra.mxu0 0.0
    %3395 = vmatprep.subr.mxu0 0.0
    %3396 = vmatpush1.msra.mxu0 0.0
    %3397 = vmatprep.subr.mxu0 0.0
    %3398 = vmatpush1.msra.mxu0 0.0
    %3399 = vmatprep.subr.mxu0 0.0
    %3400 = vmatpush1.msra.mxu0 0.0
    %3401 = vmatprep.subr.mxu0 0.0
    %3402 = vmatpush1.msra.mxu0 0.0
    %3403 = vmatprep.subr.mxu0 0.0
    %3404 = vmatpush1.msra.mxu0 0.0
    %3405 = vmatprep.subr.mxu0 0.0
    %3406 = vmatpush1.msra.mxu0 0.0
    %3407 = vmatprep.subr.mxu0 0.0
    %3408 = vmatpush1.msra.mxu0 0.0
    %3409 = vmatprep.subr.mxu0 0.0
    %3410 = vmatpush1.msra.mxu0 0.0
    %3411 = vmatprep.subr.mxu0 0.0
    %3412 = vmatpush1.msra.mxu0 0.0
    %3413 = vmatprep.subr.mxu0 0.0
    %3414 = vmatpush1.msra.mxu0 0.0
    %3415 = vmatprep.subr.mxu0 0.0
    %3416 = vmatpush1.msra.mxu0 0.0
    %3417 = vmatprep.subr.mxu0 0.0
    %3418 = vmatpush1.msra.mxu0 0.0
    %3419 = vmatprep.subr.mxu0 0.0
    %3420 = vmatpush1.msra.mxu0 0.0
    %3421 = vmatprep.subr.mxu0 0.0
    %3422 = vmatpush1.msra.mxu0 0.0
    %3423 = vmatprep.subr.mxu0 0.0
    %3424 = vmatpush1.msra.mxu0 0.0
    %3425 = vmatprep.subr.mxu0 0.0
    %3426 = vmatpush1.msra.mxu0 0.0
    %3427 = vmatprep.subr.mxu0 0.0
    %3428 = vmatpush1.msra.mxu0 0.0
    %3429 = vmatprep.subr.mxu0 0.0
    %3430 = vmatpush1.msra.mxu0 0.0
    %3431 = vmatprep.subr.mxu0 0.0
    %3432 = vmatpush1.msra.mxu0 0.0
    %3433 = vmatprep.subr.mxu0 0.0
    %3434 = vmatpush1.msra.mxu0 0.0
    %3435 = vmatprep.subr.mxu0 0.0
    %3436 = vmatpush1.msra.mxu0 0.0
    %3437 = vmatprep.subr.mxu0 0.0
    %3438 = vmatpush1.msra.mxu0 0.0
    %3439 = vmatprep.subr.mxu0 0.0
    %3440 = vmatpush1.msra.mxu0 0.0
    %3441 = vmatprep.subr.mxu0 0.0
    %3442 = vmatpush1.msra.mxu0 0.0
    %3443 = vmatprep.subr.mxu0 0.0
    %3444 = vmatpush1.msra.mxu0 0.0
    %3445 = vmatprep.mubr.f32.mxu0 0.0
    %3446 = vmatmul.mubr.f32.gmra.mrb[0].mxu0 %v3308
    %v3447 = vpop.f32.mrb[0].mxu0
    %v3448 = vadd.f32 0.0, %v3447
    %v3449 = vpop.f32.mrb[0].mxu0
    %v3450 = vadd.f32 0.0, %v3449
    %3451 = vdwg.mxu0
    %v3452 = vadd.f32 %v3269, %v3377
    %v3453 = vadd.f32 %v3270, %v3379
    %v3454 = vadd.f32 %v3271, %v3448
    %v3455 = vadd.f32 %v3272, %v3450
    %v3456 = vld [vmem:[%s5] sm:$0xff]
    %3458 = vset.pattern.permute.xlu0 0
    %3459 = vperm.xlu0 %3458, %v3456
    %v3460 = vpop.permute.xlu0 %3459
    %v3462 = vadd.f32 %v3452, %v3460
    %v3463 = vadd.f32 %v3453, %v3460
    %v3464 = vadd.f32 %v3454, %v3460
    %v3465 = vadd.f32 %v3455, %v3460
    %3466 = vst [vmem:[#allocation2] sm:$0xff] %v3462
    %3467 = vst [vmem:[#allocation2 + $0x8] sm:$0xff] %v3463
    %3468 = vst [vmem:[#allocation2 + $0x10] sm:$0xff] %v3464
    %3469 = vst [vmem:[#allocation2 + $0x18] sm:$0xff] %v3465
    // Predicated region
    $region26: #{tpu_custom_call.1} parent=1 // pred_check
      _
    $region27: #{tpu_custom_call.1} parent=1 // pred_check_branch
      %3471 = sbr.rel (0) target = $region29
    $region28: #{tpu_custom_call.1} parent=1 // pred_region
      %s3473 = ssub.s32 512, 512
      %3474 = vsyncadd [#allocation3], %s3473
      %s3476 = sshll.u32 [#allocation2], 4
      %s3477 = int_to_ptr.vmem [resolvable:$true] %s3476
      %3479 = dma.vmem_to_hbm [thread:$0]  %s3477, 512, %s6, [#allocation3]
    $region29: #{tpu_custom_call.1} parent=1 // pred_fallthru
      _
    // Predicated region
    $region30: #{tpu_custom_call.1} parent=1 // pred_check
      _
    $region31: #{tpu_custom_call.1} parent=1 // pred_check_branch
      %3481 = sbr.rel (0) target = $region33
    $region32: #{tpu_custom_call.1} parent=1 // pred_region
      %3482 = dma.done [#allocation3], 512
    $region33: #{tpu_custom_call.1} parent=1 // pred_fallthru
      _
    %3483 = vsyncpa [#allocation3], 1

</llo_original>
